<compile_context>
chip_gen: v7x
topology: tpu7x:2x2x1
jax: 0.10.0
libtpu: 0.0.40
codegen_flags: <defaults>
</compile_context>

<pallas_src>
import functools
import math

import jax
import jax.numpy as jnp
from jax import lax
from jax.experimental import pallas as pl
from jax.experimental.pallas import tpu as pltpu


def _layer_norm(v, g, b, eps=1e-6):
    mu = jnp.mean(v, axis=-1, keepdims=True)
    c = v - mu
    var = jnp.mean(c * c, axis=-1, keepdims=True)
    return c * lax.rsqrt(var + eps) * g + b


def _gelu_exact(t):
    return 0.5 * t * (1.0 + lax.erf(t * (1.0 / math.sqrt(2.0))))


def transformer_block_kernel(
    x_ref,
    ln_in_g_ref, ln_in_b_ref,
    wqkv_ref, bqkv_ref,
    wo_ref, bo_ref,
    ln1_g_ref, ln1_b_ref,
    w1_ref, b1_ref,
    w2_ref, b2_ref,
    ln2_g_ref, ln2_b_ref,
    o_ref,
    *, num_heads, head_dim, b_blk, seq, compute_dtype,
):
    f32 = jnp.float32
    cd = compute_dtype

    x = x_ref[...]                      # (R, E), R = b_blk * seq (batch*seq rows, flattened)
    R, E = x.shape

    # --- pre-attention LayerNorm (f32) ---
    ln_x = _layer_norm(x, ln_in_g_ref[...], ln_in_b_ref[...])

    # --- fused QKV projection: one MXU pass with N = 3E.
    #     1/sqrt(head_dim) is already folded into the Q columns of the weight. ---
    qkv = jnp.dot(ln_x.astype(cd), wqkv_ref[...],
                  preferred_element_type=f32) + bqkv_ref[...]     # (R, 3E) f32

    # --- multi-head attention, batched over the b_blk batches of this tile.
    #     Each head's output goes straight through the matching rows of Wo and is
    #     accumulated -> no concatenate of head outputs along the lane dim. ---
    wo = wo_ref[...]                    # (E, E), compute dtype
    attn = None
    for h in range(num_heads):
        lo = h * head_dim
        hi = lo + head_dim
        q_h = qkv[:, lo:hi].reshape(b_blk, seq, head_dim)
        k_h = qkv[:, E + lo:E + hi].reshape(b_blk, seq, head_dim)
        v_h = qkv[:, 2 * E + lo:2 * E + hi].reshape(b_blk, seq, head_dim)

        s = jnp.einsum('bqd,bkd->bqk', q_h.astype(cd), k_h.astype(cd),
                       preferred_element_type=f32)               # (b_blk, S, S) f32
        s = s - jnp.max(s, axis=-1, keepdims=True)
        p = jnp.exp(s)
        p = p * pl.reciprocal(jnp.sum(p, axis=-1, keepdims=True), approx=True)

        o_h = jnp.einsum('bqk,bkd->bqd', p.astype(cd), v_h.astype(cd),
                         preferred_element_type=f32)             # (b_blk, S, Dh)
        part = jnp.dot(o_h.reshape(R, head_dim).astype(cd), wo[lo:hi, :],
                       preferred_element_type=f32)               # (R, E)
        attn = part if attn is None else attn + part
    attn = attn + bo_ref[...]

    # --- residual + LayerNorm 1 (f32) ---
    out1 = _layer_norm(x + attn, ln1_g_ref[...], ln1_b_ref[...])

    # --- FFN: Linear -> GELU -> (dropout=id) -> Linear -> GELU -> (dropout=id) ---
    h1 = _gelu_exact(jnp.dot(out1.astype(cd), w1_ref[...],
                             preferred_element_type=f32) + b1_ref[...])
    h2 = _gelu_exact(jnp.dot(h1.astype(cd), w2_ref[...],
                             preferred_element_type=f32) + b2_ref[...])

    # --- residual + LayerNorm 2 (f32) ---
    o_ref[...] = _layer_norm(out1 + h2, ln2_g_ref[...], ln2_b_ref[...])


def transformer_block(x, params, *, num_heads, compute_dtype=jnp.float32,
                      target_rows=256):
    """x: (B, S, E) float32. Linear weights in `params` are (in_features, out_features)."""
    B, S, E = x.shape
    assert E % num_heads == 0, "embed_dim must be divisible by num_heads"
    head_dim = E // num_heads
    ff_dim = params["w1"].shape[1]
    # The PyTorch forward uses q = k = v = layer_norm(inputs), which requires key_dim == embed_dim.
    assert params["wq"].shape == (E, E) and params["wk"].shape == (E, E)
    assert params["wv"].shape == (E, E) and params["wo"].shape == (E, E)
    assert params["w1"].shape == (E, ff_dim) and params["w2"].shape == (ff_dim, E)

    f32 = jnp.float32
    scale = 1.0 / math.sqrt(head_dim)
    # Fused QKV weight/bias; fold the attention scale into the Q projection.
    w_qkv = jnp.concatenate([params["wq"] * scale, params["wk"], params["wv"]],
                            axis=1).astype(compute_dtype)
    b_qkv = jnp.concatenate([params["bq"] * scale, params["bk"], params["bv"]],
                            axis=1).astype(f32)
    wo = params["wo"].astype(compute_dtype)
    w1 = params["w1"].astype(compute_dtype)
    w2 = params["w2"].astype(compute_dtype)

    # Batch-block size: flatten b_blk*S rows per grid step so the MXU sees a large M.
    b_blk = max(1, min(B, max(1, target_rows // S)))
    while B % b_blk:
        b_blk -= 1
    rows = b_blk * S
    if rows % 8 and b_blk != B:        # keep the row block sublane-aligned, or use the full array
        b_blk, rows = B, B * S
    num_blocks = B // b_blk

    x2d = x.reshape(B * S, E).astype(f32)

    param_list = [
        params["ln_in_g"].astype(f32), params["ln_in_b"].astype(f32),
        w_qkv, b_qkv,
        wo, params["bo"].astype(f32),
        params["ln1_g"].astype(f32), params["ln1_b"].astype(f32),
        w1, params["b1"].astype(f32),
        w2, params["b2"].astype(f32),
        params["ln2_g"].astype(f32), params["ln2_b"].astype(f32),
    ]

    kernel = functools.partial(
        transformer_block_kernel, num_heads=num_heads, head_dim=head_dim,
        b_blk=b_blk, seq=S, compute_dtype=compute_dtype)

    # Advisory cost estimate so XLA can overlap the weight DMA with neighbouring ops.
    flops = int(2 * B * S * E * (3 * E + E + 2 * ff_dim)
                + 4 * B * num_heads * S * S * head_dim)
    transcendentals = int(B * S * (ff_dim + E) + B * num_heads * S * S)
    param_bytes = int(sum(int(p.size) * p.dtype.itemsize for p in param_list))
    bytes_accessed = int(2 * x.size * 4 + param_bytes)
    cost = pl.CostEstimate(flops=flops, transcendentals=transcendentals,
                           bytes_accessed=bytes_accessed)

    # Explicit VMEM budget from the actual footprint, capped for v7x's 64 MiB per-core VMEM.
    act_bytes = 4 * rows * (6 * E + ff_dim) + 4 * b_blk * S * S * 2
    vmem_limit = int(min(max(32 << 20, 2 * param_bytes + 4 * act_bytes), 64 << 20))

    def build(single_buffer_params):
        def pspec(p):
            shape = p.shape
            index_map = lambda i: (0,) * len(shape)
            if single_buffer_params:
                # Constant block index -> no need to double-buffer the weights.
                return pl.BlockSpec(shape, index_map,
                                    pipeline_mode=pl.Buffered(buffer_count=1))
            return pl.BlockSpec(shape, index_map)

        in_specs = [pl.BlockSpec((rows, E), lambda i: (i, 0))]
        in_specs += [pspec(p) for p in param_list]
        return pl.pallas_call(
            kernel,
            out_shape=jax.ShapeDtypeStruct((B * S, E), f32),
            grid_spec=pltpu.PrefetchScalarGridSpec(
                num_scalar_prefetch=0,
                grid=(num_blocks,),
                in_specs=in_specs,
                out_specs=pl.BlockSpec((rows, E), lambda i: (i, 0)),
            ),
            compiler_params=pltpu.CompilerParams(
                dimension_semantics=("parallel",),
                vmem_limit_bytes=vmem_limit,
            ),
            cost_estimate=cost,
        )

    operands = [x2d] + param_list
    try:
        out2d = build(True)(*operands)
    except Exception:
        # Some Pallas versions reject pl.Buffered(1) on top-level pallas_call pipelining;
        # fall back to default double-buffered parameters (identical results).
        out2d = build(False)(*operands)
    return out2d.reshape(B, S, E)


def transformer_block_reference(x, params, *, num_heads):
    """Pure-JAX reference (same math as the PyTorch module, eval mode)."""
    B, S, E = x.shape
    head_dim = E // num_heads
    scale = 1.0 / math.sqrt(head_dim)

    def one(xb):
        ln_x = _layer_norm(xb, params["ln_in_g"], params["ln_in_b"])
        q = ln_x @ params["wq"] + params["bq"]
        k = ln_x @ params["wk"] + params["bk"]
        v = ln_x @ params["wv"] + params["bv"]
        outs = []
        for h in range(num_heads):
            sl = slice(h * head_dim, (h + 1) * head_dim)
            s = (q[:, sl] @ k[:, sl].T) * scale
            p = jax.nn.softmax(s, axis=-1)
            outs.append(p @ v[:, sl])
        attn = jnp.concatenate(outs, axis=-1) @ params["wo"] + params["bo"]
        out1 = _layer_norm(xb + attn, params["ln1_g"], params["ln1_b"])
        h1 = _gelu_exact(out1 @ params["w1"] + params["b1"])
        h2 = _gelu_exact(h1 @ params["w2"] + params["b2"])
        return _layer_norm(out1 + h2, params["ln2_g"], params["ln2_b"])

    return jax.vmap(one)(x)


if __name__ == "__main__":
    # Small shapes consistent with the module (key_dim == embed_dim is required for
    # the forward pass, since q/k/v all come from layer_norm(inputs)).
    B, S, E = 2, 8, 32
    num_heads = 4
    ff_dim = 64

    root = jax.random.PRNGKey(0)
    ks = jax.random.split(root, 20)
    f32 = jnp.float32
    w = lambda k, shape, s=0.1: s * jax.random.normal(k, shape, f32)

    params = {
        "ln_in_g": 1.0 + w(ks[0], (1, E)), "ln_in_b": w(ks[1], (1, E)),
        "ln1_g":   1.0 + w(ks[2], (1, E)), "ln1_b":   w(ks[3], (1, E)),
        "ln2_g":   1.0 + w(ks[4], (1, E)), "ln2_b":   w(ks[5], (1, E)),
        # attention in/out projections, pre-transposed to (in_features, out_features)
        "wq": w(ks[6], (E, E)),  "bq": w(ks[7], (1, E)),
        "wk": w(ks[8], (E, E)),  "bk": w(ks[9], (1, E)),
        "wv": w(ks[10], (E, E)), "bv": w(ks[11], (1, E)),
        "wo": w(ks[12], (E, E)), "bo": w(ks[13], (1, E)),
        # FFN Linear(E->ff) GELU Linear(ff->E) GELU (dropouts are identity)
        "w1": w(ks[14], (E, ff_dim)), "b1": w(ks[15], (1, ff_dim)),
        "w2": w(ks[16], (ff_dim, E)), "b2": w(ks[17], (1, E)),
    }
    x = jax.random.normal(ks[18], (B, S, E), f32)

    ref = transformer_block_reference(x, params, num_heads=num_heads)

    out = transformer_block(x, params, num_heads=num_heads)
    out = jax.block_until_ready(out)
    assert out.shape == (B, S, E)
    err = float(jnp.max(jnp.abs(out - ref)))
    assert err < 5e-3, f"f32 kernel mismatch: {err}"

    # bf16 MXU-operand mode (f32 accumulation / LayerNorm / softmax kept), per v6e/v7x advice.
    out_bf16 = transformer_block(x, params, num_heads=num_heads,
                                 compute_dtype=jnp.bfloat16)
    out_bf16 = jax.block_until_ready(out_bf16)
    err_bf16 = float(jnp.max(jnp.abs(out_bf16 - ref)))
    assert err_bf16 < 1e-1, f"bf16 kernel mismatch: {err_bf16}"

    print("KERNEL_OK")
</pallas_src>

<mosaic_0001>
module attributes {stable_mosaic.version = 11 : i64} {
  func.func @transformer_block_kernel(%arg0: i32, %arg1: memref<16x32xf32, #tpu.memory_space<vmem>>, %arg2: memref<1x32xf32, #tpu.memory_space<vmem>>, %arg3: memref<1x32xf32, #tpu.memory_space<vmem>>, %arg4: memref<32x96xf32, #tpu.memory_space<vmem>>, %arg5: memref<1x96xf32, #tpu.memory_space<vmem>>, %arg6: memref<32x32xf32, #tpu.memory_space<vmem>>, %arg7: memref<1x32xf32, #tpu.memory_space<vmem>>, %arg8: memref<1x32xf32, #tpu.memory_space<vmem>>, %arg9: memref<1x32xf32, #tpu.memory_space<vmem>>, %arg10: memref<32x64xf32, #tpu.memory_space<vmem>>, %arg11: memref<1x64xf32, #tpu.memory_space<vmem>>, %arg12: memref<64x32xf32, #tpu.memory_space<vmem>>, %arg13: memref<1x32xf32, #tpu.memory_space<vmem>>, %arg14: memref<1x32xf32, #tpu.memory_space<vmem>>, %arg15: memref<1x32xf32, #tpu.memory_space<vmem>>, %arg16: memref<16x32xf32, #tpu.memory_space<vmem>>) attributes {dimension_semantics = [#tpu.dimension_semantics<parallel>], iteration_bounds = array<i64: 1>, scalar_prefetch = 0 : i64, scratch_operands = 0 : i64, tpu.core_type = #tpu.core_type<tc>, window_params = [{transform_indices = @transform_0, window_bounds = array<i64: 16, 32>}, {pipeline_mode = #tpu.pipeline_mode<synchronous>, transform_indices = @transform_1, window_bounds = array<i64: 1, 32>}, {pipeline_mode = #tpu.pipeline_mode<synchronous>, transform_indices = @transform_2, window_bounds = array<i64: 1, 32>}, {pipeline_mode = #tpu.pipeline_mode<synchronous>, transform_indices = @transform_3, window_bounds = array<i64: 32, 96>}, {pipeline_mode = #tpu.pipeline_mode<synchronous>, transform_indices = @transform_4, window_bounds = array<i64: 1, 96>}, {pipeline_mode = #tpu.pipeline_mode<synchronous>, transform_indices = @transform_5, window_bounds = array<i64: 32, 32>}, {pipeline_mode = #tpu.pipeline_mode<synchronous>, transform_indices = @transform_6, window_bounds = array<i64: 1, 32>}, {pipeline_mode = #tpu.pipeline_mode<synchronous>, transform_indices = @transform_7, window_bounds = array<i64: 1, 32>}, {pipeline_mode = #tpu.pipeline_mode<synchronous>, transform_indices = @transform_8, window_bounds = array<i64: 1, 32>}, {pipeline_mode = #tpu.pipeline_mode<synchronous>, transform_indices = @transform_9, window_bounds = array<i64: 32, 64>}, {pipeline_mode = #tpu.pipeline_mode<synchronous>, transform_indices = @transform_10, window_bounds = array<i64: 1, 64>}, {pipeline_mode = #tpu.pipeline_mode<synchronous>, transform_indices = @transform_11, window_bounds = array<i64: 64, 32>}, {pipeline_mode = #tpu.pipeline_mode<synchronous>, transform_indices = @transform_12, window_bounds = array<i64: 1, 32>}, {pipeline_mode = #tpu.pipeline_mode<synchronous>, transform_indices = @transform_13, window_bounds = array<i64: 1, 32>}, {pipeline_mode = #tpu.pipeline_mode<synchronous>, transform_indices = @transform_14, window_bounds = array<i64: 1, 32>}, {transform_indices = @transform_15, window_bounds = array<i64: 16, 32>}]} {
    %c0 = arith.constant 0 : index
    %c0_0 = arith.constant 0 : index
    %0 = vector.load %arg1[%c0, %c0_0] : memref<16x32xf32, #tpu.memory_space<vmem>>, vector<16x32xf32>
    %c0_1 = arith.constant 0 : index
    %c0_2 = arith.constant 0 : index
    %1 = vector.load %arg2[%c0_1, %c0_2] : memref<1x32xf32, #tpu.memory_space<vmem>>, vector<1x32xf32>
    %c0_3 = arith.constant 0 : index
    %c0_4 = arith.constant 0 : index
    %2 = vector.load %arg3[%c0_3, %c0_4] : memref<1x32xf32, #tpu.memory_space<vmem>>, vector<1x32xf32>
    %cst = arith.constant dense<0.000000e+00> : vector<16xf32>
    %3 = vector.multi_reduction <add>, %0, %cst [1] : vector<16x32xf32> to vector<16xf32>
    %4 = vector.shape_cast %3 : vector<16xf32> to vector<16x1xf32>
    %cst_5 = arith.constant 3.200000e+01 : f32
    %5 = vector.broadcast %cst_5 : f32 to vector<16x1xf32>
    %6 = arith.divf %4, %5 : vector<16x1xf32>
    %7 = vector.broadcast %6 : vector<16x1xf32> to vector<16x32xf32>
    %8 = arith.subf %0, %7 : vector<16x32xf32>
    %9 = arith.mulf %8, %8 : vector<16x32xf32>
    %cst_6 = arith.constant dense<0.000000e+00> : vector<16xf32>
    %10 = vector.multi_reduction <add>, %9, %cst_6 [1] : vector<16x32xf32> to vector<16xf32>
    %11 = vector.shape_cast %10 : vector<16xf32> to vector<16x1xf32>
    %cst_7 = arith.constant 3.200000e+01 : f32
    %12 = vector.broadcast %cst_7 : f32 to vector<16x1xf32>
    %13 = arith.divf %11, %12 : vector<16x1xf32>
    %cst_8 = arith.constant 9.99999997E-7 : f32
    %14 = vector.broadcast %cst_8 : f32 to vector<16x1xf32>
    %15 = arith.addf %13, %14 : vector<16x1xf32>
    %16 = math.rsqrt %15 : vector<16x1xf32>
    %17 = vector.broadcast %16 : vector<16x1xf32> to vector<16x32xf32>
    %18 = arith.mulf %8, %17 : vector<16x32xf32>
    %19 = vector.broadcast %1 : vector<1x32xf32> to vector<16x32xf32>
    %20 = arith.mulf %18, %19 : vector<16x32xf32>
    %21 = vector.broadcast %2 : vector<1x32xf32> to vector<16x32xf32>
    %22 = arith.addf %20, %21 : vector<16x32xf32>
    %c0_9 = arith.constant 0 : index
    %c0_10 = arith.constant 0 : index
    %23 = vector.load %arg4[%c0_9, %c0_10] : memref<32x96xf32, #tpu.memory_space<vmem>>, vector<32x96xf32>
    %cst_11 = arith.constant dense<0.000000e+00> : vector<16x96xf32>
    %24 = tpu.matmul %22, %23, %cst_11 {dimension_numbers = #tpu.dot_dimension_numbers<[1], [0], [0], [1], [0, 0, 1, 1], [], []>} : vector<16x32xf32>, vector<32x96xf32>, vector<16x96xf32> -> vector<16x96xf32>
    %c0_12 = arith.constant 0 : index
    %c0_13 = arith.constant 0 : index
    %25 = vector.load %arg5[%c0_12, %c0_13] : memref<1x96xf32, #tpu.memory_space<vmem>>, vector<1x96xf32>
    %26 = vector.broadcast %25 : vector<1x96xf32> to vector<16x96xf32>
    %27 = arith.addf %24, %26 : vector<16x96xf32>
    %c0_14 = arith.constant 0 : index
    %c0_15 = arith.constant 0 : index
    %28 = vector.load %arg6[%c0_14, %c0_15] : memref<32x32xf32, #tpu.memory_space<vmem>>, vector<32x32xf32>
    %29 = vector.extract_strided_slice %27 {offsets = [0, 0], sizes = [16, 8], strides = [1, 1]} : vector<16x96xf32> to vector<16x8xf32>
    %30 = vector.shape_cast %29 : vector<16x8xf32> to vector<2x8x8xf32>
    %31 = vector.extract_strided_slice %27 {offsets = [0, 32], sizes = [16, 8], strides = [1, 1]} : vector<16x96xf32> to vector<16x8xf32>
    %32 = vector.shape_cast %31 : vector<16x8xf32> to vector<2x8x8xf32>
    %33 = vector.extract_strided_slice %27 {offsets = [0, 64], sizes = [16, 8], strides = [1, 1]} : vector<16x96xf32> to vector<16x8xf32>
    %34 = vector.shape_cast %33 : vector<16x8xf32> to vector<2x8x8xf32>
    "tpu.trace_start"() <{level = 10 : i32, message = "bqd,bkd->bqk"}> : () -> ()
    %cst_16 = arith.constant dense<0.000000e+00> : vector<2x8x8xf32>
    %35 = tpu.matmul %30, %32, %cst_16 {dimension_numbers = #tpu.dot_dimension_numbers<[2], [2], [1], [1], [0, 0, 0, 1, 1, 1], [0], [0]>} : vector<2x8x8xf32>, vector<2x8x8xf32>, vector<2x8x8xf32> -> vector<2x8x8xf32>
    "tpu.trace_stop"() : () -> ()
    %cst_17 = arith.constant dense<0xFF800000> : vector<2x8xf32>
    %36 = vector.multi_reduction <maximumf>, %35, %cst_17 [2] : vector<2x8x8xf32> to vector<2x8xf32>
    %37 = vector.shape_cast %36 : vector<2x8xf32> to vector<2x8x1xf32>
    %38 = vector.broadcast %37 : vector<2x8x1xf32> to vector<2x8x8xf32>
    %39 = arith.subf %35, %38 : vector<2x8x8xf32>
    %40 = math.exp %39 : vector<2x8x8xf32>
    %cst_18 = arith.constant dense<0.000000e+00> : vector<2x8xf32>
    %41 = vector.multi_reduction <add>, %40, %cst_18 [2] : vector<2x8x8xf32> to vector<2x8xf32>
    %42 = vector.shape_cast %41 : vector<2x8xf32> to vector<2x8x1xf32>
    %43 = tpu.reciprocal %42 {approx = true} : vector<2x8x1xf32> -> vector<2x8x1xf32>
    %44 = vector.broadcast %43 : vector<2x8x1xf32> to vector<2x8x8xf32>
    %45 = arith.mulf %40, %44 : vector<2x8x8xf32>
    "tpu.trace_start"() <{level = 10 : i32, message = "bqk,bkd->bqd"}> : () -> ()
    %cst_19 = arith.constant dense<0.000000e+00> : vector<2x8x8xf32>
    %46 = tpu.matmul %45, %34, %cst_19 {dimension_numbers = #tpu.dot_dimension_numbers<[2], [1], [1], [2], [0, 0, 0, 1, 1, 2], [0], [0]>} : vector<2x8x8xf32>, vector<2x8x8xf32>, vector<2x8x8xf32> -> vector<2x8x8xf32>
    "tpu.trace_stop"() : () -> ()
    %47 = vector.shape_cast %46 : vector<2x8x8xf32> to vector<16x8xf32>
    %48 = vector.extract_strided_slice %28 {offsets = [0, 0], sizes = [8, 32], strides = [1, 1]} : vector<32x32xf32> to vector<8x32xf32>
    %cst_20 = arith.constant dense<0.000000e+00> : vector<16x32xf32>
    %49 = tpu.matmul %47, %48, %cst_20 {dimension_numbers = #tpu.dot_dimension_numbers<[1], [0], [0], [1], [0, 0, 1, 1], [], []>} : vector<16x8xf32>, vector<8x32xf32>, vector<16x32xf32> -> vector<16x32xf32>
    %50 = vector.extract_strided_slice %27 {offsets = [0, 8], sizes = [16, 8], strides = [1, 1]} : vector<16x96xf32> to vector<16x8xf32>
    %51 = vector.shape_cast %50 : vector<16x8xf32> to vector<2x8x8xf32>
    %52 = vector.extract_strided_slice %27 {offsets = [0, 40], sizes = [16, 8], strides = [1, 1]} : vector<16x96xf32> to vector<16x8xf32>
    %53 = vector.shape_cast %52 : vector<16x8xf32> to vector<2x8x8xf32>
    %54 = vector.extract_strided_slice %27 {offsets = [0, 72], sizes = [16, 8], strides = [1, 1]} : vector<16x96xf32> to vector<16x8xf32>
    %55 = vector.shape_cast %54 : vector<16x8xf32> to vector<2x8x8xf32>
    "tpu.trace_start"() <{level = 10 : i32, message = "bqd,bkd->bqk"}> : () -> ()
    %cst_21 = arith.constant dense<0.000000e+00> : vector<2x8x8xf32>
    %56 = tpu.matmul %51, %53, %cst_21 {dimension_numbers = #tpu.dot_dimension_numbers<[2], [2], [1], [1], [0, 0, 0, 1, 1, 1], [0], [0]>} : vector<2x8x8xf32>, vector<2x8x8xf32>, vector<2x8x8xf32> -> vector<2x8x8xf32>
    "tpu.trace_stop"() : () -> ()
    %cst_22 = arith.constant dense<0xFF800000> : vector<2x8xf32>
    %57 = vector.multi_reduction <maximumf>, %56, %cst_22 [2] : vector<2x8x8xf32> to vector<2x8xf32>
    %58 = vector.shape_cast %57 : vector<2x8xf32> to vector<2x8x1xf32>
    %59 = vector.broadcast %58 : vector<2x8x1xf32> to vector<2x8x8xf32>
    %60 = arith.subf %56, %59 : vector<2x8x8xf32>
    %61 = math.exp %60 : vector<2x8x8xf32>
    %cst_23 = arith.constant dense<0.000000e+00> : vector<2x8xf32>
    %62 = vector.multi_reduction <add>, %61, %cst_23 [2] : vector<2x8x8xf32> to vector<2x8xf32>
    %63 = vector.shape_cast %62 : vector<2x8xf32> to vector<2x8x1xf32>
    %64 = tpu.reciprocal %63 {approx = true} : vector<2x8x1xf32> -> vector<2x8x1xf32>
    %65 = vector.broadcast %64 : vector<2x8x1xf32> to vector<2x8x8xf32>
    %66 = arith.mulf %61, %65 : vector<2x8x8xf32>
    "tpu.trace_start"() <{level = 10 : i32, message = "bqk,bkd->bqd"}> : () -> ()
    %cst_24 = arith.constant dense<0.000000e+00> : vector<2x8x8xf32>
    %67 = tpu.matmul %66, %55, %cst_24 {dimension_numbers = #tpu.dot_dimension_numbers<[2], [1], [1], [2], [0, 0, 0, 1, 1, 2], [0], [0]>} : vector<2x8x8xf32>, vector<2x8x8xf32>, vector<2x8x8xf32> -> vector<2x8x8xf32>
    "tpu.trace_stop"() : () -> ()
    %68 = vector.shape_cast %67 : vector<2x8x8xf32> to vector<16x8xf32>
    %69 = vector.extract_strided_slice %28 {offsets = [8, 0], sizes = [8, 32], strides = [1, 1]} : vector<32x32xf32> to vector<8x32xf32>
    %cst_25 = arith.constant dense<0.000000e+00> : vector<16x32xf32>
    %70 = tpu.matmul %68, %69, %cst_25 {dimension_numbers = #tpu.dot_dimension_numbers<[1], [0], [0], [1], [0, 0, 1, 1], [], []>} : vector<16x8xf32>, vector<8x32xf32>, vector<16x32xf32> -> vector<16x32xf32>
    %71 = arith.addf %49, %70 : vector<16x32xf32>
    %72 = vector.extract_strided_slice %27 {offsets = [0, 16], sizes = [16, 8], strides = [1, 1]} : vector<16x96xf32> to vector<16x8xf32>
    %73 = vector.shape_cast %72 : vector<16x8xf32> to vector<2x8x8xf32>
    %74 = vector.extract_strided_slice %27 {offsets = [0, 48], sizes = [16, 8], strides = [1, 1]} : vector<16x96xf32> to vector<16x8xf32>
    %75 = vector.shape_cast %74 : vector<16x8xf32> to vector<2x8x8xf32>
    %76 = vector.extract_strided_slice %27 {offsets = [0, 80], sizes = [16, 8], strides = [1, 1]} : vector<16x96xf32> to vector<16x8xf32>
    %77 = vector.shape_cast %76 : vector<16x8xf32> to vector<2x8x8xf32>
    "tpu.trace_start"() <{level = 10 : i32, message = "bqd,bkd->bqk"}> : () -> ()
    %cst_26 = arith.constant dense<0.000000e+00> : vector<2x8x8xf32>
    %78 = tpu.matmul %73, %75, %cst_26 {dimension_numbers = #tpu.dot_dimension_numbers<[2], [2], [1], [1], [0, 0, 0, 1, 1, 1], [0], [0]>} : vector<2x8x8xf32>, vector<2x8x8xf32>, vector<2x8x8xf32> -> vector<2x8x8xf32>
    "tpu.trace_stop"() : () -> ()
    %cst_27 = arith.constant dense<0xFF800000> : vector<2x8xf32>
    %79 = vector.multi_reduction <maximumf>, %78, %cst_27 [2] : vector<2x8x8xf32> to vector<2x8xf32>
    %80 = vector.shape_cast %79 : vector<2x8xf32> to vector<2x8x1xf32>
    %81 = vector.broadcast %80 : vector<2x8x1xf32> to vector<2x8x8xf32>
    %82 = arith.subf %78, %81 : vector<2x8x8xf32>
    %83 = math.exp %82 : vector<2x8x8xf32>
    %cst_28 = arith.constant dense<0.000000e+00> : vector<2x8xf32>
    %84 = vector.multi_reduction <add>, %83, %cst_28 [2] : vector<2x8x8xf32> to vector<2x8xf32>
    %85 = vector.shape_cast %84 : vector<2x8xf32> to vector<2x8x1xf32>
    %86 = tpu.reciprocal %85 {approx = true} : vector<2x8x1xf32> -> vector<2x8x1xf32>
    %87 = vector.broadcast %86 : vector<2x8x1xf32> to vector<2x8x8xf32>
    %88 = arith.mulf %83, %87 : vector<2x8x8xf32>
    "tpu.trace_start"() <{level = 10 : i32, message = "bqk,bkd->bqd"}> : () -> ()
    %cst_29 = arith.constant dense<0.000000e+00> : vector<2x8x8xf32>
    %89 = tpu.matmul %88, %77, %cst_29 {dimension_numbers = #tpu.dot_dimension_numbers<[2], [1], [1], [2], [0, 0, 0, 1, 1, 2], [0], [0]>} : vector<2x8x8xf32>, vector<2x8x8xf32>, vector<2x8x8xf32> -> vector<2x8x8xf32>
    "tpu.trace_stop"() : () -> ()
    %90 = vector.shape_cast %89 : vector<2x8x8xf32> to vector<16x8xf32>
    %91 = vector.extract_strided_slice %28 {offsets = [16, 0], sizes = [8, 32], strides = [1, 1]} : vector<32x32xf32> to vector<8x32xf32>
    %cst_30 = arith.constant dense<0.000000e+00> : vector<16x32xf32>
    %92 = tpu.matmul %90, %91, %cst_30 {dimension_numbers = #tpu.dot_dimension_numbers<[1], [0], [0], [1], [0, 0, 1, 1], [], []>} : vector<16x8xf32>, vector<8x32xf32>, vector<16x32xf32> -> vector<16x32xf32>
    %93 = arith.addf %71, %92 : vector<16x32xf32>
    %94 = vector.extract_strided_slice %27 {offsets = [0, 24], sizes = [16, 8], strides = [1, 1]} : vector<16x96xf32> to vector<16x8xf32>
    %95 = vector.shape_cast %94 : vector<16x8xf32> to vector<2x8x8xf32>
    %96 = vector.extract_strided_slice %27 {offsets = [0, 56], sizes = [16, 8], strides = [1, 1]} : vector<16x96xf32> to vector<16x8xf32>
    %97 = vector.shape_cast %96 : vector<16x8xf32> to vector<2x8x8xf32>
    %98 = vector.extract_strided_slice %27 {offsets = [0, 88], sizes = [16, 8], strides = [1, 1]} : vector<16x96xf32> to vector<16x8xf32>
    %99 = vector.shape_cast %98 : vector<16x8xf32> to vector<2x8x8xf32>
    "tpu.trace_start"() <{level = 10 : i32, message = "bqd,bkd->bqk"}> : () -> ()
    %cst_31 = arith.constant dense<0.000000e+00> : vector<2x8x8xf32>
    %100 = tpu.matmul %95, %97, %cst_31 {dimension_numbers = #tpu.dot_dimension_numbers<[2], [2], [1], [1], [0, 0, 0, 1, 1, 1], [0], [0]>} : vector<2x8x8xf32>, vector<2x8x8xf32>, vector<2x8x8xf32> -> vector<2x8x8xf32>
    "tpu.trace_stop"() : () -> ()
    %cst_32 = arith.constant dense<0xFF800000> : vector<2x8xf32>
    %101 = vector.multi_reduction <maximumf>, %100, %cst_32 [2] : vector<2x8x8xf32> to vector<2x8xf32>
    %102 = vector.shape_cast %101 : vector<2x8xf32> to vector<2x8x1xf32>
    %103 = vector.broadcast %102 : vector<2x8x1xf32> to vector<2x8x8xf32>
    %104 = arith.subf %100, %103 : vector<2x8x8xf32>
    %105 = math.exp %104 : vector<2x8x8xf32>
    %cst_33 = arith.constant dense<0.000000e+00> : vector<2x8xf32>
    %106 = vector.multi_reduction <add>, %105, %cst_33 [2] : vector<2x8x8xf32> to vector<2x8xf32>
    %107 = vector.shape_cast %106 : vector<2x8xf32> to vector<2x8x1xf32>
    %108 = tpu.reciprocal %107 {approx = true} : vector<2x8x1xf32> -> vector<2x8x1xf32>
    %109 = vector.broadcast %108 : vector<2x8x1xf32> to vector<2x8x8xf32>
    %110 = arith.mulf %105, %109 : vector<2x8x8xf32>
    "tpu.trace_start"() <{level = 10 : i32, message = "bqk,bkd->bqd"}> : () -> ()
    %cst_34 = arith.constant dense<0.000000e+00> : vector<2x8x8xf32>
    %111 = tpu.matmul %110, %99, %cst_34 {dimension_numbers = #tpu.dot_dimension_numbers<[2], [1], [1], [2], [0, 0, 0, 1, 1, 2], [0], [0]>} : vector<2x8x8xf32>, vector<2x8x8xf32>, vector<2x8x8xf32> -> vector<2x8x8xf32>
    "tpu.trace_stop"() : () -> ()
    %112 = vector.shape_cast %111 : vector<2x8x8xf32> to vector<16x8xf32>
    %113 = vector.extract_strided_slice %28 {offsets = [24, 0], sizes = [8, 32], strides = [1, 1]} : vector<32x32xf32> to vector<8x32xf32>
    %cst_35 = arith.constant dense<0.000000e+00> : vector<16x32xf32>
    %114 = tpu.matmul %112, %113, %cst_35 {dimension_numbers = #tpu.dot_dimension_numbers<[1], [0], [0], [1], [0, 0, 1, 1], [], []>} : vector<16x8xf32>, vector<8x32xf32>, vector<16x32xf32> -> vector<16x32xf32>
    %115 = arith.addf %93, %114 : vector<16x32xf32>
    %c0_36 = arith.constant 0 : index
    %c0_37 = arith.constant 0 : index
    %116 = vector.load %arg7[%c0_36, %c0_37] : memref<1x32xf32, #tpu.memory_space<vmem>>, vector<1x32xf32>
    %117 = vector.broadcast %116 : vector<1x32xf32> to vector<16x32xf32>
    %118 = arith.addf %115, %117 : vector<16x32xf32>
    %119 = arith.addf %0, %118 : vector<16x32xf32>
    %c0_38 = arith.constant 0 : index
    %c0_39 = arith.constant 0 : index
    %120 = vector.load %arg8[%c0_38, %c0_39] : memref<1x32xf32, #tpu.memory_space<vmem>>, vector<1x32xf32>
    %c0_40 = arith.constant 0 : index
    %c0_41 = arith.constant 0 : index
    %121 = vector.load %arg9[%c0_40, %c0_41] : memref<1x32xf32, #tpu.memory_space<vmem>>, vector<1x32xf32>
    %cst_42 = arith.constant dense<0.000000e+00> : vector<16xf32>
    %122 = vector.multi_reduction <add>, %119, %cst_42 [1] : vector<16x32xf32> to vector<16xf32>
    %123 = vector.shape_cast %122 : vector<16xf32> to vector<16x1xf32>
    %cst_43 = arith.constant 3.200000e+01 : f32
    %124 = vector.broadcast %cst_43 : f32 to vector<16x1xf32>
    %125 = arith.divf %123, %124 : vector<16x1xf32>
    %126 = vector.broadcast %125 : vector<16x1xf32> to vector<16x32xf32>
    %127 = arith.subf %119, %126 : vector<16x32xf32>
    %128 = arith.mulf %127, %127 : vector<16x32xf32>
    %cst_44 = arith.constant dense<0.000000e+00> : vector<16xf32>
    %129 = vector.multi_reduction <add>, %128, %cst_44 [1] : vector<16x32xf32> to vector<16xf32>
    %130 = vector.shape_cast %129 : vector<16xf32> to vector<16x1xf32>
    %cst_45 = arith.constant 3.200000e+01 : f32
    %131 = vector.broadcast %cst_45 : f32 to vector<16x1xf32>
    %132 = arith.divf %130, %131 : vector<16x1xf32>
    %cst_46 = arith.constant 9.99999997E-7 : f32
    %133 = vector.broadcast %cst_46 : f32 to vector<16x1xf32>
    %134 = arith.addf %132, %133 : vector<16x1xf32>
    %135 = math.rsqrt %134 : vector<16x1xf32>
    %136 = vector.broadcast %135 : vector<16x1xf32> to vector<16x32xf32>
    %137 = arith.mulf %127, %136 : vector<16x32xf32>
    %138 = vector.broadcast %120 : vector<1x32xf32> to vector<16x32xf32>
    %139 = arith.mulf %137, %138 : vector<16x32xf32>
    %140 = vector.broadcast %121 : vector<1x32xf32> to vector<16x32xf32>
    %141 = arith.addf %139, %140 : vector<16x32xf32>
    %c0_47 = arith.constant 0 : index
    %c0_48 = arith.constant 0 : index
    %142 = vector.load %arg10[%c0_47, %c0_48] : memref<32x64xf32, #tpu.memory_space<vmem>>, vector<32x64xf32>
    %cst_49 = arith.constant dense<0.000000e+00> : vector<16x64xf32>
    %143 = tpu.matmul %141, %142, %cst_49 {dimension_numbers = #tpu.dot_dimension_numbers<[1], [0], [0], [1], [0, 0, 1, 1], [], []>} : vector<16x32xf32>, vector<32x64xf32>, vector<16x64xf32> -> vector<16x64xf32>
    %c0_50 = arith.constant 0 : index
    %c0_51 = arith.constant 0 : index
    %144 = vector.load %arg11[%c0_50, %c0_51] : memref<1x64xf32, #tpu.memory_space<vmem>>, vector<1x64xf32>
    %145 = vector.broadcast %144 : vector<1x64xf32> to vector<16x64xf32>
    %146 = arith.addf %143, %145 : vector<16x64xf32>
    %cst_52 = arith.constant 5.000000e-01 : f32
    %147 = vector.broadcast %cst_52 : f32 to vector<16x64xf32>
    %148 = arith.mulf %147, %146 : vector<16x64xf32>
    %cst_53 = arith.constant 0.707106769 : f32
    %149 = vector.broadcast %cst_53 : f32 to vector<16x64xf32>
    %150 = arith.mulf %146, %149 : vector<16x64xf32>
    %151 = math.erf %150 : vector<16x64xf32>
    %cst_54 = arith.constant 1.000000e+00 : f32
    %152 = vector.broadcast %cst_54 : f32 to vector<16x64xf32>
    %153 = arith.addf %152, %151 : vector<16x64xf32>
    %154 = arith.mulf %148, %153 : vector<16x64xf32>
    %c0_55 = arith.constant 0 : index
    %c0_56 = arith.constant 0 : index
    %155 = vector.load %arg12[%c0_55, %c0_56] : memref<64x32xf32, #tpu.memory_space<vmem>>, vector<64x32xf32>
    %cst_57 = arith.constant dense<0.000000e+00> : vector<16x32xf32>
    %156 = tpu.matmul %154, %155, %cst_57 {dimension_numbers = #tpu.dot_dimension_numbers<[1], [0], [0], [1], [0, 0, 1, 1], [], []>} : vector<16x64xf32>, vector<64x32xf32>, vector<16x32xf32> -> vector<16x32xf32>
    %c0_58 = arith.constant 0 : index
    %c0_59 = arith.constant 0 : index
    %157 = vector.load %arg13[%c0_58, %c0_59] : memref<1x32xf32, #tpu.memory_space<vmem>>, vector<1x32xf32>
    %158 = vector.broadcast %157 : vector<1x32xf32> to vector<16x32xf32>
    %159 = arith.addf %156, %158 : vector<16x32xf32>
    %cst_60 = arith.constant 5.000000e-01 : f32
    %160 = vector.broadcast %cst_60 : f32 to vector<16x32xf32>
    %161 = arith.mulf %160, %159 : vector<16x32xf32>
    %cst_61 = arith.constant 0.707106769 : f32
    %162 = vector.broadcast %cst_61 : f32 to vector<16x32xf32>
    %163 = arith.mulf %159, %162 : vector<16x32xf32>
    %164 = math.erf %163 : vector<16x32xf32>
    %cst_62 = arith.constant 1.000000e+00 : f32
    %165 = vector.broadcast %cst_62 : f32 to vector<16x32xf32>
    %166 = arith.addf %165, %164 : vector<16x32xf32>
    %167 = arith.mulf %161, %166 : vector<16x32xf32>
    %168 = arith.addf %141, %167 : vector<16x32xf32>
    %c0_63 = arith.constant 0 : index
    %c0_64 = arith.constant 0 : index
    %169 = vector.load %arg14[%c0_63, %c0_64] : memref<1x32xf32, #tpu.memory_space<vmem>>, vector<1x32xf32>
    %c0_65 = arith.constant 0 : index
    %c0_66 = arith.constant 0 : index
    %170 = vector.load %arg15[%c0_65, %c0_66] : memref<1x32xf32, #tpu.memory_space<vmem>>, vector<1x32xf32>
    %cst_67 = arith.constant dense<0.000000e+00> : vector<16xf32>
    %171 = vector.multi_reduction <add>, %168, %cst_67 [1] : vector<16x32xf32> to vector<16xf32>
    %172 = vector.shape_cast %171 : vector<16xf32> to vector<16x1xf32>
    %cst_68 = arith.constant 3.200000e+01 : f32
    %173 = vector.broadcast %cst_68 : f32 to vector<16x1xf32>
    %174 = arith.divf %172, %173 : vector<16x1xf32>
    %175 = vector.broadcast %174 : vector<16x1xf32> to vector<16x32xf32>
    %176 = arith.subf %168, %175 : vector<16x32xf32>
    %177 = arith.mulf %176, %176 : vector<16x32xf32>
    %cst_69 = arith.constant dense<0.000000e+00> : vector<16xf32>
    %178 = vector.multi_reduction <add>, %177, %cst_69 [1] : vector<16x32xf32> to vector<16xf32>
    %179 = vector.shape_cast %178 : vector<16xf32> to vector<16x1xf32>
    %cst_70 = arith.constant 3.200000e+01 : f32
    %180 = vector.broadcast %cst_70 : f32 to vector<16x1xf32>
    %181 = arith.divf %179, %180 : vector<16x1xf32>
    %cst_71 = arith.constant 9.99999997E-7 : f32
    %182 = vector.broadcast %cst_71 : f32 to vector<16x1xf32>
    %183 = arith.addf %181, %182 : vector<16x1xf32>
    %184 = math.rsqrt %183 : vector<16x1xf32>
    %185 = vector.broadcast %184 : vector<16x1xf32> to vector<16x32xf32>
    %186 = arith.mulf %176, %185 : vector<16x32xf32>
    %187 = vector.broadcast %169 : vector<1x32xf32> to vector<16x32xf32>
    %188 = arith.mulf %186, %187 : vector<16x32xf32>
    %189 = vector.broadcast %170 : vector<1x32xf32> to vector<16x32xf32>
    %190 = arith.addf %188, %189 : vector<16x32xf32>
    %c0_72 = arith.constant 0 : index
    %c0_73 = arith.constant 0 : index
    %191 = vector.load %arg16[%c0_72, %c0_73] : memref<16x32xf32, #tpu.memory_space<vmem>>, vector<16x32xf32>
    tpu.vector_store %arg16[%c0_72, %c0_73], %190 {strides = array<i32>} : memref<16x32xf32, #tpu.memory_space<vmem>>, vector<16x32xf32>,
    return
  }
  func.func @transform_0(%arg0: i32) -> (i32, i32) {
    %c0_i32 = arith.constant 0 : i32
    %c0_i32_0 = arith.constant 0 : i32
    return %arg0, %c0_i32 : i32, i32
  }
  func.func @transform_1(%arg0: i32) -> (i32, i32) {
    %c0_i32 = arith.constant 0 : i32
    %c0_i32_0 = arith.constant 0 : i32
    %c0_i32_1 = arith.constant 0 : i32
    return %c0_i32, %c0_i32_0 : i32, i32
  }
  func.func @transform_2(%arg0: i32) -> (i32, i32) {
    %c0_i32 = arith.constant 0 : i32
    %c0_i32_0 = arith.constant 0 : i32
    %c0_i32_1 = arith.constant 0 : i32
    return %c0_i32, %c0_i32_0 : i32, i32
  }
  func.func @transform_3(%arg0: i32) -> (i32, i32) {
    %c0_i32 = arith.constant 0 : i32
    %c0_i32_0 = arith.constant 0 : i32
    %c0_i32_1 = arith.constant 0 : i32
    return %c0_i32, %c0_i32_0 : i32, i32
  }
  func.func @transform_4(%arg0: i32) -> (i32, i32) {
    %c0_i32 = arith.constant 0 : i32
    %c0_i32_0 = arith.constant 0 : i32
    %c0_i32_1 = arith.constant 0 : i32
    return %c0_i32, %c0_i32_0 : i32, i32
  }
  func.func @transform_5(%arg0: i32) -> (i32, i32) {
    %c0_i32 = arith.constant 0 : i32
    %c0_i32_0 = arith.constant 0 : i32
    %c0_i32_1 = arith.constant 0 : i32
    return %c0_i32, %c0_i32_0 : i32, i32
  }
  func.func @transform_6(%arg0: i32) -> (i32, i32) {
    %c0_i32 = arith.constant 0 : i32
    %c0_i32_0 = arith.constant 0 : i32
    %c0_i32_1 = arith.constant 0 : i32
    return %c0_i32, %c0_i32_0 : i32, i32
  }
  func.func @transform_7(%arg0: i32) -> (i32, i32) {
    %c0_i32 = arith.constant 0 : i32
    %c0_i32_0 = arith.constant 0 : i32
    %c0_i32_1 = arith.constant 0 : i32
    return %c0_i32, %c0_i32_0 : i32, i32
  }
  func.func @transform_8(%arg0: i32) -> (i32, i32) {
    %c0_i32 = arith.constant 0 : i32
    %c0_i32_0 = arith.constant 0 : i32
    %c0_i32_1 = arith.constant 0 : i32
    return %c0_i32, %c0_i32_0 : i32, i32
  }
  func.func @transform_9(%arg0: i32) -> (i32, i32) {
    %c0_i32 = arith.constant 0 : i32
    %c0_i32_0 = arith.constant 0 : i32
    %c0_i32_1 = arith.constant 0 : i32
    return %c0_i32, %c0_i32_0 : i32, i32
  }
  func.func @transform_10(%arg0: i32) -> (i32, i32) {
    %c0_i32 = arith.constant 0 : i32
    %c0_i32_0 = arith.constant 0 : i32
    %c0_i32_1 = arith.constant 0 : i32
    return %c0_i32, %c0_i32_0 : i32, i32
  }
  func.func @transform_11(%arg0: i32) -> (i32, i32) {
    %c0_i32 = arith.constant 0 : i32
    %c0_i32_0 = arith.constant 0 : i32
    %c0_i32_1 = arith.constant 0 : i32
    return %c0_i32, %c0_i32_0 : i32, i32
  }
  func.func @transform_12(%arg0: i32) -> (i32, i32) {
    %c0_i32 = arith.constant 0 : i32
    %c0_i32_0 = arith.constant 0 : i32
    %c0_i32_1 = arith.constant 0 : i32
    return %c0_i32, %c0_i32_0 : i32, i32
  }
  func.func @transform_13(%arg0: i32) -> (i32, i32) {
    %c0_i32 = arith.constant 0 : i32
    %c0_i32_0 = arith.constant 0 : i32
    %c0_i32_1 = arith.constant 0 : i32
    return %c0_i32, %c0_i32_0 : i32, i32
  }
  func.func @transform_14(%arg0: i32) -> (i32, i32) {
    %c0_i32 = arith.constant 0 : i32
    %c0_i32_0 = arith.constant 0 : i32
    %c0_i32_1 = arith.constant 0 : i32
    return %c0_i32, %c0_i32_0 : i32, i32
  }
  func.func @transform_15(%arg0: i32) -> (i32, i32) {
    %c0_i32 = arith.constant 0 : i32
    %c0_i32_0 = arith.constant 0 : i32
    return %arg0, %c0_i32 : i32, i32
  }
}

module attributes {stable_mosaic.version = 11 : i64} {
  func.func @transformer_block_kernel(%arg0: i32, %arg1: memref<16x32xf32, #tpu.memory_space<vmem>>, %arg2: memref<1x32xf32, #tpu.memory_space<vmem>>, %arg3: memref<1x32xf32, #tpu.memory_space<vmem>>, %arg4: memref<32x96xf32, #tpu.memory_space<vmem>>, %arg5: memref<1x96xf32, #tpu.memory_space<vmem>>, %arg6: memref<32x32xf32, #tpu.memory_space<vmem>>, %arg7: memref<1x32xf32, #tpu.memory_space<vmem>>, %arg8: memref<1x32xf32, #tpu.memory_space<vmem>>, %arg9: memref<1x32xf32, #tpu.memory_space<vmem>>, %arg10: memref<32x64xf32, #tpu.memory_space<vmem>>, %arg11: memref<1x64xf32, #tpu.memory_space<vmem>>, %arg12: memref<64x32xf32, #tpu.memory_space<vmem>>, %arg13: memref<1x32xf32, #tpu.memory_space<vmem>>, %arg14: memref<1x32xf32, #tpu.memory_space<vmem>>, %arg15: memref<1x32xf32, #tpu.memory_space<vmem>>, %arg16: memref<16x32xf32, #tpu.memory_space<vmem>>) attributes {dimension_semantics = [#tpu.dimension_semantics<parallel>], iteration_bounds = array<i64: 1>, scalar_prefetch = 0 : i64, scratch_operands = 0 : i64, tpu.core_type = #tpu.core_type<tc>, window_params = [{transform_indices = @transform_0, window_bounds = array<i64: 16, 32>}, {pipeline_mode = #tpu.pipeline_mode<synchronous>, transform_indices = @transform_1, window_bounds = array<i64: 1, 32>}, {pipeline_mode = #tpu.pipeline_mode<synchronous>, transform_indices = @transform_2, window_bounds = array<i64: 1, 32>}, {pipeline_mode = #tpu.pipeline_mode<synchronous>, transform_indices = @transform_3, window_bounds = array<i64: 32, 96>}, {pipeline_mode = #tpu.pipeline_mode<synchronous>, transform_indices = @transform_4, window_bounds = array<i64: 1, 96>}, {pipeline_mode = #tpu.pipeline_mode<synchronous>, transform_indices = @transform_5, window_bounds = array<i64: 32, 32>}, {pipeline_mode = #tpu.pipeline_mode<synchronous>, transform_indices = @transform_6, window_bounds = array<i64: 1, 32>}, {pipeline_mode = #tpu.pipeline_mode<synchronous>, transform_indices = @transform_7, window_bounds = array<i64: 1, 32>}, {pipeline_mode = #tpu.pipeline_mode<synchronous>, transform_indices = @transform_8, window_bounds = array<i64: 1, 32>}, {pipeline_mode = #tpu.pipeline_mode<synchronous>, transform_indices = @transform_9, window_bounds = array<i64: 32, 64>}, {pipeline_mode = #tpu.pipeline_mode<synchronous>, transform_indices = @transform_10, window_bounds = array<i64: 1, 64>}, {pipeline_mode = #tpu.pipeline_mode<synchronous>, transform_indices = @transform_11, window_bounds = array<i64: 64, 32>}, {pipeline_mode = #tpu.pipeline_mode<synchronous>, transform_indices = @transform_12, window_bounds = array<i64: 1, 32>}, {pipeline_mode = #tpu.pipeline_mode<synchronous>, transform_indices = @transform_13, window_bounds = array<i64: 1, 32>}, {pipeline_mode = #tpu.pipeline_mode<synchronous>, transform_indices = @transform_14, window_bounds = array<i64: 1, 32>}, {transform_indices = @transform_15, window_bounds = array<i64: 16, 32>}]} {
    %c0 = arith.constant 0 : index
    %c0_0 = arith.constant 0 : index
    %0 = vector.load %arg1[%c0, %c0_0] : memref<16x32xf32, #tpu.memory_space<vmem>>, vector<16x32xf32>
    %c0_1 = arith.constant 0 : index
    %c0_2 = arith.constant 0 : index
    %1 = vector.load %arg2[%c0_1, %c0_2] : memref<1x32xf32, #tpu.memory_space<vmem>>, vector<1x32xf32>
    %c0_3 = arith.constant 0 : index
    %c0_4 = arith.constant 0 : index
    %2 = vector.load %arg3[%c0_3, %c0_4] : memref<1x32xf32, #tpu.memory_space<vmem>>, vector<1x32xf32>
    %cst = arith.constant dense<0.000000e+00> : vector<16xf32>
    %3 = vector.multi_reduction <add>, %0, %cst [1] : vector<16x32xf32> to vector<16xf32>
    %4 = vector.shape_cast %3 : vector<16xf32> to vector<16x1xf32>
    %cst_5 = arith.constant 3.200000e+01 : f32
    %5 = vector.broadcast %cst_5 : f32 to vector<16x1xf32>
    %6 = arith.divf %4, %5 : vector<16x1xf32>
    %7 = vector.broadcast %6 : vector<16x1xf32> to vector<16x32xf32>
    %8 = arith.subf %0, %7 : vector<16x32xf32>
    %9 = arith.mulf %8, %8 : vector<16x32xf32>
    %cst_6 = arith.constant dense<0.000000e+00> : vector<16xf32>
    %10 = vector.multi_reduction <add>, %9, %cst_6 [1] : vector<16x32xf32> to vector<16xf32>
    %11 = vector.shape_cast %10 : vector<16xf32> to vector<16x1xf32>
    %cst_7 = arith.constant 3.200000e+01 : f32
    %12 = vector.broadcast %cst_7 : f32 to vector<16x1xf32>
    %13 = arith.divf %11, %12 : vector<16x1xf32>
    %cst_8 = arith.constant 9.99999997E-7 : f32
    %14 = vector.broadcast %cst_8 : f32 to vector<16x1xf32>
    %15 = arith.addf %13, %14 : vector<16x1xf32>
    %16 = math.rsqrt %15 : vector<16x1xf32>
    %17 = vector.broadcast %16 : vector<16x1xf32> to vector<16x32xf32>
    %18 = arith.mulf %8, %17 : vector<16x32xf32>
    %19 = vector.broadcast %1 : vector<1x32xf32> to vector<16x32xf32>
    %20 = arith.mulf %18, %19 : vector<16x32xf32>
    %21 = vector.broadcast %2 : vector<1x32xf32> to vector<16x32xf32>
    %22 = arith.addf %20, %21 : vector<16x32xf32>
    %c0_9 = arith.constant 0 : index
    %c0_10 = arith.constant 0 : index
    %23 = vector.load %arg4[%c0_9, %c0_10] : memref<32x96xf32, #tpu.memory_space<vmem>>, vector<32x96xf32>
    %cst_11 = arith.constant dense<0.000000e+00> : vector<16x96xf32>
    %24 = tpu.matmul %22, %23, %cst_11 {dimension_numbers = #tpu.dot_dimension_numbers<[1], [0], [0], [1], [0, 0, 1, 1], [], []>} : vector<16x32xf32>, vector<32x96xf32>, vector<16x96xf32> -> vector<16x96xf32>
    %c0_12 = arith.constant 0 : index
    %c0_13 = arith.constant 0 : index
    %25 = vector.load %arg5[%c0_12, %c0_13] : memref<1x96xf32, #tpu.memory_space<vmem>>, vector<1x96xf32>
    %26 = vector.broadcast %25 : vector<1x96xf32> to vector<16x96xf32>
    %27 = arith.addf %24, %26 : vector<16x96xf32>
    %c0_14 = arith.constant 0 : index
    %c0_15 = arith.constant 0 : index
    %28 = vector.load %arg6[%c0_14, %c0_15] : memref<32x32xf32, #tpu.memory_space<vmem>>, vector<32x32xf32>
    %29 = vector.extract_strided_slice %27 {offsets = [0, 0], sizes = [16, 8], strides = [1, 1]} : vector<16x96xf32> to vector<16x8xf32>
    %30 = vector.shape_cast %29 : vector<16x8xf32> to vector<2x8x8xf32>
    %31 = vector.extract_strided_slice %27 {offsets = [0, 32], sizes = [16, 8], strides = [1, 1]} : vector<16x96xf32> to vector<16x8xf32>
    %32 = vector.shape_cast %31 : vector<16x8xf32> to vector<2x8x8xf32>
    %33 = vector.extract_strided_slice %27 {offsets = [0, 64], sizes = [16, 8], strides = [1, 1]} : vector<16x96xf32> to vector<16x8xf32>
    %34 = vector.shape_cast %33 : vector<16x8xf32> to vector<2x8x8xf32>
    "tpu.trace_start"() <{level = 10 : i32, message = "bqd,bkd->bqk"}> : () -> ()
    %cst_16 = arith.constant dense<0.000000e+00> : vector<2x8x8xf32>
    %35 = tpu.matmul %30, %32, %cst_16 {dimension_numbers = #tpu.dot_dimension_numbers<[2], [2], [1], [1], [0, 0, 0, 1, 1, 1], [0], [0]>} : vector<2x8x8xf32>, vector<2x8x8xf32>, vector<2x8x8xf32> -> vector<2x8x8xf32>
    "tpu.trace_stop"() : () -> ()
    %cst_17 = arith.constant dense<0xFF800000> : vector<2x8xf32>
    %36 = vector.multi_reduction <maximumf>, %35, %cst_17 [2] : vector<2x8x8xf32> to vector<2x8xf32>
    %37 = vector.shape_cast %36 : vector<2x8xf32> to vector<2x8x1xf32>
    %38 = vector.broadcast %37 : vector<2x8x1xf32> to vector<2x8x8xf32>
    %39 = arith.subf %35, %38 : vector<2x8x8xf32>
    %40 = math.exp %39 : vector<2x8x8xf32>
    %cst_18 = arith.constant dense<0.000000e+00> : vector<2x8xf32>
    %41 = vector.multi_reduction <add>, %40, %cst_18 [2] : vector<2x8x8xf32> to vector<2x8xf32>
    %42 = vector.shape_cast %41 : vector<2x8xf32> to vector<2x8x1xf32>
    %43 = tpu.reciprocal %42 {approx = true} : vector<2x8x1xf32> -> vector<2x8x1xf32>
    %44 = vector.broadcast %43 : vector<2x8x1xf32> to vector<2x8x8xf32>
    %45 = arith.mulf %40, %44 : vector<2x8x8xf32>
    "tpu.trace_start"() <{level = 10 : i32, message = "bqk,bkd->bqd"}> : () -> ()
    %cst_19 = arith.constant dense<0.000000e+00> : vector<2x8x8xf32>
    %46 = tpu.matmul %45, %34, %cst_19 {dimension_numbers = #tpu.dot_dimension_numbers<[2], [1], [1], [2], [0, 0, 0, 1, 1, 2], [0], [0]>} : vector<2x8x8xf32>, vector<2x8x8xf32>, vector<2x8x8xf32> -> vector<2x8x8xf32>
    "tpu.trace_stop"() : () -> ()
    %47 = vector.shape_cast %46 : vector<2x8x8xf32> to vector<16x8xf32>
    %48 = vector.extract_strided_slice %28 {offsets = [0, 0], sizes = [8, 32], strides = [1, 1]} : vector<32x32xf32> to vector<8x32xf32>
    %cst_20 = arith.constant dense<0.000000e+00> : vector<16x32xf32>
    %49 = tpu.matmul %47, %48, %cst_20 {dimension_numbers = #tpu.dot_dimension_numbers<[1], [0], [0], [1], [0, 0, 1, 1], [], []>} : vector<16x8xf32>, vector<8x32xf32>, vector<16x32xf32> -> vector<16x32xf32>
    %50 = vector.extract_strided_slice %27 {offsets = [0, 8], sizes = [16, 8], strides = [1, 1]} : vector<16x96xf32> to vector<16x8xf32>
    %51 = vector.shape_cast %50 : vector<16x8xf32> to vector<2x8x8xf32>
    %52 = vector.extract_strided_slice %27 {offsets = [0, 40], sizes = [16, 8], strides = [1, 1]} : vector<16x96xf32> to vector<16x8xf32>
    %53 = vector.shape_cast %52 : vector<16x8xf32> to vector<2x8x8xf32>
    %54 = vector.extract_strided_slice %27 {offsets = [0, 72], sizes = [16, 8], strides = [1, 1]} : vector<16x96xf32> to vector<16x8xf32>
    %55 = vector.shape_cast %54 : vector<16x8xf32> to vector<2x8x8xf32>
    "tpu.trace_start"() <{level = 10 : i32, message = "bqd,bkd->bqk"}> : () -> ()
    %cst_21 = arith.constant dense<0.000000e+00> : vector<2x8x8xf32>
    %56 = tpu.matmul %51, %53, %cst_21 {dimension_numbers = #tpu.dot_dimension_numbers<[2], [2], [1], [1], [0, 0, 0, 1, 1, 1], [0], [0]>} : vector<2x8x8xf32>, vector<2x8x8xf32>, vector<2x8x8xf32> -> vector<2x8x8xf32>
    "tpu.trace_stop"() : () -> ()
    %cst_22 = arith.constant dense<0xFF800000> : vector<2x8xf32>
    %57 = vector.multi_reduction <maximumf>, %56, %cst_22 [2] : vector<2x8x8xf32> to vector<2x8xf32>
    %58 = vector.shape_cast %57 : vector<2x8xf32> to vector<2x8x1xf32>
    %59 = vector.broadcast %58 : vector<2x8x1xf32> to vector<2x8x8xf32>
    %60 = arith.subf %56, %59 : vector<2x8x8xf32>
    %61 = math.exp %60 : vector<2x8x8xf32>
    %cst_23 = arith.constant dense<0.000000e+00> : vector<2x8xf32>
    %62 = vector.multi_reduction <add>, %61, %cst_23 [2] : vector<2x8x8xf32> to vector<2x8xf32>
    %63 = vector.shape_cast %62 : vector<2x8xf32> to vector<2x8x1xf32>
    %64 = tpu.reciprocal %63 {approx = true} : vector<2x8x1xf32> -> vector<2x8x1xf32>
    %65 = vector.broadcast %64 : vector<2x8x1xf32> to vector<2x8x8xf32>
    %66 = arith.mulf %61, %65 : vector<2x8x8xf32>
    "tpu.trace_start"() <{level = 10 : i32, message = "bqk,bkd->bqd"}> : () -> ()
    %cst_24 = arith.constant dense<0.000000e+00> : vector<2x8x8xf32>
    %67 = tpu.matmul %66, %55, %cst_24 {dimension_numbers = #tpu.dot_dimension_numbers<[2], [1], [1], [2], [0, 0, 0, 1, 1, 2], [0], [0]>} : vector<2x8x8xf32>, vector<2x8x8xf32>, vector<2x8x8xf32> -> vector<2x8x8xf32>
    "tpu.trace_stop"() : () -> ()
    %68 = vector.shape_cast %67 : vector<2x8x8xf32> to vector<16x8xf32>
    %69 = vector.extract_strided_slice %28 {offsets = [8, 0], sizes = [8, 32], strides = [1, 1]} : vector<32x32xf32> to vector<8x32xf32>
    %cst_25 = arith.constant dense<0.000000e+00> : vector<16x32xf32>
    %70 = tpu.matmul %68, %69, %cst_25 {dimension_numbers = #tpu.dot_dimension_numbers<[1], [0], [0], [1], [0, 0, 1, 1], [], []>} : vector<16x8xf32>, vector<8x32xf32>, vector<16x32xf32> -> vector<16x32xf32>
    %71 = arith.addf %49, %70 : vector<16x32xf32>
    %72 = vector.extract_strided_slice %27 {offsets = [0, 16], sizes = [16, 8], strides = [1, 1]} : vector<16x96xf32> to vector<16x8xf32>
    %73 = vector.shape_cast %72 : vector<16x8xf32> to vector<2x8x8xf32>
    %74 = vector.extract_strided_slice %27 {offsets = [0, 48], sizes = [16, 8], strides = [1, 1]} : vector<16x96xf32> to vector<16x8xf32>
    %75 = vector.shape_cast %74 : vector<16x8xf32> to vector<2x8x8xf32>
    %76 = vector.extract_strided_slice %27 {offsets = [0, 80], sizes = [16, 8], strides = [1, 1]} : vector<16x96xf32> to vector<16x8xf32>
    %77 = vector.shape_cast %76 : vector<16x8xf32> to vector<2x8x8xf32>
    "tpu.trace_start"() <{level = 10 : i32, message = "bqd,bkd->bqk"}> : () -> ()
    %cst_26 = arith.constant dense<0.000000e+00> : vector<2x8x8xf32>
    %78 = tpu.matmul %73, %75, %cst_26 {dimension_numbers = #tpu.dot_dimension_numbers<[2], [2], [1], [1], [0, 0, 0, 1, 1, 1], [0], [0]>} : vector<2x8x8xf32>, vector<2x8x8xf32>, vector<2x8x8xf32> -> vector<2x8x8xf32>
    "tpu.trace_stop"() : () -> ()
    %cst_27 = arith.constant dense<0xFF800000> : vector<2x8xf32>
    %79 = vector.multi_reduction <maximumf>, %78, %cst_27 [2] : vector<2x8x8xf32> to vector<2x8xf32>
    %80 = vector.shape_cast %79 : vector<2x8xf32> to vector<2x8x1xf32>
    %81 = vector.broadcast %80 : vector<2x8x1xf32> to vector<2x8x8xf32>
    %82 = arith.subf %78, %81 : vector<2x8x8xf32>
    %83 = math.exp %82 : vector<2x8x8xf32>
    %cst_28 = arith.constant dense<0.000000e+00> : vector<2x8xf32>
    %84 = vector.multi_reduction <add>, %83, %cst_28 [2] : vector<2x8x8xf32> to vector<2x8xf32>
    %85 = vector.shape_cast %84 : vector<2x8xf32> to vector<2x8x1xf32>
    %86 = tpu.reciprocal %85 {approx = true} : vector<2x8x1xf32> -> vector<2x8x1xf32>
    %87 = vector.broadcast %86 : vector<2x8x1xf32> to vector<2x8x8xf32>
    %88 = arith.mulf %83, %87 : vector<2x8x8xf32>
    "tpu.trace_start"() <{level = 10 : i32, message = "bqk,bkd->bqd"}> : () -> ()
    %cst_29 = arith.constant dense<0.000000e+00> : vector<2x8x8xf32>
    %89 = tpu.matmul %88, %77, %cst_29 {dimension_numbers = #tpu.dot_dimension_numbers<[2], [1], [1], [2], [0, 0, 0, 1, 1, 2], [0], [0]>} : vector<2x8x8xf32>, vector<2x8x8xf32>, vector<2x8x8xf32> -> vector<2x8x8xf32>
    "tpu.trace_stop"() : () -> ()
    %90 = vector.shape_cast %89 : vector<2x8x8xf32> to vector<16x8xf32>
    %91 = vector.extract_strided_slice %28 {offsets = [16, 0], sizes = [8, 32], strides = [1, 1]} : vector<32x32xf32> to vector<8x32xf32>
    %cst_30 = arith.constant dense<0.000000e+00> : vector<16x32xf32>
    %92 = tpu.matmul %90, %91, %cst_30 {dimension_numbers = #tpu.dot_dimension_numbers<[1], [0], [0], [1], [0, 0, 1, 1], [], []>} : vector<16x8xf32>, vector<8x32xf32>, vector<16x32xf32> -> vector<16x32xf32>
    %93 = arith.addf %71, %92 : vector<16x32xf32>
    %94 = vector.extract_strided_slice %27 {offsets = [0, 24], sizes = [16, 8], strides = [1, 1]} : vector<16x96xf32> to vector<16x8xf32>
    %95 = vector.shape_cast %94 : vector<16x8xf32> to vector<2x8x8xf32>
    %96 = vector.extract_strided_slice %27 {offsets = [0, 56], sizes = [16, 8], strides = [1, 1]} : vector<16x96xf32> to vector<16x8xf32>
    %97 = vector.shape_cast %96 : vector<16x8xf32> to vector<2x8x8xf32>
    %98 = vector.extract_strided_slice %27 {offsets = [0, 88], sizes = [16, 8], strides = [1, 1]} : vector<16x96xf32> to vector<16x8xf32>
    %99 = vector.shape_cast %98 : vector<16x8xf32> to vector<2x8x8xf32>
    "tpu.trace_start"() <{level = 10 : i32, message = "bqd,bkd->bqk"}> : () -> ()
    %cst_31 = arith.constant dense<0.000000e+00> : vector<2x8x8xf32>
    %100 = tpu.matmul %95, %97, %cst_31 {dimension_numbers = #tpu.dot_dimension_numbers<[2], [2], [1], [1], [0, 0, 0, 1, 1, 1], [0], [0]>} : vector<2x8x8xf32>, vector<2x8x8xf32>, vector<2x8x8xf32> -> vector<2x8x8xf32>
    "tpu.trace_stop"() : () -> ()
    %cst_32 = arith.constant dense<0xFF800000> : vector<2x8xf32>
    %101 = vector.multi_reduction <maximumf>, %100, %cst_32 [2] : vector<2x8x8xf32> to vector<2x8xf32>
    %102 = vector.shape_cast %101 : vector<2x8xf32> to vector<2x8x1xf32>
    %103 = vector.broadcast %102 : vector<2x8x1xf32> to vector<2x8x8xf32>
    %104 = arith.subf %100, %103 : vector<2x8x8xf32>
    %105 = math.exp %104 : vector<2x8x8xf32>
    %cst_33 = arith.constant dense<0.000000e+00> : vector<2x8xf32>
    %106 = vector.multi_reduction <add>, %105, %cst_33 [2] : vector<2x8x8xf32> to vector<2x8xf32>
    %107 = vector.shape_cast %106 : vector<2x8xf32> to vector<2x8x1xf32>
    %108 = tpu.reciprocal %107 {approx = true} : vector<2x8x1xf32> -> vector<2x8x1xf32>
    %109 = vector.broadcast %108 : vector<2x8x1xf32> to vector<2x8x8xf32>
    %110 = arith.mulf %105, %109 : vector<2x8x8xf32>
    "tpu.trace_start"() <{level = 10 : i32, message = "bqk,bkd->bqd"}> : () -> ()
    %cst_34 = arith.constant dense<0.000000e+00> : vector<2x8x8xf32>
    %111 = tpu.matmul %110, %99, %cst_34 {dimension_numbers = #tpu.dot_dimension_numbers<[2], [1], [1], [2], [0, 0, 0, 1, 1, 2], [0], [0]>} : vector<2x8x8xf32>, vector<2x8x8xf32>, vector<2x8x8xf32> -> vector<2x8x8xf32>
    "tpu.trace_stop"() : () -> ()
    %112 = vector.shape_cast %111 : vector<2x8x8xf32> to vector<16x8xf32>
    %113 = vector.extract_strided_slice %28 {offsets = [24, 0], sizes = [8, 32], strides = [1, 1]} : vector<32x32xf32> to vector<8x32xf32>
    %cst_35 = arith.constant dense<0.000000e+00> : vector<16x32xf32>
    %114 = tpu.matmul %112, %113, %cst_35 {dimension_numbers = #tpu.dot_dimension_numbers<[1], [0], [0], [1], [0, 0, 1, 1], [], []>} : vector<16x8xf32>, vector<8x32xf32>, vector<16x32xf32> -> vector<16x32xf32>
    %115 = arith.addf %93, %114 : vector<16x32xf32>
    %c0_36 = arith.constant 0 : index
    %c0_37 = arith.constant 0 : index
    %116 = vector.load %arg7[%c0_36, %c0_37] : memref<1x32xf32, #tpu.memory_space<vmem>>, vector<1x32xf32>
    %117 = vector.broadcast %116 : vector<1x32xf32> to vector<16x32xf32>
    %118 = arith.addf %115, %117 : vector<16x32xf32>
    %119 = arith.addf %0, %118 : vector<16x32xf32>
    %c0_38 = arith.constant 0 : index
    %c0_39 = arith.constant 0 : index
    %120 = vector.load %arg8[%c0_38, %c0_39] : memref<1x32xf32, #tpu.memory_space<vmem>>, vector<1x32xf32>
    %c0_40 = arith.constant 0 : index
    %c0_41 = arith.constant 0 : index
    %121 = vector.load %arg9[%c0_40, %c0_41] : memref<1x32xf32, #tpu.memory_space<vmem>>, vector<1x32xf32>
    %cst_42 = arith.constant dense<0.000000e+00> : vector<16xf32>
    %122 = vector.multi_reduction <add>, %119, %cst_42 [1] : vector<16x32xf32> to vector<16xf32>
    %123 = vector.shape_cast %122 : vector<16xf32> to vector<16x1xf32>
    %cst_43 = arith.constant 3.200000e+01 : f32
    %124 = vector.broadcast %cst_43 : f32 to vector<16x1xf32>
    %125 = arith.divf %123, %124 : vector<16x1xf32>
    %126 = vector.broadcast %125 : vector<16x1xf32> to vector<16x32xf32>
    %127 = arith.subf %119, %126 : vector<16x32xf32>
    %128 = arith.mulf %127, %127 : vector<16x32xf32>
    %cst_44 = arith.constant dense<0.000000e+00> : vector<16xf32>
    %129 = vector.multi_reduction <add>, %128, %cst_44 [1] : vector<16x32xf32> to vector<16xf32>
    %130 = vector.shape_cast %129 : vector<16xf32> to vector<16x1xf32>
    %cst_45 = arith.constant 3.200000e+01 : f32
    %131 = vector.broadcast %cst_45 : f32 to vector<16x1xf32>
    %132 = arith.divf %130, %131 : vector<16x1xf32>
    %cst_46 = arith.constant 9.99999997E-7 : f32
    %133 = vector.broadcast %cst_46 : f32 to vector<16x1xf32>
    %134 = arith.addf %132, %133 : vector<16x1xf32>
    %135 = math.rsqrt %134 : vector<16x1xf32>
    %136 = vector.broadcast %135 : vector<16x1xf32> to vector<16x32xf32>
    %137 = arith.mulf %127, %136 : vector<16x32xf32>
    %138 = vector.broadcast %120 : vector<1x32xf32> to vector<16x32xf32>
    %139 = arith.mulf %137, %138 : vector<16x32xf32>
    %140 = vector.broadcast %121 : vector<1x32xf32> to vector<16x32xf32>
    %141 = arith.addf %139, %140 : vector<16x32xf32>
    %c0_47 = arith.constant 0 : index
    %c0_48 = arith.constant 0 : index
    %142 = vector.load %arg10[%c0_47, %c0_48] : memref<32x64xf32, #tpu.memory_space<vmem>>, vector<32x64xf32>
    %cst_49 = arith.constant dense<0.000000e+00> : vector<16x64xf32>
    %143 = tpu.matmul %141, %142, %cst_49 {dimension_numbers = #tpu.dot_dimension_numbers<[1], [0], [0], [1], [0, 0, 1, 1], [], []>} : vector<16x32xf32>, vector<32x64xf32>, vector<16x64xf32> -> vector<16x64xf32>
    %c0_50 = arith.constant 0 : index
    %c0_51 = arith.constant 0 : index
    %144 = vector.load %arg11[%c0_50, %c0_51] : memref<1x64xf32, #tpu.memory_space<vmem>>, vector<1x64xf32>
    %145 = vector.broadcast %144 : vector<1x64xf32> to vector<16x64xf32>
    %146 = arith.addf %143, %145 : vector<16x64xf32>
    %cst_52 = arith.constant 5.000000e-01 : f32
    %147 = vector.broadcast %cst_52 : f32 to vector<16x64xf32>
    %148 = arith.mulf %147, %146 : vector<16x64xf32>
    %cst_53 = arith.constant 0.707106769 : f32
    %149 = vector.broadcast %cst_53 : f32 to vector<16x64xf32>
    %150 = arith.mulf %146, %149 : vector<16x64xf32>
    %151 = math.erf %150 : vector<16x64xf32>
    %cst_54 = arith.constant 1.000000e+00 : f32
    %152 = vector.broadcast %cst_54 : f32 to vector<16x64xf32>
    %153 = arith.addf %152, %151 : vector<16x64xf32>
    %154 = arith.mulf %148, %153 : vector<16x64xf32>
    %c0_55 = arith.constant 0 : index
    %c0_56 = arith.constant 0 : index
    %155 = vector.load %arg12[%c0_55, %c0_56] : memref<64x32xf32, #tpu.memory_space<vmem>>, vector<64x32xf32>
    %cst_57 = arith.constant dense<0.000000e+00> : vector<16x32xf32>
    %156 = tpu.matmul %154, %155, %cst_57 {dimension_numbers = #tpu.dot_dimension_numbers<[1], [0], [0], [1], [0, 0, 1, 1], [], []>} : vector<16x64xf32>, vector<64x32xf32>, vector<16x32xf32> -> vector<16x32xf32>
    %c0_58 = arith.constant 0 : index
    %c0_59 = arith.constant 0 : index
    %157 = vector.load %arg13[%c0_58, %c0_59] : memref<1x32xf32, #tpu.memory_space<vmem>>, vector<1x32xf32>
    %158 = vector.broadcast %157 : vector<1x32xf32> to vector<16x32xf32>
    %159 = arith.addf %156, %158 : vector<16x32xf32>
    %cst_60 = arith.constant 5.000000e-01 : f32
    %160 = vector.broadcast %cst_60 : f32 to vector<16x32xf32>
    %161 = arith.mulf %160, %159 : vector<16x32xf32>
    %cst_61 = arith.constant 0.707106769 : f32
    %162 = vector.broadcast %cst_61 : f32 to vector<16x32xf32>
    %163 = arith.mulf %159, %162 : vector<16x32xf32>
    %164 = math.erf %163 : vector<16x32xf32>
    %cst_62 = arith.constant 1.000000e+00 : f32
    %165 = vector.broadcast %cst_62 : f32 to vector<16x32xf32>
    %166 = arith.addf %165, %164 : vector<16x32xf32>
    %167 = arith.mulf %161, %166 : vector<16x32xf32>
    %168 = arith.addf %141, %167 : vector<16x32xf32>
    %c0_63 = arith.constant 0 : index
    %c0_64 = arith.constant 0 : index
    %169 = vector.load %arg14[%c0_63, %c0_64] : memref<1x32xf32, #tpu.memory_space<vmem>>, vector<1x32xf32>
    %c0_65 = arith.constant 0 : index
    %c0_66 = arith.constant 0 : index
    %170 = vector.load %arg15[%c0_65, %c0_66] : memref<1x32xf32, #tpu.memory_space<vmem>>, vector<1x32xf32>
    %cst_67 = arith.constant dense<0.000000e+00> : vector<16xf32>
    %171 = vector.multi_reduction <add>, %168, %cst_67 [1] : vector<16x32xf32> to vector<16xf32>
    %172 = vector.shape_cast %171 : vector<16xf32> to vector<16x1xf32>
    %cst_68 = arith.constant 3.200000e+01 : f32
    %173 = vector.broadcast %cst_68 : f32 to vector<16x1xf32>
    %174 = arith.divf %172, %173 : vector<16x1xf32>
    %175 = vector.broadcast %174 : vector<16x1xf32> to vector<16x32xf32>
    %176 = arith.subf %168, %175 : vector<16x32xf32>
    %177 = arith.mulf %176, %176 : vector<16x32xf32>
    %cst_69 = arith.constant dense<0.000000e+00> : vector<16xf32>
    %178 = vector.multi_reduction <add>, %177, %cst_69 [1] : vector<16x32xf32> to vector<16xf32>
    %179 = vector.shape_cast %178 : vector<16xf32> to vector<16x1xf32>
    %cst_70 = arith.constant 3.200000e+01 : f32
    %180 = vector.broadcast %cst_70 : f32 to vector<16x1xf32>
    %181 = arith.divf %179, %180 : vector<16x1xf32>
    %cst_71 = arith.constant 9.99999997E-7 : f32
    %182 = vector.broadcast %cst_71 : f32 to vector<16x1xf32>
    %183 = arith.addf %181, %182 : vector<16x1xf32>
    %184 = math.rsqrt %183 : vector<16x1xf32>
    %185 = vector.broadcast %184 : vector<16x1xf32> to vector<16x32xf32>
    %186 = arith.mulf %176, %185 : vector<16x32xf32>
    %187 = vector.broadcast %169 : vector<1x32xf32> to vector<16x32xf32>
    %188 = arith.mulf %186, %187 : vector<16x32xf32>
    %189 = vector.broadcast %170 : vector<1x32xf32> to vector<16x32xf32>
    %190 = arith.addf %188, %189 : vector<16x32xf32>
    %c0_72 = arith.constant 0 : index
    %c0_73 = arith.constant 0 : index
    %191 = vector.load %arg16[%c0_72, %c0_73] : memref<16x32xf32, #tpu.memory_space<vmem>>, vector<16x32xf32>
    tpu.vector_store %arg16[%c0_72, %c0_73], %190 {strides = array<i32>} : memref<16x32xf32, #tpu.memory_space<vmem>>, vector<16x32xf32>,
    return
  }
  func.func @transform_0(%arg0: i32) -> (i32, i32) {
    %c0_i32 = arith.constant 0 : i32
    %c0_i32_0 = arith.constant 0 : i32
    return %arg0, %c0_i32 : i32, i32
  }
  func.func @transform_1(%arg0: i32) -> (i32, i32) {
    %c0_i32 = arith.constant 0 : i32
    %c0_i32_0 = arith.constant 0 : i32
    %c0_i32_1 = arith.constant 0 : i32
    return %c0_i32, %c0_i32_0 : i32, i32
  }
  func.func @transform_2(%arg0: i32) -> (i32, i32) {
    %c0_i32 = arith.constant 0 : i32
    %c0_i32_0 = arith.constant 0 : i32
    %c0_i32_1 = arith.constant 0 : i32
    return %c0_i32, %c0_i32_0 : i32, i32
  }
  func.func @transform_3(%arg0: i32) -> (i32, i32) {
    %c0_i32 = arith.constant 0 : i32
    %c0_i32_0 = arith.constant 0 : i32
    %c0_i32_1 = arith.constant 0 : i32
    return %c0_i32, %c0_i32_0 : i32, i32
  }
  func.func @transform_4(%arg0: i32) -> (i32, i32) {
    %c0_i32 = arith.constant 0 : i32
    %c0_i32_0 = arith.constant 0 : i32
    %c0_i32_1 = arith.constant 0 : i32
    return %c0_i32, %c0_i32_0 : i32, i32
  }
  func.func @transform_5(%arg0: i32) -> (i32, i32) {
    %c0_i32 = arith.constant 0 : i32
    %c0_i32_0 = arith.constant 0 : i32
    %c0_i32_1 = arith.constant 0 : i32
    return %c0_i32, %c0_i32_0 : i32, i32
  }
  func.func @transform_6(%arg0: i32) -> (i32, i32) {
    %c0_i32 = arith.constant 0 : i32
    %c0_i32_0 = arith.constant 0 : i32
    %c0_i32_1 = arith.constant 0 : i32
    return %c0_i32, %c0_i32_0 : i32, i32
  }
  func.func @transform_7(%arg0: i32) -> (i32, i32) {
    %c0_i32 = arith.constant 0 : i32
    %c0_i32_0 = arith.constant 0 : i32
    %c0_i32_1 = arith.constant 0 : i32
    return %c0_i32, %c0_i32_0 : i32, i32
  }
  func.func @transform_8(%arg0: i32) -> (i32, i32) {
    %c0_i32 = arith.constant 0 : i32
    %c0_i32_0 = arith.constant 0 : i32
    %c0_i32_1 = arith.constant 0 : i32
    return %c0_i32, %c0_i32_0 : i32, i32
  }
  func.func @transform_9(%arg0: i32) -> (i32, i32) {
    %c0_i32 = arith.constant 0 : i32
    %c0_i32_0 = arith.constant 0 : i32
    %c0_i32_1 = arith.constant 0 : i32
    return %c0_i32, %c0_i32_0 : i32, i32
  }
  func.func @transform_10(%arg0: i32) -> (i32, i32) {
    %c0_i32 = arith.constant 0 : i32
    %c0_i32_0 = arith.constant 0 : i32
    %c0_i32_1 = arith.constant 0 : i32
    return %c0_i32, %c0_i32_0 : i32, i32
  }
  func.func @transform_11(%arg0: i32) -> (i32, i32) {
    %c0_i32 = arith.constant 0 : i32
    %c0_i32_0 = arith.constant 0 : i32
    %c0_i32_1 = arith.constant 0 : i32
    return %c0_i32, %c0_i32_0 : i32, i32
  }
  func.func @transform_12(%arg0: i32) -> (i32, i32) {
    %c0_i32 = arith.constant 0 : i32
    %c0_i32_0 = arith.constant 0 : i32
    %c0_i32_1 = arith.constant 0 : i32
    return %c0_i32, %c0_i32_0 : i32, i32
  }
  func.func @transform_13(%arg0: i32) -> (i32, i32) {
    %c0_i32 = arith.constant 0 : i32
    %c0_i32_0 = arith.constant 0 : i32
    %c0_i32_1 = arith.constant 0 : i32
    return %c0_i32, %c0_i32_0 : i32, i32
  }
  func.func @transform_14(%arg0: i32) -> (i32, i32) {
    %c0_i32 = arith.constant 0 : i32
    %c0_i32_0 = arith.constant 0 : i32
    %c0_i32_1 = arith.constant 0 : i32
    return %c0_i32, %c0_i32_0 : i32, i32
  }
  func.func @transform_15(%arg0: i32) -> (i32, i32) {
    %c0_i32 = arith.constant 0 : i32
    %c0_i32_0 = arith.constant 0 : i32
    return %arg0, %c0_i32 : i32, i32
  }
}

</mosaic_0001>

<llo_original>
// kernel: tpu_custom_call.1
$region0: #{tpu_custom_call.1}
  #allocation0 [shape = 'u32[]', space=smem, size = 0x4, offset = 0x4, fixed_abs, tag = 'smem constant byte address 0x4 - core index']
  #allocation1 [shape = 'u32[144,128]{1,0:T(1,128)}', space=vmem, size = 0x12000, scoped, tag = 'internal scratch']
  %s0 = inlined_call_operand.hbm [shape: f32[16,32], index: 0, kind: input, shape index: {}]
  %s1 = inlined_call_operand.vmem [shape: f32[1,32], index: 1, kind: input, shape index: {}]
  %s2 = inlined_call_operand.vmem [shape: f32[1,32], index: 2, kind: input, shape index: {}]
  %s3 = inlined_call_operand.vmem [shape: f32[32,96], index: 3, kind: input, shape index: {}]
  %s4 = inlined_call_operand.vmem [shape: f32[1,96], index: 4, kind: input, shape index: {}]
  %s5 = inlined_call_operand.vmem [shape: f32[32,32], index: 5, kind: input, shape index: {}]
  %s6 = inlined_call_operand.vmem [shape: f32[1,32], index: 6, kind: input, shape index: {}]
  %s7 = inlined_call_operand.vmem [shape: f32[1,32], index: 7, kind: input, shape index: {}]
  %s8 = inlined_call_operand.vmem [shape: f32[1,32], index: 8, kind: input, shape index: {}]
  %s9 = inlined_call_operand.vmem [shape: f32[32,64], index: 9, kind: input, shape index: {}]
  %s10 = inlined_call_operand.vmem [shape: f32[1,64], index: 10, kind: input, shape index: {}]
  %s11 = inlined_call_operand.vmem [shape: f32[64,32], index: 11, kind: input, shape index: {}]
  %s12 = inlined_call_operand.vmem [shape: f32[1,32], index: 12, kind: input, shape index: {}]
  %s13 = inlined_call_operand.vmem [shape: f32[1,32], index: 13, kind: input, shape index: {}]
  %s14 = inlined_call_operand.vmem [shape: f32[1,32], index: 14, kind: input, shape index: {}]
  %s15 = inlined_call_operand.hbm [shape: f32[16,32], index: 15, kind: output, shape index: {}]
  %s16 = sld [smem:[#allocation0]]
  $region74: #{tpu_custom_call.1} parent=0
    _
  %s18 = ssub.s32 1, %s16
  %s19 = scalar_select 0, %s18, %s16
  $region1: #{tpu_custom_call.1} parent=0
    #allocation2 [shape = 'u8[8192]{0}', space=vmem, size = 0x2000, scoped, tag = 'input window, operand 0, single buffered']
    #allocation3 [shape = 's32[1]{0}', space=sflag, size = 0x4, scoped, tag = 'scoped memory for tpu_custom_call.1']
    #allocation4 [shape = 's32[1]{0}', space=sflag, size = 0x4, scoped, tag = 'scoped memory for tpu_custom_call.1']
    #allocation5 [shape = 'u8[8192]{0}', space=vmem, size = 0x2000, scoped, tag = 'output window, operand 0, single buffered']
    %20 = vsyncpa [#allocation3], 0
    %21 = vsyncpa [#allocation4], 0
    // Predicated region
    $region2: #{tpu_custom_call.1} parent=1 // pred_check
      _
    $region3: #{tpu_custom_call.1} parent=1 // pred_check_branch
      %23 = sbr.rel (0) target = $region5
    $region4: #{tpu_custom_call.1} parent=1 // pred_region
      %s25 = ssub.s32 256, 256
      %26 = vsyncadd [#allocation3], %s25
      %s27 = sshll.u32 [#allocation2], 4
      %s28 = int_to_ptr.vmem [resolvable:$true] %s27
      %33 = dma.hbm_to_vmem [thread:$0]  %s0, 256, %s28, [#allocation3], 128, 128, 8
    $region5: #{tpu_custom_call.1} parent=1 // pred_fallthru
      _
    // Predicated region
    $region6: #{tpu_custom_call.1} parent=1 // pred_check
      _
    $region7: #{tpu_custom_call.1} parent=1 // pred_check_branch
      %35 = sbr.rel (0) target = $region9
    $region8: #{tpu_custom_call.1} parent=1 // pred_region
      _
    $region9: #{tpu_custom_call.1} parent=1 // pred_fallthru
      _
    // Predicated region
    $region10: #{tpu_custom_call.1} parent=1 // pred_check
      _
    $region11: #{tpu_custom_call.1} parent=1 // pred_check_branch
      %37 = sbr.rel (0) target = $region13
    $region12: #{tpu_custom_call.1} parent=1 // pred_region
      _
    $region13: #{tpu_custom_call.1} parent=1 // pred_fallthru
      _
    // Predicated region
    $region14: #{tpu_custom_call.1} parent=1 // pred_check
      _
    $region15: #{tpu_custom_call.1} parent=1 // pred_check_branch
      %39 = sbr.rel (0) target = $region17
    $region16: #{tpu_custom_call.1} parent=1 // pred_region
      _
    $region17: #{tpu_custom_call.1} parent=1 // pred_fallthru
      _
    // Predicated region
    $region18: #{tpu_custom_call.1} parent=1 // pred_check
      _
    $region19: #{tpu_custom_call.1} parent=1 // pred_check_branch
      %41 = sbr.rel (0) target = $region21
    $region20: #{tpu_custom_call.1} parent=1 // pred_region
      _
    $region21: #{tpu_custom_call.1} parent=1 // pred_fallthru
      _
    // Predicated region
    $region22: #{tpu_custom_call.1} parent=1 // pred_check
      _
    $region23: #{tpu_custom_call.1} parent=1 // pred_check_branch
      %43 = sbr.rel (0) target = $region25
    $region24: #{tpu_custom_call.1} parent=1 // pred_region
      _
    $region25: #{tpu_custom_call.1} parent=1 // pred_fallthru
      _
    // Predicated region
    $region26: #{tpu_custom_call.1} parent=1 // pred_check
      _
    $region27: #{tpu_custom_call.1} parent=1 // pred_check_branch
      %45 = sbr.rel (0) target = $region29
    $region28: #{tpu_custom_call.1} parent=1 // pred_region
      _
    $region29: #{tpu_custom_call.1} parent=1 // pred_fallthru
      _
    // Predicated region
    $region30: #{tpu_custom_call.1} parent=1 // pred_check
      _
    $region31: #{tpu_custom_call.1} parent=1 // pred_check_branch
      %47 = sbr.rel (0) target = $region33
    $region32: #{tpu_custom_call.1} parent=1 // pred_region
      _
    $region33: #{tpu_custom_call.1} parent=1 // pred_fallthru
      _
    // Predicated region
    $region34: #{tpu_custom_call.1} parent=1 // pred_check
      _
    $region35: #{tpu_custom_call.1} parent=1 // pred_check_branch
      %49 = sbr.rel (0) target = $region37
    $region36: #{tpu_custom_call.1} parent=1 // pred_region
      _
    $region37: #{tpu_custom_call.1} parent=1 // pred_fallthru
      _
    // Predicated region
    $region38: #{tpu_custom_call.1} parent=1 // pred_check
      _
    $region39: #{tpu_custom_call.1} parent=1 // pred_check_branch
      %51 = sbr.rel (0) target = $region41
    $region40: #{tpu_custom_call.1} parent=1 // pred_region
      _
    $region41: #{tpu_custom_call.1} parent=1 // pred_fallthru
      _
    // Predicated region
    $region42: #{tpu_custom_call.1} parent=1 // pred_check
      _
    $region43: #{tpu_custom_call.1} parent=1 // pred_check_branch
      %53 = sbr.rel (0) target = $region45
    $region44: #{tpu_custom_call.1} parent=1 // pred_region
      _
    $region45: #{tpu_custom_call.1} parent=1 // pred_fallthru
      _
    // Predicated region
    $region46: #{tpu_custom_call.1} parent=1 // pred_check
      _
    $region47: #{tpu_custom_call.1} parent=1 // pred_check_branch
      %55 = sbr.rel (0) target = $region49
    $region48: #{tpu_custom_call.1} parent=1 // pred_region
      _
    $region49: #{tpu_custom_call.1} parent=1 // pred_fallthru
      _
    // Predicated region
    $region50: #{tpu_custom_call.1} parent=1 // pred_check
      _
    $region51: #{tpu_custom_call.1} parent=1 // pred_check_branch
      %57 = sbr.rel (0) target = $region53
    $region52: #{tpu_custom_call.1} parent=1 // pred_region
      _
    $region53: #{tpu_custom_call.1} parent=1 // pred_fallthru
      _
    // Predicated region
    $region54: #{tpu_custom_call.1} parent=1 // pred_check
      _
    $region55: #{tpu_custom_call.1} parent=1 // pred_check_branch
      %59 = sbr.rel (0) target = $region57
    $region56: #{tpu_custom_call.1} parent=1 // pred_region
      _
    $region57: #{tpu_custom_call.1} parent=1 // pred_fallthru
      _
    // Predicated region
    $region58: #{tpu_custom_call.1} parent=1 // pred_check
      _
    $region59: #{tpu_custom_call.1} parent=1 // pred_check_branch
      %61 = sbr.rel (0) target = $region61
    $region60: #{tpu_custom_call.1} parent=1 // pred_region
      _
    $region61: #{tpu_custom_call.1} parent=1 // pred_fallthru
      _
    // Predicated region
    $region62: #{tpu_custom_call.1} parent=1 // pred_check
      _
    $region63: #{tpu_custom_call.1} parent=1 // pred_check_branch
      %63 = sbr.rel (0) target = $region65
    $region64: #{tpu_custom_call.1} parent=1 // pred_region
      %64 = dma.done [#allocation3], 256
    $region65: #{tpu_custom_call.1} parent=1 // pred_fallthru
      _
    %v65 = vld [vmem:[#allocation2] sm:$0xff]
    %v66 = vld [vmem:[#allocation2 + $0x8] sm:$0xff]
    %v67 = vld [vmem:[%s1] sm:$0x1]
    %v68 = vld [vmem:[%s2] sm:$0x1]
    %vm69 = vcmask 261120
    %v70 = vsel %vm69, %v65, 0.0
    %71 = vadd.xlane.f32.xlu0 %v70
    %v72 = vpop.xlane.xlu0 %71
    %v73 = vsel %vm69, %v66, 0.0
    %74 = vadd.xlane.f32.xlu0 %v73
    %v75 = vpop.xlane.xlu0 %74
    %v76 = vrcp.pop 32.0
    %v77 = vmul.f32 %v72, %v76
    %v78 = vmul.f32 %v75, %v76
    %v79 = vsub.f32 %v65, %v77
    %v80 = vsub.f32 %v66, %v78
    %v81 = vmul.f32 %v79, %v79
    %v82 = vmul.f32 %v80, %v80
    %v83 = vsel %vm69, %v81, 0.0
    %84 = vadd.xlane.f32.xlu0 %v83
    %v85 = vpop.xlane.xlu0 %84
    %v86 = vsel %vm69, %v82, 0.0
    %87 = vadd.xlane.f32.xlu0 %v86
    %v88 = vpop.xlane.xlu0 %87
    %v89 = vmul.f32 %v85, %v76
    %v90 = vmul.f32 %v88, %v76
    %v91 = vadd.f32 %v89, 1e-06
    %v92 = vadd.f32 %v90, 1e-06
    %v93 = vrsqrt.pop %v91
    %v94 = vrsqrt.pop %v92
    %v95 = vmul.f32 %v79, %v93
    %v96 = vmul.f32 %v80, %v94
    %v98 = vlaneseq
    %v99 = vshrl.u32 %v98, 7
    %v100 = vsub.s32 0, %v99
    %v101 = vrot.slane %v67, %v100
    %v103 = vmul.f32 %v95, %v101
    %v104 = vmul.f32 %v96, %v101
    %v106 = vlaneseq
    %v107 = vshrl.u32 %v106, 7
    %v108 = vsub.s32 0, %v107
    %v109 = vrot.slane %v68, %v108
    %v111 = vadd.f32 %v103, %v109
    %v112 = vadd.f32 %v104, %v109
    %v113 = vld [vmem:[%s3] sm:$0xff]
    %v114 = vld [vmem:[%s3 + $0x8] sm:$0xff]
    %v115 = vld [vmem:[%s3 + $0x10] sm:$0xff]
    %v116 = vld [vmem:[%s3 + $0x18] sm:$0xff]
    %v117 = vld [vmem:[%s4] sm:$0x1]
    %v119 = vlaneseq
    %v120 = vshrl.u32 %v119, 7
    %v121 = vsub.s32 0, %v120
    %v122 = vrot.slane %v117, %v121
    %v125 = vsel %vm69, %v111, 0
    %v128 = vsel %vm69, %v112, 0
    %130 = vmatprep.subr.mxu0 0.0
    %131 = vmatpush1.msra.mxu0 %v113
    %132 = vmatprep.subr.mxu0 0.0
    %133 = vmatpush1.msra.mxu0 %v114
    %134 = vmatprep.subr.mxu0 0.0
    %135 = vmatpush1.msra.mxu0 %v115
    %136 = vmatprep.subr.mxu0 0.0
    %137 = vmatpush1.msra.mxu0 %v116
    %138 = vmatprep.subr.mxu0 0.0
    %139 = vmatpush1.msra.mxu0 0.0
    %140 = vmatprep.subr.mxu0 0.0
    %141 = vmatpush1.msra.mxu0 0.0
    %142 = vmatprep.subr.mxu0 0.0
    %143 = vmatpush1.msra.mxu0 0.0
    %144 = vmatprep.subr.mxu0 0.0
    %145 = vmatpush1.msra.mxu0 0.0
    %146 = vmatprep.subr.mxu0 0.0
    %147 = vmatpush1.msra.mxu0 0.0
    %148 = vmatprep.subr.mxu0 0.0
    %149 = vmatpush1.msra.mxu0 0.0
    %150 = vmatprep.subr.mxu0 0.0
    %151 = vmatpush1.msra.mxu0 0.0
    %152 = vmatprep.subr.mxu0 0.0
    %153 = vmatpush1.msra.mxu0 0.0
    %154 = vmatprep.subr.mxu0 0.0
    %155 = vmatpush1.msra.mxu0 0.0
    %156 = vmatprep.subr.mxu0 0.0
    %157 = vmatpush1.msra.mxu0 0.0
    %158 = vmatprep.subr.mxu0 0.0
    %159 = vmatpush1.msra.mxu0 0.0
    %160 = vmatprep.subr.mxu0 0.0
    %161 = vmatpush1.msra.mxu0 0.0
    %162 = vmatprep.subr.mxu0 0.0
    %163 = vmatpush1.msra.mxu0 0.0
    %164 = vmatprep.subr.mxu0 0.0
    %165 = vmatpush1.msra.mxu0 0.0
    %166 = vmatprep.subr.mxu0 0.0
    %167 = vmatpush1.msra.mxu0 0.0
    %168 = vmatprep.subr.mxu0 0.0
    %169 = vmatpush1.msra.mxu0 0.0
    %170 = vmatprep.subr.mxu0 0.0
    %171 = vmatpush1.msra.mxu0 0.0
    %172 = vmatprep.subr.mxu0 0.0
    %173 = vmatpush1.msra.mxu0 0.0
    %174 = vmatprep.subr.mxu0 0.0
    %175 = vmatpush1.msra.mxu0 0.0
    %176 = vmatprep.subr.mxu0 0.0
    %177 = vmatpush1.msra.mxu0 0.0
    %178 = vmatprep.subr.mxu0 0.0
    %179 = vmatpush1.msra.mxu0 0.0
    %180 = vmatprep.subr.mxu0 0.0
    %181 = vmatpush1.msra.mxu0 0.0
    %182 = vmatprep.subr.mxu0 0.0
    %183 = vmatpush1.msra.mxu0 0.0
    %184 = vmatprep.subr.mxu0 0.0
    %185 = vmatpush1.msra.mxu0 0.0
    %186 = vmatprep.subr.mxu0 0.0
    %187 = vmatpush1.msra.mxu0 0.0
    %188 = vmatprep.subr.mxu0 0.0
    %189 = vmatpush1.msra.mxu0 0.0
    %190 = vmatprep.subr.mxu0 0.0
    %191 = vmatpush1.msra.mxu0 0.0
    %192 = vmatprep.subr.mxu0 0.0
    %193 = vmatpush1.msra.mxu0 0.0
    %194 = vmatprep.mubr.f32.mxu0 0.0
    %195 = vmatmul.mubr.f32.gmra.mrb[0].mxu0 %v125
    %v196 = vpop.f32.mrb[0].mxu0
    %v197 = vadd.f32 %v122, %v196
    %v198 = vpop.f32.mrb[0].mxu0
    %199 = vmatprep.mubr.f32.mxu0 0.0
    %200 = vmatmul.mubr.f32.gmra.mrb[0].mxu0 %v128
    %v201 = vpop.f32.mrb[0].mxu0
    %v202 = vadd.f32 %v122, %v201
    %v203 = vpop.f32.mrb[0].mxu0
    %204 = vdwg.mxu0
    %v205 = vld [vmem:[%s5] sm:$0xff]
    %v206 = vld [vmem:[%s5 + $0x8] sm:$0xff]
    %v207 = vld [vmem:[%s5 + $0x10] sm:$0xff]
    %v208 = vld [vmem:[%s5 + $0x18] sm:$0xff]
    %210 = vrot.lane.b32.xlu0 %v197, 96
    %v211 = vpop.permute.xlu0 %210
    %vm212 = vcmask 64512
    %v213 = vsel %vm212, %v197, 0
    %v215 = vsel %vm212, %v211, 0
    %217 = vmatprep.subr.mxu0 0.0
    %218 = vmatpush1.xpose.msra.mxu0 %v215
    %219 = vmatprep.subr.mxu0 0.0
    %220 = vmatpush1.xpose.msra.mxu0 0.0
    %221 = vmatprep.subr.mxu0 0.0
    %222 = vmatpush1.xpose.msra.mxu0 0.0
    %223 = vmatprep.subr.mxu0 0.0
    %224 = vmatpush1.xpose.msra.mxu0 0.0
    %225 = vmatprep.subr.mxu0 0.0
    %226 = vmatpush1.xpose.msra.mxu0 0.0
    %227 = vmatprep.subr.mxu0 0.0
    %228 = vmatpush1.xpose.msra.mxu0 0.0
    %229 = vmatprep.subr.mxu0 0.0
    %230 = vmatpush1.xpose.msra.mxu0 0.0
    %231 = vmatprep.subr.mxu0 0.0
    %232 = vmatpush1.xpose.msra.mxu0 0.0
    %233 = vmatprep.subr.mxu0 0.0
    %234 = vmatpush1.xpose.msra.mxu0 0.0
    %235 = vmatprep.subr.mxu0 0.0
    %236 = vmatpush1.xpose.msra.mxu0 0.0
    %237 = vmatprep.subr.mxu0 0.0
    %238 = vmatpush1.xpose.msra.mxu0 0.0
    %239 = vmatprep.subr.mxu0 0.0
    %240 = vmatpush1.xpose.msra.mxu0 0.0
    %241 = vmatprep.subr.mxu0 0.0
    %242 = vmatpush1.xpose.msra.mxu0 0.0
    %243 = vmatprep.subr.mxu0 0.0
    %244 = vmatpush1.xpose.msra.mxu0 0.0
    %245 = vmatprep.subr.mxu0 0.0
    %246 = vmatpush1.xpose.msra.mxu0 0.0
    %247 = vmatprep.subr.mxu0 0.0
    %248 = vmatpush1.xpose.msra.mxu0 0.0
    %249 = vmatprep.subr.mxu0 0.0
    %250 = vmatpush1.xpose.msra.mxu0 0.0
    %251 = vmatprep.subr.mxu0 0.0
    %252 = vmatpush1.xpose.msra.mxu0 0.0
    %253 = vmatprep.subr.mxu0 0.0
    %254 = vmatpush1.xpose.msra.mxu0 0.0
    %255 = vmatprep.subr.mxu0 0.0
    %256 = vmatpush1.xpose.msra.mxu0 0.0
    %257 = vmatprep.subr.mxu0 0.0
    %258 = vmatpush1.xpose.msra.mxu0 0.0
    %259 = vmatprep.subr.mxu0 0.0
    %260 = vmatpush1.xpose.msra.mxu0 0.0
    %261 = vmatprep.subr.mxu0 0.0
    %262 = vmatpush1.xpose.msra.mxu0 0.0
    %263 = vmatprep.subr.mxu0 0.0
    %264 = vmatpush1.xpose.msra.mxu0 0.0
    %265 = vmatprep.subr.mxu0 0.0
    %266 = vmatpush1.xpose.msra.mxu0 0.0
    %267 = vmatprep.subr.mxu0 0.0
    %268 = vmatpush1.xpose.msra.mxu0 0.0
    %269 = vmatprep.subr.mxu0 0.0
    %270 = vmatpush1.xpose.msra.mxu0 0.0
    %271 = vmatprep.subr.mxu0 0.0
    %272 = vmatpush1.xpose.msra.mxu0 0.0
    %273 = vmatprep.subr.mxu0 0.0
    %274 = vmatpush1.xpose.msra.mxu0 0.0
    %275 = vmatprep.subr.mxu0 0.0
    %276 = vmatpush1.xpose.msra.mxu0 0.0
    %277 = vmatprep.subr.mxu0 0.0
    %278 = vmatpush1.xpose.msra.mxu0 0.0
    %279 = vmatprep.subr.mxu0 0.0
    %280 = vmatpush1.xpose.msra.mxu0 0.0
    %281 = vmatprep.mubr.f32.mxu0 0.0
    %282 = vmatmul.mubr.f32.gmra.mrb[0].mxu0 %v213
    %v283 = vpop.f32.mrb[0].mxu0
    %v284 = vadd.f32 0.0, %v283
    %v285 = vpop.f32.mrb[0].mxu0
    %286 = vdwg.mxu0
    %288 = vrot.lane.b32.xlu0 %v202, 96
    %v289 = vpop.permute.xlu0 %288
    %v290 = vsel %vm212, %v202, 0
    %v292 = vsel %vm212, %v289, 0
    %294 = vmatprep.subr.mxu0 0.0
    %295 = vmatpush1.xpose.msra.mxu0 %v292
    %296 = vmatprep.subr.mxu0 0.0
    %297 = vmatpush1.xpose.msra.mxu0 0.0
    %298 = vmatprep.subr.mxu0 0.0
    %299 = vmatpush1.xpose.msra.mxu0 0.0
    %300 = vmatprep.subr.mxu0 0.0
    %301 = vmatpush1.xpose.msra.mxu0 0.0
    %302 = vmatprep.subr.mxu0 0.0
    %303 = vmatpush1.xpose.msra.mxu0 0.0
    %304 = vmatprep.subr.mxu0 0.0
    %305 = vmatpush1.xpose.msra.mxu0 0.0
    %306 = vmatprep.subr.mxu0 0.0
    %307 = vmatpush1.xpose.msra.mxu0 0.0
    %308 = vmatprep.subr.mxu0 0.0
    %309 = vmatpush1.xpose.msra.mxu0 0.0
    %310 = vmatprep.subr.mxu0 0.0
    %311 = vmatpush1.xpose.msra.mxu0 0.0
    %312 = vmatprep.subr.mxu0 0.0
    %313 = vmatpush1.xpose.msra.mxu0 0.0
    %314 = vmatprep.subr.mxu0 0.0
    %315 = vmatpush1.xpose.msra.mxu0 0.0
    %316 = vmatprep.subr.mxu0 0.0
    %317 = vmatpush1.xpose.msra.mxu0 0.0
    %318 = vmatprep.subr.mxu0 0.0
    %319 = vmatpush1.xpose.msra.mxu0 0.0
    %320 = vmatprep.subr.mxu0 0.0
    %321 = vmatpush1.xpose.msra.mxu0 0.0
    %322 = vmatprep.subr.mxu0 0.0
    %323 = vmatpush1.xpose.msra.mxu0 0.0
    %324 = vmatprep.subr.mxu0 0.0
    %325 = vmatpush1.xpose.msra.mxu0 0.0
    %326 = vmatprep.subr.mxu0 0.0
    %327 = vmatpush1.xpose.msra.mxu0 0.0
    %328 = vmatprep.subr.mxu0 0.0
    %329 = vmatpush1.xpose.msra.mxu0 0.0
    %330 = vmatprep.subr.mxu0 0.0
    %331 = vmatpush1.xpose.msra.mxu0 0.0
    %332 = vmatprep.subr.mxu0 0.0
    %333 = vmatpush1.xpose.msra.mxu0 0.0
    %334 = vmatprep.subr.mxu0 0.0
    %335 = vmatpush1.xpose.msra.mxu0 0.0
    %336 = vmatprep.subr.mxu0 0.0
    %337 = vmatpush1.xpose.msra.mxu0 0.0
    %338 = vmatprep.subr.mxu0 0.0
    %339 = vmatpush1.xpose.msra.mxu0 0.0
    %340 = vmatprep.subr.mxu0 0.0
    %341 = vmatpush1.xpose.msra.mxu0 0.0
    %342 = vmatprep.subr.mxu0 0.0
    %343 = vmatpush1.xpose.msra.mxu0 0.0
    %344 = vmatprep.subr.mxu0 0.0
    %345 = vmatpush1.xpose.msra.mxu0 0.0
    %346 = vmatprep.subr.mxu0 0.0
    %347 = vmatpush1.xpose.msra.mxu0 0.0
    %348 = vmatprep.subr.mxu0 0.0
    %349 = vmatpush1.xpose.msra.mxu0 0.0
    %350 = vmatprep.subr.mxu0 0.0
    %351 = vmatpush1.xpose.msra.mxu0 0.0
    %352 = vmatprep.subr.mxu0 0.0
    %353 = vmatpush1.xpose.msra.mxu0 0.0
    %354 = vmatprep.subr.mxu0 0.0
    %355 = vmatpush1.xpose.msra.mxu0 0.0
    %356 = vmatprep.subr.mxu0 0.0
    %357 = vmatpush1.xpose.msra.mxu0 0.0
    %358 = vmatprep.mubr.f32.mxu0 0.0
    %359 = vmatmul.mubr.f32.gmra.mrb[0].mxu0 %v290
    %v360 = vpop.f32.mrb[0].mxu0
    %v361 = vadd.f32 0.0, %v360
    %v362 = vpop.f32.mrb[0].mxu0
    %363 = vdwg.mxu0
    %v364 = vsel %vm212, %v284, -inf
    %365 = vmax.xlane.f32.xlu0 %v364
    %v366 = vpop.xlane.xlu0 %365
    %v367 = vsel %vm212, %v361, -inf
    %368 = vmax.xlane.f32.xlu0 %v367
    %v369 = vpop.xlane.xlu0 %368
    %v370 = vsub.f32 %v284, %v366
    %v371 = vsub.f32 %v361, %v369
    %v372 = vmul.f32 %v370, 1.442695
    %v373 = vpow.pop %v372
    %v374 = vmul.f32 %v371, 1.442695
    %v375 = vpow.pop %v374
    %v376 = vsel %vm212, %v373, 0.0
    %377 = vadd.xlane.f32.xlu0 %v376
    %v378 = vpop.xlane.xlu0 %377
    %v379 = vsel %vm212, %v375, 0.0
    %380 = vadd.xlane.f32.xlu0 %v379
    %v381 = vpop.xlane.xlu0 %380
    %v382 = vrcp.pop %v378
    %v383 = vrcp.pop %v381
    %v384 = vmul.f32 %v373, %v382
    %v385 = vmul.f32 %v375, %v383
    %386 = vrot.lane.b32.xlu0 %v197, 64
    %v387 = vpop.permute.xlu0 %386
    %v390 = vsel %vm212, %v384, 0
    %392 = vmatprep.subr.mxu0 0.0
    %393 = vmatpush1.msra.mxu0 %v387
    %394 = vmatprep.subr.mxu0 0.0
    %395 = vmatpush1.msra.mxu0 0.0
    %396 = vmatprep.subr.mxu0 0.0
    %397 = vmatpush1.msra.mxu0 0.0
    %398 = vmatprep.subr.mxu0 0.0
    %399 = vmatpush1.msra.mxu0 0.0
    %400 = vmatprep.subr.mxu0 0.0
    %401 = vmatpush1.msra.mxu0 0.0
    %402 = vmatprep.subr.mxu0 0.0
    %403 = vmatpush1.msra.mxu0 0.0
    %404 = vmatprep.subr.mxu0 0.0
    %405 = vmatpush1.msra.mxu0 0.0
    %406 = vmatprep.subr.mxu0 0.0
    %407 = vmatpush1.msra.mxu0 0.0
    %408 = vmatprep.subr.mxu0 0.0
    %409 = vmatpush1.msra.mxu0 0.0
    %410 = vmatprep.subr.mxu0 0.0
    %411 = vmatpush1.msra.mxu0 0.0
    %412 = vmatprep.subr.mxu0 0.0
    %413 = vmatpush1.msra.mxu0 0.0
    %414 = vmatprep.subr.mxu0 0.0
    %415 = vmatpush1.msra.mxu0 0.0
    %416 = vmatprep.subr.mxu0 0.0
    %417 = vmatpush1.msra.mxu0 0.0
    %418 = vmatprep.subr.mxu0 0.0
    %419 = vmatpush1.msra.mxu0 0.0
    %420 = vmatprep.subr.mxu0 0.0
    %421 = vmatpush1.msra.mxu0 0.0
    %422 = vmatprep.subr.mxu0 0.0
    %423 = vmatpush1.msra.mxu0 0.0
    %424 = vmatprep.subr.mxu0 0.0
    %425 = vmatpush1.msra.mxu0 0.0
    %426 = vmatprep.subr.mxu0 0.0
    %427 = vmatpush1.msra.mxu0 0.0
    %428 = vmatprep.subr.mxu0 0.0
    %429 = vmatpush1.msra.mxu0 0.0
    %430 = vmatprep.subr.mxu0 0.0
    %431 = vmatpush1.msra.mxu0 0.0
    %432 = vmatprep.subr.mxu0 0.0
    %433 = vmatpush1.msra.mxu0 0.0
    %434 = vmatprep.subr.mxu0 0.0
    %435 = vmatpush1.msra.mxu0 0.0
    %436 = vmatprep.subr.mxu0 0.0
    %437 = vmatpush1.msra.mxu0 0.0
    %438 = vmatprep.subr.mxu0 0.0
    %439 = vmatpush1.msra.mxu0 0.0
    %440 = vmatprep.subr.mxu0 0.0
    %441 = vmatpush1.msra.mxu0 0.0
    %442 = vmatprep.subr.mxu0 0.0
    %443 = vmatpush1.msra.mxu0 0.0
    %444 = vmatprep.subr.mxu0 0.0
    %445 = vmatpush1.msra.mxu0 0.0
    %446 = vmatprep.subr.mxu0 0.0
    %447 = vmatpush1.msra.mxu0 0.0
    %448 = vmatprep.subr.mxu0 0.0
    %449 = vmatpush1.msra.mxu0 0.0
    %450 = vmatprep.subr.mxu0 0.0
    %451 = vmatpush1.msra.mxu0 0.0
    %452 = vmatprep.subr.mxu0 0.0
    %453 = vmatpush1.msra.mxu0 0.0
    %454 = vmatprep.subr.mxu0 0.0
    %455 = vmatpush1.msra.mxu0 0.0
    %456 = vmatprep.mubr.f32.mxu0 0.0
    %457 = vmatmul.mubr.f32.gmra.mrb[0].mxu0 %v390
    %v458 = vpop.f32.mrb[0].mxu0
    %v459 = vadd.f32 0.0, %v458
    %v460 = vpop.f32.mrb[0].mxu0
    %461 = vdwg.mxu0
    %462 = vrot.lane.b32.xlu0 %v202, 64
    %v463 = vpop.permute.xlu0 %462
    %v466 = vsel %vm212, %v385, 0
    %468 = vmatprep.subr.mxu0 0.0
    %469 = vmatpush1.msra.mxu0 %v463
    %470 = vmatprep.subr.mxu0 0.0
    %471 = vmatpush1.msra.mxu0 0.0
    %472 = vmatprep.subr.mxu0 0.0
    %473 = vmatpush1.msra.mxu0 0.0
    %474 = vmatprep.subr.mxu0 0.0
    %475 = vmatpush1.msra.mxu0 0.0
    %476 = vmatprep.subr.mxu0 0.0
    %477 = vmatpush1.msra.mxu0 0.0
    %478 = vmatprep.subr.mxu0 0.0
    %479 = vmatpush1.msra.mxu0 0.0
    %480 = vmatprep.subr.mxu0 0.0
    %481 = vmatpush1.msra.mxu0 0.0
    %482 = vmatprep.subr.mxu0 0.0
    %483 = vmatpush1.msra.mxu0 0.0
    %484 = vmatprep.subr.mxu0 0.0
    %485 = vmatpush1.msra.mxu0 0.0
    %486 = vmatprep.subr.mxu0 0.0
    %487 = vmatpush1.msra.mxu0 0.0
    %488 = vmatprep.subr.mxu0 0.0
    %489 = vmatpush1.msra.mxu0 0.0
    %490 = vmatprep.subr.mxu0 0.0
    %491 = vmatpush1.msra.mxu0 0.0
    %492 = vmatprep.subr.mxu0 0.0
    %493 = vmatpush1.msra.mxu0 0.0
    %494 = vmatprep.subr.mxu0 0.0
    %495 = vmatpush1.msra.mxu0 0.0
    %496 = vmatprep.subr.mxu0 0.0
    %497 = vmatpush1.msra.mxu0 0.0
    %498 = vmatprep.subr.mxu0 0.0
    %499 = vmatpush1.msra.mxu0 0.0
    %500 = vmatprep.subr.mxu0 0.0
    %501 = vmatpush1.msra.mxu0 0.0
    %502 = vmatprep.subr.mxu0 0.0
    %503 = vmatpush1.msra.mxu0 0.0
    %504 = vmatprep.subr.mxu0 0.0
    %505 = vmatpush1.msra.mxu0 0.0
    %506 = vmatprep.subr.mxu0 0.0
    %507 = vmatpush1.msra.mxu0 0.0
    %508 = vmatprep.subr.mxu0 0.0
    %509 = vmatpush1.msra.mxu0 0.0
    %510 = vmatprep.subr.mxu0 0.0
    %511 = vmatpush1.msra.mxu0 0.0
    %512 = vmatprep.subr.mxu0 0.0
    %513 = vmatpush1.msra.mxu0 0.0
    %514 = vmatprep.subr.mxu0 0.0
    %515 = vmatpush1.msra.mxu0 0.0
    %516 = vmatprep.subr.mxu0 0.0
    %517 = vmatpush1.msra.mxu0 0.0
    %518 = vmatprep.subr.mxu0 0.0
    %519 = vmatpush1.msra.mxu0 0.0
    %520 = vmatprep.subr.mxu0 0.0
    %521 = vmatpush1.msra.mxu0 0.0
    %522 = vmatprep.subr.mxu0 0.0
    %523 = vmatpush1.msra.mxu0 0.0
    %524 = vmatprep.subr.mxu0 0.0
    %525 = vmatpush1.msra.mxu0 0.0
    %526 = vmatprep.subr.mxu0 0.0
    %527 = vmatpush1.msra.mxu0 0.0
    %528 = vmatprep.subr.mxu0 0.0
    %529 = vmatpush1.msra.mxu0 0.0
    %530 = vmatprep.subr.mxu0 0.0
    %531 = vmatpush1.msra.mxu0 0.0
    %532 = vmatprep.mubr.f32.mxu0 0.0
    %533 = vmatmul.mubr.f32.gmra.mrb[0].mxu0 %v466
    %v534 = vpop.f32.mrb[0].mxu0
    %v535 = vadd.f32 0.0, %v534
    %v536 = vpop.f32.mrb[0].mxu0
    %537 = vdwg.mxu0
    %538 = vrot.lane.b32.xlu0 %v197, 120
    %v539 = vpop.permute.xlu0 %538
    %540 = vrot.lane.b32.xlu0 %v197, 88
    %v541 = vpop.permute.xlu0 %540
    %v542 = vsel %vm212, %v539, 0
    %v544 = vsel %vm212, %v541, 0
    %546 = vmatprep.subr.mxu0 0.0
    %547 = vmatpush1.xpose.msra.mxu0 %v544
    %548 = vmatprep.subr.mxu0 0.0
    %549 = vmatpush1.xpose.msra.mxu0 0.0
    %550 = vmatprep.subr.mxu0 0.0
    %551 = vmatpush1.xpose.msra.mxu0 0.0
    %552 = vmatprep.subr.mxu0 0.0
    %553 = vmatpush1.xpose.msra.mxu0 0.0
    %554 = vmatprep.subr.mxu0 0.0
    %555 = vmatpush1.xpose.msra.mxu0 0.0
    %556 = vmatprep.subr.mxu0 0.0
    %557 = vmatpush1.xpose.msra.mxu0 0.0
    %558 = vmatprep.subr.mxu0 0.0
    %559 = vmatpush1.xpose.msra.mxu0 0.0
    %560 = vmatprep.subr.mxu0 0.0
    %561 = vmatpush1.xpose.msra.mxu0 0.0
    %562 = vmatprep.subr.mxu0 0.0
    %563 = vmatpush1.xpose.msra.mxu0 0.0
    %564 = vmatprep.subr.mxu0 0.0
    %565 = vmatpush1.xpose.msra.mxu0 0.0
    %566 = vmatprep.subr.mxu0 0.0
    %567 = vmatpush1.xpose.msra.mxu0 0.0
    %568 = vmatprep.subr.mxu0 0.0
    %569 = vmatpush1.xpose.msra.mxu0 0.0
    %570 = vmatprep.subr.mxu0 0.0
    %571 = vmatpush1.xpose.msra.mxu0 0.0
    %572 = vmatprep.subr.mxu0 0.0
    %573 = vmatpush1.xpose.msra.mxu0 0.0
    %574 = vmatprep.subr.mxu0 0.0
    %575 = vmatpush1.xpose.msra.mxu0 0.0
    %576 = vmatprep.subr.mxu0 0.0
    %577 = vmatpush1.xpose.msra.mxu0 0.0
    %578 = vmatprep.subr.mxu0 0.0
    %579 = vmatpush1.xpose.msra.mxu0 0.0
    %580 = vmatprep.subr.mxu0 0.0
    %581 = vmatpush1.xpose.msra.mxu0 0.0
    %582 = vmatprep.subr.mxu0 0.0
    %583 = vmatpush1.xpose.msra.mxu0 0.0
    %584 = vmatprep.subr.mxu0 0.0
    %585 = vmatpush1.xpose.msra.mxu0 0.0
    %586 = vmatprep.subr.mxu0 0.0
    %587 = vmatpush1.xpose.msra.mxu0 0.0
    %588 = vmatprep.subr.mxu0 0.0
    %589 = vmatpush1.xpose.msra.mxu0 0.0
    %590 = vmatprep.subr.mxu0 0.0
    %591 = vmatpush1.xpose.msra.mxu0 0.0
    %592 = vmatprep.subr.mxu0 0.0
    %593 = vmatpush1.xpose.msra.mxu0 0.0
    %594 = vmatprep.subr.mxu0 0.0
    %595 = vmatpush1.xpose.msra.mxu0 0.0
    %596 = vmatprep.subr.mxu0 0.0
    %597 = vmatpush1.xpose.msra.mxu0 0.0
    %598 = vmatprep.subr.mxu0 0.0
    %599 = vmatpush1.xpose.msra.mxu0 0.0
    %600 = vmatprep.subr.mxu0 0.0
    %601 = vmatpush1.xpose.msra.mxu0 0.0
    %602 = vmatprep.subr.mxu0 0.0
    %603 = vmatpush1.xpose.msra.mxu0 0.0
    %604 = vmatprep.subr.mxu0 0.0
    %605 = vmatpush1.xpose.msra.mxu0 0.0
    %606 = vmatprep.subr.mxu0 0.0
    %607 = vmatpush1.xpose.msra.mxu0 0.0
    %608 = vmatprep.subr.mxu0 0.0
    %609 = vmatpush1.xpose.msra.mxu0 0.0
    %610 = vmatprep.mubr.f32.mxu0 0.0
    %611 = vmatmul.mubr.f32.gmra.mrb[0].mxu0 %v542
    %v612 = vpop.f32.mrb[0].mxu0
    %v613 = vadd.f32 0.0, %v612
    %v614 = vpop.f32.mrb[0].mxu0
    %615 = vdwg.mxu0
    %616 = vrot.lane.b32.xlu0 %v202, 120
    %v617 = vpop.permute.xlu0 %616
    %618 = vrot.lane.b32.xlu0 %v202, 88
    %v619 = vpop.permute.xlu0 %618
    %v620 = vsel %vm212, %v617, 0
    %v622 = vsel %vm212, %v619, 0
    %624 = vmatprep.subr.mxu0 0.0
    %625 = vmatpush1.xpose.msra.mxu0 %v622
    %626 = vmatprep.subr.mxu0 0.0
    %627 = vmatpush1.xpose.msra.mxu0 0.0
    %628 = vmatprep.subr.mxu0 0.0
    %629 = vmatpush1.xpose.msra.mxu0 0.0
    %630 = vmatprep.subr.mxu0 0.0
    %631 = vmatpush1.xpose.msra.mxu0 0.0
    %632 = vmatprep.subr.mxu0 0.0
    %633 = vmatpush1.xpose.msra.mxu0 0.0
    %634 = vmatprep.subr.mxu0 0.0
    %635 = vmatpush1.xpose.msra.mxu0 0.0
    %636 = vmatprep.subr.mxu0 0.0
    %637 = vmatpush1.xpose.msra.mxu0 0.0
    %638 = vmatprep.subr.mxu0 0.0
    %639 = vmatpush1.xpose.msra.mxu0 0.0
    %640 = vmatprep.subr.mxu0 0.0
    %641 = vmatpush1.xpose.msra.mxu0 0.0
    %642 = vmatprep.subr.mxu0 0.0
    %643 = vmatpush1.xpose.msra.mxu0 0.0
    %644 = vmatprep.subr.mxu0 0.0
    %645 = vmatpush1.xpose.msra.mxu0 0.0
    %646 = vmatprep.subr.mxu0 0.0
    %647 = vmatpush1.xpose.msra.mxu0 0.0
    %648 = vmatprep.subr.mxu0 0.0
    %649 = vmatpush1.xpose.msra.mxu0 0.0
    %650 = vmatprep.subr.mxu0 0.0
    %651 = vmatpush1.xpose.msra.mxu0 0.0
    %652 = vmatprep.subr.mxu0 0.0
    %653 = vmatpush1.xpose.msra.mxu0 0.0
    %654 = vmatprep.subr.mxu0 0.0
    %655 = vmatpush1.xpose.msra.mxu0 0.0
    %656 = vmatprep.subr.mxu0 0.0
    %657 = vmatpush1.xpose.msra.mxu0 0.0
    %658 = vmatprep.subr.mxu0 0.0
    %659 = vmatpush1.xpose.msra.mxu0 0.0
    %660 = vmatprep.subr.mxu0 0.0
    %661 = vmatpush1.xpose.msra.mxu0 0.0
    %662 = vmatprep.subr.mxu0 0.0
    %663 = vmatpush1.xpose.msra.mxu0 0.0
    %664 = vmatprep.subr.mxu0 0.0
    %665 = vmatpush1.xpose.msra.mxu0 0.0
    %666 = vmatprep.subr.mxu0 0.0
    %667 = vmatpush1.xpose.msra.mxu0 0.0
    %668 = vmatprep.subr.mxu0 0.0
    %669 = vmatpush1.xpose.msra.mxu0 0.0
    %670 = vmatprep.subr.mxu0 0.0
    %671 = vmatpush1.xpose.msra.mxu0 0.0
    %672 = vmatprep.subr.mxu0 0.0
    %673 = vmatpush1.xpose.msra.mxu0 0.0
    %674 = vmatprep.subr.mxu0 0.0
    %675 = vmatpush1.xpose.msra.mxu0 0.0
    %676 = vmatprep.subr.mxu0 0.0
    %677 = vmatpush1.xpose.msra.mxu0 0.0
    %678 = vmatprep.subr.mxu0 0.0
    %679 = vmatpush1.xpose.msra.mxu0 0.0
    %680 = vmatprep.subr.mxu0 0.0
    %681 = vmatpush1.xpose.msra.mxu0 0.0
    %682 = vmatprep.subr.mxu0 0.0
    %683 = vmatpush1.xpose.msra.mxu0 0.0
    %684 = vmatprep.subr.mxu0 0.0
    %685 = vmatpush1.xpose.msra.mxu0 0.0
    %686 = vmatprep.subr.mxu0 0.0
    %687 = vmatpush1.xpose.msra.mxu0 0.0
    %688 = vmatprep.mubr.f32.mxu0 0.0
    %689 = vmatmul.mubr.f32.gmra.mrb[0].mxu0 %v620
    %v690 = vpop.f32.mrb[0].mxu0
    %v691 = vadd.f32 0.0, %v690
    %v692 = vpop.f32.mrb[0].mxu0
    %693 = vdwg.mxu0
    %v694 = vsel %vm212, %v613, -inf
    %695 = vmax.xlane.f32.xlu0 %v694
    %v696 = vpop.xlane.xlu0 %695
    %v697 = vsel %vm212, %v691, -inf
    %698 = vmax.xlane.f32.xlu0 %v697
    %v699 = vpop.xlane.xlu0 %698
    %v700 = vsub.f32 %v613, %v696
    %v701 = vsub.f32 %v691, %v699
    %v702 = vmul.f32 %v700, 1.442695
    %v703 = vpow.pop %v702
    %v704 = vmul.f32 %v701, 1.442695
    %v705 = vpow.pop %v704
    %v706 = vsel %vm212, %v703, 0.0
    %707 = vadd.xlane.f32.xlu0 %v706
    %v708 = vpop.xlane.xlu0 %707
    %v709 = vsel %vm212, %v705, 0.0
    %710 = vadd.xlane.f32.xlu0 %v709
    %v711 = vpop.xlane.xlu0 %710
    %v712 = vrcp.pop %v708
    %v713 = vrcp.pop %v711
    %v714 = vmul.f32 %v703, %v712
    %v715 = vmul.f32 %v705, %v713
    %716 = vrot.lane.b32.xlu0 %v197, 56
    %v717 = vpop.permute.xlu0 %716
    %v720 = vsel %vm212, %v714, 0
    %722 = vmatprep.subr.mxu0 0.0
    %723 = vmatpush1.msra.mxu0 %v717
    %724 = vmatprep.subr.mxu0 0.0
    %725 = vmatpush1.msra.mxu0 0.0
    %726 = vmatprep.subr.mxu0 0.0
    %727 = vmatpush1.msra.mxu0 0.0
    %728 = vmatprep.subr.mxu0 0.0
    %729 = vmatpush1.msra.mxu0 0.0
    %730 = vmatprep.subr.mxu0 0.0
    %731 = vmatpush1.msra.mxu0 0.0
    %732 = vmatprep.subr.mxu0 0.0
    %733 = vmatpush1.msra.mxu0 0.0
    %734 = vmatprep.subr.mxu0 0.0
    %735 = vmatpush1.msra.mxu0 0.0
    %736 = vmatprep.subr.mxu0 0.0
    %737 = vmatpush1.msra.mxu0 0.0
    %738 = vmatprep.subr.mxu0 0.0
    %739 = vmatpush1.msra.mxu0 0.0
    %740 = vmatprep.subr.mxu0 0.0
    %741 = vmatpush1.msra.mxu0 0.0
    %742 = vmatprep.subr.mxu0 0.0
    %743 = vmatpush1.msra.mxu0 0.0
    %744 = vmatprep.subr.mxu0 0.0
    %745 = vmatpush1.msra.mxu0 0.0
    %746 = vmatprep.subr.mxu0 0.0
    %747 = vmatpush1.msra.mxu0 0.0
    %748 = vmatprep.subr.mxu0 0.0
    %749 = vmatpush1.msra.mxu0 0.0
    %750 = vmatprep.subr.mxu0 0.0
    %751 = vmatpush1.msra.mxu0 0.0
    %752 = vmatprep.subr.mxu0 0.0
    %753 = vmatpush1.msra.mxu0 0.0
    %754 = vmatprep.subr.mxu0 0.0
    %755 = vmatpush1.msra.mxu0 0.0
    %756 = vmatprep.subr.mxu0 0.0
    %757 = vmatpush1.msra.mxu0 0.0
    %758 = vmatprep.subr.mxu0 0.0
    %759 = vmatpush1.msra.mxu0 0.0
    %760 = vmatprep.subr.mxu0 0.0
    %761 = vmatpush1.msra.mxu0 0.0
    %762 = vmatprep.subr.mxu0 0.0
    %763 = vmatpush1.msra.mxu0 0.0
    %764 = vmatprep.subr.mxu0 0.0
    %765 = vmatpush1.msra.mxu0 0.0
    %766 = vmatprep.subr.mxu0 0.0
    %767 = vmatpush1.msra.mxu0 0.0
    %768 = vmatprep.subr.mxu0 0.0
    %769 = vmatpush1.msra.mxu0 0.0
    %770 = vmatprep.subr.mxu0 0.0
    %771 = vmatpush1.msra.mxu0 0.0
    %772 = vmatprep.subr.mxu0 0.0
    %773 = vmatpush1.msra.mxu0 0.0
    %774 = vmatprep.subr.mxu0 0.0
    %775 = vmatpush1.msra.mxu0 0.0
    %776 = vmatprep.subr.mxu0 0.0
    %777 = vmatpush1.msra.mxu0 0.0
    %778 = vmatprep.subr.mxu0 0.0
    %779 = vmatpush1.msra.mxu0 0.0
    %780 = vmatprep.subr.mxu0 0.0
    %781 = vmatpush1.msra.mxu0 0.0
    %782 = vmatprep.subr.mxu0 0.0
    %783 = vmatpush1.msra.mxu0 0.0
    %784 = vmatprep.subr.mxu0 0.0
    %785 = vmatpush1.msra.mxu0 0.0
    %786 = vmatprep.mubr.f32.mxu0 0.0
    %787 = vmatmul.mubr.f32.gmra.mrb[0].mxu0 %v720
    %v788 = vpop.f32.mrb[0].mxu0
    %v789 = vadd.f32 0.0, %v788
    %v790 = vpop.f32.mrb[0].mxu0
    %791 = vdwg.mxu0
    %792 = vrot.lane.b32.xlu0 %v202, 56
    %v793 = vpop.permute.xlu0 %792
    %v796 = vsel %vm212, %v715, 0
    %798 = vmatprep.subr.mxu0 0.0
    %799 = vmatpush1.msra.mxu0 %v793
    %800 = vmatprep.subr.mxu0 0.0
    %801 = vmatpush1.msra.mxu0 0.0
    %802 = vmatprep.subr.mxu0 0.0
    %803 = vmatpush1.msra.mxu0 0.0
    %804 = vmatprep.subr.mxu0 0.0
    %805 = vmatpush1.msra.mxu0 0.0
    %806 = vmatprep.subr.mxu0 0.0
    %807 = vmatpush1.msra.mxu0 0.0
    %808 = vmatprep.subr.mxu0 0.0
    %809 = vmatpush1.msra.mxu0 0.0
    %810 = vmatprep.subr.mxu0 0.0
    %811 = vmatpush1.msra.mxu0 0.0
    %812 = vmatprep.subr.mxu0 0.0
    %813 = vmatpush1.msra.mxu0 0.0
    %814 = vmatprep.subr.mxu0 0.0
    %815 = vmatpush1.msra.mxu0 0.0
    %816 = vmatprep.subr.mxu0 0.0
    %817 = vmatpush1.msra.mxu0 0.0
    %818 = vmatprep.subr.mxu0 0.0
    %819 = vmatpush1.msra.mxu0 0.0
    %820 = vmatprep.subr.mxu0 0.0
    %821 = vmatpush1.msra.mxu0 0.0
    %822 = vmatprep.subr.mxu0 0.0
    %823 = vmatpush1.msra.mxu0 0.0
    %824 = vmatprep.subr.mxu0 0.0
    %825 = vmatpush1.msra.mxu0 0.0
    %826 = vmatprep.subr.mxu0 0.0
    %827 = vmatpush1.msra.mxu0 0.0
    %828 = vmatprep.subr.mxu0 0.0
    %829 = vmatpush1.msra.mxu0 0.0
    %830 = vmatprep.subr.mxu0 0.0
    %831 = vmatpush1.msra.mxu0 0.0
    %832 = vmatprep.subr.mxu0 0.0
    %833 = vmatpush1.msra.mxu0 0.0
    %834 = vmatprep.subr.mxu0 0.0
    %835 = vmatpush1.msra.mxu0 0.0
    %836 = vmatprep.subr.mxu0 0.0
    %837 = vmatpush1.msra.mxu0 0.0
    %838 = vmatprep.subr.mxu0 0.0
    %839 = vmatpush1.msra.mxu0 0.0
    %840 = vmatprep.subr.mxu0 0.0
    %841 = vmatpush1.msra.mxu0 0.0
    %842 = vmatprep.subr.mxu0 0.0
    %843 = vmatpush1.msra.mxu0 0.0
    %844 = vmatprep.subr.mxu0 0.0
    %845 = vmatpush1.msra.mxu0 0.0
    %846 = vmatprep.subr.mxu0 0.0
    %847 = vmatpush1.msra.mxu0 0.0
    %848 = vmatprep.subr.mxu0 0.0
    %849 = vmatpush1.msra.mxu0 0.0
    %850 = vmatprep.subr.mxu0 0.0
    %851 = vmatpush1.msra.mxu0 0.0
    %852 = vmatprep.subr.mxu0 0.0
    %853 = vmatpush1.msra.mxu0 0.0
    %854 = vmatprep.subr.mxu0 0.0
    %855 = vmatpush1.msra.mxu0 0.0
    %856 = vmatprep.subr.mxu0 0.0
    %857 = vmatpush1.msra.mxu0 0.0
    %858 = vmatprep.subr.mxu0 0.0
    %859 = vmatpush1.msra.mxu0 0.0
    %860 = vmatprep.subr.mxu0 0.0
    %861 = vmatpush1.msra.mxu0 0.0
    %862 = vmatprep.mubr.f32.mxu0 0.0
    %863 = vmatmul.mubr.f32.gmra.mrb[0].mxu0 %v796
    %v864 = vpop.f32.mrb[0].mxu0
    %v865 = vadd.f32 0.0, %v864
    %v866 = vpop.f32.mrb[0].mxu0
    %867 = vdwg.mxu0
    %v869 = vsel %vm212, %v789, 0
    %v872 = vsel %vm212, %v865, 0
    %874 = vmatprep.subr.mxu0 0.0
    %875 = vmatpush1.msra.mxu0 %v206
    %876 = vmatprep.subr.mxu0 0.0
    %877 = vmatpush1.msra.mxu0 0.0
    %878 = vmatprep.subr.mxu0 0.0
    %879 = vmatpush1.msra.mxu0 0.0
    %880 = vmatprep.subr.mxu0 0.0
    %881 = vmatpush1.msra.mxu0 0.0
    %882 = vmatprep.subr.mxu0 0.0
    %883 = vmatpush1.msra.mxu0 0.0
    %884 = vmatprep.subr.mxu0 0.0
    %885 = vmatpush1.msra.mxu0 0.0
    %886 = vmatprep.subr.mxu0 0.0
    %887 = vmatpush1.msra.mxu0 0.0
    %888 = vmatprep.subr.mxu0 0.0
    %889 = vmatpush1.msra.mxu0 0.0
    %890 = vmatprep.subr.mxu0 0.0
    %891 = vmatpush1.msra.mxu0 0.0
    %892 = vmatprep.subr.mxu0 0.0
    %893 = vmatpush1.msra.mxu0 0.0
    %894 = vmatprep.subr.mxu0 0.0
    %895 = vmatpush1.msra.mxu0 0.0
    %896 = vmatprep.subr.mxu0 0.0
    %897 = vmatpush1.msra.mxu0 0.0
    %898 = vmatprep.subr.mxu0 0.0
    %899 = vmatpush1.msra.mxu0 0.0
    %900 = vmatprep.subr.mxu0 0.0
    %901 = vmatpush1.msra.mxu0 0.0
    %902 = vmatprep.subr.mxu0 0.0
    %903 = vmatpush1.msra.mxu0 0.0
    %904 = vmatprep.subr.mxu0 0.0
    %905 = vmatpush1.msra.mxu0 0.0
    %906 = vmatprep.subr.mxu0 0.0
    %907 = vmatpush1.msra.mxu0 0.0
    %908 = vmatprep.subr.mxu0 0.0
    %909 = vmatpush1.msra.mxu0 0.0
    %910 = vmatprep.subr.mxu0 0.0
    %911 = vmatpush1.msra.mxu0 0.0
    %912 = vmatprep.subr.mxu0 0.0
    %913 = vmatpush1.msra.mxu0 0.0
    %914 = vmatprep.subr.mxu0 0.0
    %915 = vmatpush1.msra.mxu0 0.0
    %916 = vmatprep.subr.mxu0 0.0
    %917 = vmatpush1.msra.mxu0 0.0
    %918 = vmatprep.subr.mxu0 0.0
    %919 = vmatpush1.msra.mxu0 0.0
    %920 = vmatprep.subr.mxu0 0.0
    %921 = vmatpush1.msra.mxu0 0.0
    %922 = vmatprep.subr.mxu0 0.0
    %923 = vmatpush1.msra.mxu0 0.0
    %924 = vmatprep.subr.mxu0 0.0
    %925 = vmatpush1.msra.mxu0 0.0
    %926 = vmatprep.subr.mxu0 0.0
    %927 = vmatpush1.msra.mxu0 0.0
    %928 = vmatprep.subr.mxu0 0.0
    %929 = vmatpush1.msra.mxu0 0.0
    %930 = vmatprep.subr.mxu0 0.0
    %931 = vmatpush1.msra.mxu0 0.0
    %932 = vmatprep.subr.mxu0 0.0
    %933 = vmatpush1.msra.mxu0 0.0
    %934 = vmatprep.subr.mxu0 0.0
    %935 = vmatpush1.msra.mxu0 0.0
    %936 = vmatprep.subr.mxu0 0.0
    %937 = vmatpush1.msra.mxu0 0.0
    %938 = vmatprep.mubr.f32.mxu0 0.0
    %939 = vmatmul.mubr.f32.gmra.mrb[0].mxu0 %v869
    %v940 = vpop.f32.mrb[0].mxu0
    %v941 = vadd.f32 0.0, %v940
    %v942 = vpop.f32.mrb[0].mxu0
    %943 = vmatprep.mubr.f32.mxu0 0.0
    %944 = vmatmul.mubr.f32.gmra.mrb[0].mxu0 %v872
    %v945 = vpop.f32.mrb[0].mxu0
    %v946 = vadd.f32 0.0, %v945
    %v947 = vpop.f32.mrb[0].mxu0
    %948 = vdwg.mxu0
    %v950 = vsel %vm212, %v459, 0
    %v953 = vsel %vm212, %v535, 0
    %955 = vmatprep.subr.mxu0 0.0
    %956 = vmatpush1.msra.mxu0 %v205
    %957 = vmatprep.subr.mxu0 0.0
    %958 = vmatpush1.msra.mxu0 0.0
    %959 = vmatprep.subr.mxu0 0.0
    %960 = vmatpush1.msra.mxu0 0.0
    %961 = vmatprep.subr.mxu0 0.0
    %962 = vmatpush1.msra.mxu0 0.0
    %963 = vmatprep.subr.mxu0 0.0
    %964 = vmatpush1.msra.mxu0 0.0
    %965 = vmatprep.subr.mxu0 0.0
    %966 = vmatpush1.msra.mxu0 0.0
    %967 = vmatprep.subr.mxu0 0.0
    %968 = vmatpush1.msra.mxu0 0.0
    %969 = vmatprep.subr.mxu0 0.0
    %970 = vmatpush1.msra.mxu0 0.0
    %971 = vmatprep.subr.mxu0 0.0
    %972 = vmatpush1.msra.mxu0 0.0
    %973 = vmatprep.subr.mxu0 0.0
    %974 = vmatpush1.msra.mxu0 0.0
    %975 = vmatprep.subr.mxu0 0.0
    %976 = vmatpush1.msra.mxu0 0.0
    %977 = vmatprep.subr.mxu0 0.0
    %978 = vmatpush1.msra.mxu0 0.0
    %979 = vmatprep.subr.mxu0 0.0
    %980 = vmatpush1.msra.mxu0 0.0
    %981 = vmatprep.subr.mxu0 0.0
    %982 = vmatpush1.msra.mxu0 0.0
    %983 = vmatprep.subr.mxu0 0.0
    %984 = vmatpush1.msra.mxu0 0.0
    %985 = vmatprep.subr.mxu0 0.0
    %986 = vmatpush1.msra.mxu0 0.0
    %987 = vmatprep.subr.mxu0 0.0
    %988 = vmatpush1.msra.mxu0 0.0
    %989 = vmatprep.subr.mxu0 0.0
    %990 = vmatpush1.msra.mxu0 0.0
    %991 = vmatprep.subr.mxu0 0.0
    %992 = vmatpush1.msra.mxu0 0.0
    %993 = vmatprep.subr.mxu0 0.0
    %994 = vmatpush1.msra.mxu0 0.0
    %995 = vmatprep.subr.mxu0 0.0
    %996 = vmatpush1.msra.mxu0 0.0
    %997 = vmatprep.subr.mxu0 0.0
    %998 = vmatpush1.msra.mxu0 0.0
    %999 = vmatprep.subr.mxu0 0.0
    %1000 = vmatpush1.msra.mxu0 0.0
    %1001 = vmatprep.subr.mxu0 0.0
    %1002 = vmatpush1.msra.mxu0 0.0
    %1003 = vmatprep.subr.mxu0 0.0
    %1004 = vmatpush1.msra.mxu0 0.0
    %1005 = vmatprep.subr.mxu0 0.0
    %1006 = vmatpush1.msra.mxu0 0.0
    %1007 = vmatprep.subr.mxu0 0.0
    %1008 = vmatpush1.msra.mxu0 0.0
    %1009 = vmatprep.subr.mxu0 0.0
    %1010 = vmatpush1.msra.mxu0 0.0
    %1011 = vmatprep.subr.mxu0 0.0
    %1012 = vmatpush1.msra.mxu0 0.0
    %1013 = vmatprep.subr.mxu0 0.0
    %1014 = vmatpush1.msra.mxu0 0.0
    %1015 = vmatprep.subr.mxu0 0.0
    %1016 = vmatpush1.msra.mxu0 0.0
    %1017 = vmatprep.subr.mxu0 0.0
    %1018 = vmatpush1.msra.mxu0 0.0
    %1019 = vmatprep.mubr.f32.mxu0 0.0
    %1020 = vmatmul.mubr.f32.gmra.mrb[0].mxu0 %v950
    %v1021 = vpop.f32.mrb[0].mxu0
    %v1022 = vadd.f32 %v941, %v1021
    %v1023 = vpop.f32.mrb[0].mxu0
    %1024 = vmatprep.mubr.f32.mxu0 0.0
    %1025 = vmatmul.mubr.f32.gmra.mrb[0].mxu0 %v953
    %v1026 = vpop.f32.mrb[0].mxu0
    %v1027 = vadd.f32 %v946, %v1026
    %v1028 = vpop.f32.mrb[0].mxu0
    %1029 = vdwg.mxu0
    %1030 = vrot.lane.b32.xlu0 %v197, 112
    %v1031 = vpop.permute.xlu0 %1030
    %1032 = vrot.lane.b32.xlu0 %v197, 80
    %v1033 = vpop.permute.xlu0 %1032
    %v1034 = vsel %vm212, %v1031, 0
    %v1036 = vsel %vm212, %v1033, 0
    %1038 = vmatprep.subr.mxu0 0.0
    %1039 = vmatpush1.xpose.msra.mxu0 %v1036
    %1040 = vmatprep.subr.mxu0 0.0
    %1041 = vmatpush1.xpose.msra.mxu0 0.0
    %1042 = vmatprep.subr.mxu0 0.0
    %1043 = vmatpush1.xpose.msra.mxu0 0.0
    %1044 = vmatprep.subr.mxu0 0.0
    %1045 = vmatpush1.xpose.msra.mxu0 0.0
    %1046 = vmatprep.subr.mxu0 0.0
    %1047 = vmatpush1.xpose.msra.mxu0 0.0
    %1048 = vmatprep.subr.mxu0 0.0
    %1049 = vmatpush1.xpose.msra.mxu0 0.0
    %1050 = vmatprep.subr.mxu0 0.0
    %1051 = vmatpush1.xpose.msra.mxu0 0.0
    %1052 = vmatprep.subr.mxu0 0.0
    %1053 = vmatpush1.xpose.msra.mxu0 0.0
    %1054 = vmatprep.subr.mxu0 0.0
    %1055 = vmatpush1.xpose.msra.mxu0 0.0
    %1056 = vmatprep.subr.mxu0 0.0
    %1057 = vmatpush1.xpose.msra.mxu0 0.0
    %1058 = vmatprep.subr.mxu0 0.0
    %1059 = vmatpush1.xpose.msra.mxu0 0.0
    %1060 = vmatprep.subr.mxu0 0.0
    %1061 = vmatpush1.xpose.msra.mxu0 0.0
    %1062 = vmatprep.subr.mxu0 0.0
    %1063 = vmatpush1.xpose.msra.mxu0 0.0
    %1064 = vmatprep.subr.mxu0 0.0
    %1065 = vmatpush1.xpose.msra.mxu0 0.0
    %1066 = vmatprep.subr.mxu0 0.0
    %1067 = vmatpush1.xpose.msra.mxu0 0.0
    %1068 = vmatprep.subr.mxu0 0.0
    %1069 = vmatpush1.xpose.msra.mxu0 0.0
    %1070 = vmatprep.subr.mxu0 0.0
    %1071 = vmatpush1.xpose.msra.mxu0 0.0
    %1072 = vmatprep.subr.mxu0 0.0
    %1073 = vmatpush1.xpose.msra.mxu0 0.0
    %1074 = vmatprep.subr.mxu0 0.0
    %1075 = vmatpush1.xpose.msra.mxu0 0.0
    %1076 = vmatprep.subr.mxu0 0.0
    %1077 = vmatpush1.xpose.msra.mxu0 0.0
    %1078 = vmatprep.subr.mxu0 0.0
    %1079 = vmatpush1.xpose.msra.mxu0 0.0
    %1080 = vmatprep.subr.mxu0 0.0
    %1081 = vmatpush1.xpose.msra.mxu0 0.0
    %1082 = vmatprep.subr.mxu0 0.0
    %1083 = vmatpush1.xpose.msra.mxu0 0.0
    %1084 = vmatprep.subr.mxu0 0.0
    %1085 = vmatpush1.xpose.msra.mxu0 0.0
    %1086 = vmatprep.subr.mxu0 0.0
    %1087 = vmatpush1.xpose.msra.mxu0 0.0
    %1088 = vmatprep.subr.mxu0 0.0
    %1089 = vmatpush1.xpose.msra.mxu0 0.0
    %1090 = vmatprep.subr.mxu0 0.0
    %1091 = vmatpush1.xpose.msra.mxu0 0.0
    %1092 = vmatprep.subr.mxu0 0.0
    %1093 = vmatpush1.xpose.msra.mxu0 0.0
    %1094 = vmatprep.subr.mxu0 0.0
    %1095 = vmatpush1.xpose.msra.mxu0 0.0
    %1096 = vmatprep.subr.mxu0 0.0
    %1097 = vmatpush1.xpose.msra.mxu0 0.0
    %1098 = vmatprep.subr.mxu0 0.0
    %1099 = vmatpush1.xpose.msra.mxu0 0.0
    %1100 = vmatprep.subr.mxu0 0.0
    %1101 = vmatpush1.xpose.msra.mxu0 0.0
    %1102 = vmatprep.mubr.f32.mxu0 0.0
    %1103 = vmatmul.mubr.f32.gmra.mrb[0].mxu0 %v1034
    %v1104 = vpop.f32.mrb[0].mxu0
    %v1105 = vadd.f32 0.0, %v1104
    %v1106 = vpop.f32.mrb[0].mxu0
    %1107 = vdwg.mxu0
    %1108 = vrot.lane.b32.xlu0 %v202, 112
    %v1109 = vpop.permute.xlu0 %1108
    %1110 = vrot.lane.b32.xlu0 %v202, 80
    %v1111 = vpop.permute.xlu0 %1110
    %v1112 = vsel %vm212, %v1109, 0
    %v1114 = vsel %vm212, %v1111, 0
    %1116 = vmatprep.subr.mxu0 0.0
    %1117 = vmatpush1.xpose.msra.mxu0 %v1114
    %1118 = vmatprep.subr.mxu0 0.0
    %1119 = vmatpush1.xpose.msra.mxu0 0.0
    %1120 = vmatprep.subr.mxu0 0.0
    %1121 = vmatpush1.xpose.msra.mxu0 0.0
    %1122 = vmatprep.subr.mxu0 0.0
    %1123 = vmatpush1.xpose.msra.mxu0 0.0
    %1124 = vmatprep.subr.mxu0 0.0
    %1125 = vmatpush1.xpose.msra.mxu0 0.0
    %1126 = vmatprep.subr.mxu0 0.0
    %1127 = vmatpush1.xpose.msra.mxu0 0.0
    %1128 = vmatprep.subr.mxu0 0.0
    %1129 = vmatpush1.xpose.msra.mxu0 0.0
    %1130 = vmatprep.subr.mxu0 0.0
    %1131 = vmatpush1.xpose.msra.mxu0 0.0
    %1132 = vmatprep.subr.mxu0 0.0
    %1133 = vmatpush1.xpose.msra.mxu0 0.0
    %1134 = vmatprep.subr.mxu0 0.0
    %1135 = vmatpush1.xpose.msra.mxu0 0.0
    %1136 = vmatprep.subr.mxu0 0.0
    %1137 = vmatpush1.xpose.msra.mxu0 0.0
    %1138 = vmatprep.subr.mxu0 0.0
    %1139 = vmatpush1.xpose.msra.mxu0 0.0
    %1140 = vmatprep.subr.mxu0 0.0
    %1141 = vmatpush1.xpose.msra.mxu0 0.0
    %1142 = vmatprep.subr.mxu0 0.0
    %1143 = vmatpush1.xpose.msra.mxu0 0.0
    %1144 = vmatprep.subr.mxu0 0.0
    %1145 = vmatpush1.xpose.msra.mxu0 0.0
    %1146 = vmatprep.subr.mxu0 0.0
    %1147 = vmatpush1.xpose.msra.mxu0 0.0
    %1148 = vmatprep.subr.mxu0 0.0
    %1149 = vmatpush1.xpose.msra.mxu0 0.0
    %1150 = vmatprep.subr.mxu0 0.0
    %1151 = vmatpush1.xpose.msra.mxu0 0.0
    %1152 = vmatprep.subr.mxu0 0.0
    %1153 = vmatpush1.xpose.msra.mxu0 0.0
    %1154 = vmatprep.subr.mxu0 0.0
    %1155 = vmatpush1.xpose.msra.mxu0 0.0
    %1156 = vmatprep.subr.mxu0 0.0
    %1157 = vmatpush1.xpose.msra.mxu0 0.0
    %1158 = vmatprep.subr.mxu0 0.0
    %1159 = vmatpush1.xpose.msra.mxu0 0.0
    %1160 = vmatprep.subr.mxu0 0.0
    %1161 = vmatpush1.xpose.msra.mxu0 0.0
    %1162 = vmatprep.subr.mxu0 0.0
    %1163 = vmatpush1.xpose.msra.mxu0 0.0
    %1164 = vmatprep.subr.mxu0 0.0
    %1165 = vmatpush1.xpose.msra.mxu0 0.0
    %1166 = vmatprep.subr.mxu0 0.0
    %1167 = vmatpush1.xpose.msra.mxu0 0.0
    %1168 = vmatprep.subr.mxu0 0.0
    %1169 = vmatpush1.xpose.msra.mxu0 0.0
    %1170 = vmatprep.subr.mxu0 0.0
    %1171 = vmatpush1.xpose.msra.mxu0 0.0
    %1172 = vmatprep.subr.mxu0 0.0
    %1173 = vmatpush1.xpose.msra.mxu0 0.0
    %1174 = vmatprep.subr.mxu0 0.0
    %1175 = vmatpush1.xpose.msra.mxu0 0.0
    %1176 = vmatprep.subr.mxu0 0.0
    %1177 = vmatpush1.xpose.msra.mxu0 0.0
    %1178 = vmatprep.subr.mxu0 0.0
    %1179 = vmatpush1.xpose.msra.mxu0 0.0
    %1180 = vmatprep.mubr.f32.mxu0 0.0
    %1181 = vmatmul.mubr.f32.gmra.mrb[0].mxu0 %v1112
    %v1182 = vpop.f32.mrb[0].mxu0
    %v1183 = vadd.f32 0.0, %v1182
    %v1184 = vpop.f32.mrb[0].mxu0
    %1185 = vdwg.mxu0
    %v1186 = vsel %vm212, %v1105, -inf
    %1187 = vmax.xlane.f32.xlu0 %v1186
    %v1188 = vpop.xlane.xlu0 %1187
    %v1189 = vsel %vm212, %v1183, -inf
    %1190 = vmax.xlane.f32.xlu0 %v1189
    %v1191 = vpop.xlane.xlu0 %1190
    %v1192 = vsub.f32 %v1105, %v1188
    %v1193 = vsub.f32 %v1183, %v1191
    %v1194 = vmul.f32 %v1192, 1.442695
    %v1195 = vpow.pop %v1194
    %v1196 = vmul.f32 %v1193, 1.442695
    %v1197 = vpow.pop %v1196
    %v1198 = vsel %vm212, %v1195, 0.0
    %1199 = vadd.xlane.f32.xlu0 %v1198
    %v1200 = vpop.xlane.xlu0 %1199
    %v1201 = vsel %vm212, %v1197, 0.0
    %1202 = vadd.xlane.f32.xlu0 %v1201
    %v1203 = vpop.xlane.xlu0 %1202
    %v1204 = vrcp.pop %v1200
    %v1205 = vrcp.pop %v1203
    %v1206 = vmul.f32 %v1195, %v1204
    %v1207 = vmul.f32 %v1197, %v1205
    %1208 = vrot.lane.b32.xlu0 %v197, 48
    %v1209 = vpop.permute.xlu0 %1208
    %v1212 = vsel %vm212, %v1206, 0
    %1214 = vmatprep.subr.mxu0 0.0
    %1215 = vmatpush1.msra.mxu0 %v1209
    %1216 = vmatprep.subr.mxu0 0.0
    %1217 = vmatpush1.msra.mxu0 0.0
    %1218 = vmatprep.subr.mxu0 0.0
    %1219 = vmatpush1.msra.mxu0 0.0
    %1220 = vmatprep.subr.mxu0 0.0
    %1221 = vmatpush1.msra.mxu0 0.0
    %1222 = vmatprep.subr.mxu0 0.0
    %1223 = vmatpush1.msra.mxu0 0.0
    %1224 = vmatprep.subr.mxu0 0.0
    %1225 = vmatpush1.msra.mxu0 0.0
    %1226 = vmatprep.subr.mxu0 0.0
    %1227 = vmatpush1.msra.mxu0 0.0
    %1228 = vmatprep.subr.mxu0 0.0
    %1229 = vmatpush1.msra.mxu0 0.0
    %1230 = vmatprep.subr.mxu0 0.0
    %1231 = vmatpush1.msra.mxu0 0.0
    %1232 = vmatprep.subr.mxu0 0.0
    %1233 = vmatpush1.msra.mxu0 0.0
    %1234 = vmatprep.subr.mxu0 0.0
    %1235 = vmatpush1.msra.mxu0 0.0
    %1236 = vmatprep.subr.mxu0 0.0
    %1237 = vmatpush1.msra.mxu0 0.0
    %1238 = vmatprep.subr.mxu0 0.0
    %1239 = vmatpush1.msra.mxu0 0.0
    %1240 = vmatprep.subr.mxu0 0.0
    %1241 = vmatpush1.msra.mxu0 0.0
    %1242 = vmatprep.subr.mxu0 0.0
    %1243 = vmatpush1.msra.mxu0 0.0
    %1244 = vmatprep.subr.mxu0 0.0
    %1245 = vmatpush1.msra.mxu0 0.0
    %1246 = vmatprep.subr.mxu0 0.0
    %1247 = vmatpush1.msra.mxu0 0.0
    %1248 = vmatprep.subr.mxu0 0.0
    %1249 = vmatpush1.msra.mxu0 0.0
    %1250 = vmatprep.subr.mxu0 0.0
    %1251 = vmatpush1.msra.mxu0 0.0
    %1252 = vmatprep.subr.mxu0 0.0
    %1253 = vmatpush1.msra.mxu0 0.0
    %1254 = vmatprep.subr.mxu0 0.0
    %1255 = vmatpush1.msra.mxu0 0.0
    %1256 = vmatprep.subr.mxu0 0.0
    %1257 = vmatpush1.msra.mxu0 0.0
    %1258 = vmatprep.subr.mxu0 0.0
    %1259 = vmatpush1.msra.mxu0 0.0
    %1260 = vmatprep.subr.mxu0 0.0
    %1261 = vmatpush1.msra.mxu0 0.0
    %1262 = vmatprep.subr.mxu0 0.0
    %1263 = vmatpush1.msra.mxu0 0.0
    %1264 = vmatprep.subr.mxu0 0.0
    %1265 = vmatpush1.msra.mxu0 0.0
    %1266 = vmatprep.subr.mxu0 0.0
    %1267 = vmatpush1.msra.mxu0 0.0
    %1268 = vmatprep.subr.mxu0 0.0
    %1269 = vmatpush1.msra.mxu0 0.0
    %1270 = vmatprep.subr.mxu0 0.0
    %1271 = vmatpush1.msra.mxu0 0.0
    %1272 = vmatprep.subr.mxu0 0.0
    %1273 = vmatpush1.msra.mxu0 0.0
    %1274 = vmatprep.subr.mxu0 0.0
    %1275 = vmatpush1.msra.mxu0 0.0
    %1276 = vmatprep.subr.mxu0 0.0
    %1277 = vmatpush1.msra.mxu0 0.0
    %1278 = vmatprep.mubr.f32.mxu0 0.0
    %1279 = vmatmul.mubr.f32.gmra.mrb[0].mxu0 %v1212
    %v1280 = vpop.f32.mrb[0].mxu0
    %v1281 = vadd.f32 0.0, %v1280
    %v1282 = vpop.f32.mrb[0].mxu0
    %1283 = vdwg.mxu0
    %1284 = vrot.lane.b32.xlu0 %v202, 48
    %v1285 = vpop.permute.xlu0 %1284
    %v1288 = vsel %vm212, %v1207, 0
    %1290 = vmatprep.subr.mxu0 0.0
    %1291 = vmatpush1.msra.mxu0 %v1285
    %1292 = vmatprep.subr.mxu0 0.0
    %1293 = vmatpush1.msra.mxu0 0.0
    %1294 = vmatprep.subr.mxu0 0.0
    %1295 = vmatpush1.msra.mxu0 0.0
    %1296 = vmatprep.subr.mxu0 0.0
    %1297 = vmatpush1.msra.mxu0 0.0
    %1298 = vmatprep.subr.mxu0 0.0
    %1299 = vmatpush1.msra.mxu0 0.0
    %1300 = vmatprep.subr.mxu0 0.0
    %1301 = vmatpush1.msra.mxu0 0.0
    %1302 = vmatprep.subr.mxu0 0.0
    %1303 = vmatpush1.msra.mxu0 0.0
    %1304 = vmatprep.subr.mxu0 0.0
    %1305 = vmatpush1.msra.mxu0 0.0
    %1306 = vmatprep.subr.mxu0 0.0
    %1307 = vmatpush1.msra.mxu0 0.0
    %1308 = vmatprep.subr.mxu0 0.0
    %1309 = vmatpush1.msra.mxu0 0.0
    %1310 = vmatprep.subr.mxu0 0.0
    %1311 = vmatpush1.msra.mxu0 0.0
    %1312 = vmatprep.subr.mxu0 0.0
    %1313 = vmatpush1.msra.mxu0 0.0
    %1314 = vmatprep.subr.mxu0 0.0
    %1315 = vmatpush1.msra.mxu0 0.0
    %1316 = vmatprep.subr.mxu0 0.0
    %1317 = vmatpush1.msra.mxu0 0.0
    %1318 = vmatprep.subr.mxu0 0.0
    %1319 = vmatpush1.msra.mxu0 0.0
    %1320 = vmatprep.subr.mxu0 0.0
    %1321 = vmatpush1.msra.mxu0 0.0
    %1322 = vmatprep.subr.mxu0 0.0
    %1323 = vmatpush1.msra.mxu0 0.0
    %1324 = vmatprep.subr.mxu0 0.0
    %1325 = vmatpush1.msra.mxu0 0.0
    %1326 = vmatprep.subr.mxu0 0.0
    %1327 = vmatpush1.msra.mxu0 0.0
    %1328 = vmatprep.subr.mxu0 0.0
    %1329 = vmatpush1.msra.mxu0 0.0
    %1330 = vmatprep.subr.mxu0 0.0
    %1331 = vmatpush1.msra.mxu0 0.0
    %1332 = vmatprep.subr.mxu0 0.0
    %1333 = vmatpush1.msra.mxu0 0.0
    %1334 = vmatprep.subr.mxu0 0.0
    %1335 = vmatpush1.msra.mxu0 0.0
    %1336 = vmatprep.subr.mxu0 0.0
    %1337 = vmatpush1.msra.mxu0 0.0
    %1338 = vmatprep.subr.mxu0 0.0
    %1339 = vmatpush1.msra.mxu0 0.0
    %1340 = vmatprep.subr.mxu0 0.0
    %1341 = vmatpush1.msra.mxu0 0.0
    %1342 = vmatprep.subr.mxu0 0.0
    %1343 = vmatpush1.msra.mxu0 0.0
    %1344 = vmatprep.subr.mxu0 0.0
    %1345 = vmatpush1.msra.mxu0 0.0
    %1346 = vmatprep.subr.mxu0 0.0
    %1347 = vmatpush1.msra.mxu0 0.0
    %1348 = vmatprep.subr.mxu0 0.0
    %1349 = vmatpush1.msra.mxu0 0.0
    %1350 = vmatprep.subr.mxu0 0.0
    %1351 = vmatpush1.msra.mxu0 0.0
    %1352 = vmatprep.subr.mxu0 0.0
    %1353 = vmatpush1.msra.mxu0 0.0
    %1354 = vmatprep.mubr.f32.mxu0 0.0
    %1355 = vmatmul.mubr.f32.gmra.mrb[0].mxu0 %v1288
    %v1356 = vpop.f32.mrb[0].mxu0
    %v1357 = vadd.f32 0.0, %v1356
    %v1358 = vpop.f32.mrb[0].mxu0
    %1359 = vdwg.mxu0
    %v1361 = vsel %vm212, %v1281, 0
    %v1364 = vsel %vm212, %v1357, 0
    %1366 = vmatprep.subr.mxu0 0.0
    %1367 = vmatpush1.msra.mxu0 %v207
    %1368 = vmatprep.subr.mxu0 0.0
    %1369 = vmatpush1.msra.mxu0 0.0
    %1370 = vmatprep.subr.mxu0 0.0
    %1371 = vmatpush1.msra.mxu0 0.0
    %1372 = vmatprep.subr.mxu0 0.0
    %1373 = vmatpush1.msra.mxu0 0.0
    %1374 = vmatprep.subr.mxu0 0.0
    %1375 = vmatpush1.msra.mxu0 0.0
    %1376 = vmatprep.subr.mxu0 0.0
    %1377 = vmatpush1.msra.mxu0 0.0
    %1378 = vmatprep.subr.mxu0 0.0
    %1379 = vmatpush1.msra.mxu0 0.0
    %1380 = vmatprep.subr.mxu0 0.0
    %1381 = vmatpush1.msra.mxu0 0.0
    %1382 = vmatprep.subr.mxu0 0.0
    %1383 = vmatpush1.msra.mxu0 0.0
    %1384 = vmatprep.subr.mxu0 0.0
    %1385 = vmatpush1.msra.mxu0 0.0
    %1386 = vmatprep.subr.mxu0 0.0
    %1387 = vmatpush1.msra.mxu0 0.0
    %1388 = vmatprep.subr.mxu0 0.0
    %1389 = vmatpush1.msra.mxu0 0.0
    %1390 = vmatprep.subr.mxu0 0.0
    %1391 = vmatpush1.msra.mxu0 0.0
    %1392 = vmatprep.subr.mxu0 0.0
    %1393 = vmatpush1.msra.mxu0 0.0
    %1394 = vmatprep.subr.mxu0 0.0
    %1395 = vmatpush1.msra.mxu0 0.0
    %1396 = vmatprep.subr.mxu0 0.0
    %1397 = vmatpush1.msra.mxu0 0.0
    %1398 = vmatprep.subr.mxu0 0.0
    %1399 = vmatpush1.msra.mxu0 0.0
    %1400 = vmatprep.subr.mxu0 0.0
    %1401 = vmatpush1.msra.mxu0 0.0
    %1402 = vmatprep.subr.mxu0 0.0
    %1403 = vmatpush1.msra.mxu0 0.0
    %1404 = vmatprep.subr.mxu0 0.0
    %1405 = vmatpush1.msra.mxu0 0.0
    %1406 = vmatprep.subr.mxu0 0.0
    %1407 = vmatpush1.msra.mxu0 0.0
    %1408 = vmatprep.subr.mxu0 0.0
    %1409 = vmatpush1.msra.mxu0 0.0
    %1410 = vmatprep.subr.mxu0 0.0
    %1411 = vmatpush1.msra.mxu0 0.0
    %1412 = vmatprep.subr.mxu0 0.0
    %1413 = vmatpush1.msra.mxu0 0.0
    %1414 = vmatprep.subr.mxu0 0.0
    %1415 = vmatpush1.msra.mxu0 0.0
    %1416 = vmatprep.subr.mxu0 0.0
    %1417 = vmatpush1.msra.mxu0 0.0
    %1418 = vmatprep.subr.mxu0 0.0
    %1419 = vmatpush1.msra.mxu0 0.0
    %1420 = vmatprep.subr.mxu0 0.0
    %1421 = vmatpush1.msra.mxu0 0.0
    %1422 = vmatprep.subr.mxu0 0.0
    %1423 = vmatpush1.msra.mxu0 0.0
    %1424 = vmatprep.subr.mxu0 0.0
    %1425 = vmatpush1.msra.mxu0 0.0
    %1426 = vmatprep.subr.mxu0 0.0
    %1427 = vmatpush1.msra.mxu0 0.0
    %1428 = vmatprep.subr.mxu0 0.0
    %1429 = vmatpush1.msra.mxu0 0.0
    %1430 = vmatprep.mubr.f32.mxu0 0.0
    %1431 = vmatmul.mubr.f32.gmra.mrb[0].mxu0 %v1361
    %v1432 = vpop.f32.mrb[0].mxu0
    %v1433 = vadd.f32 0.0, %v1432
    %v1434 = vpop.f32.mrb[0].mxu0
    %1435 = vmatprep.mubr.f32.mxu0 0.0
    %1436 = vmatmul.mubr.f32.gmra.mrb[0].mxu0 %v1364
    %v1437 = vpop.f32.mrb[0].mxu0
    %v1438 = vadd.f32 0.0, %v1437
    %v1439 = vpop.f32.mrb[0].mxu0
    %1440 = vdwg.mxu0
    %v1441 = vadd.f32 %v1022, %v1433
    %v1442 = vadd.f32 %v1027, %v1438
    %1443 = vrot.lane.b32.xlu0 %v197, 104
    %v1444 = vpop.permute.xlu0 %1443
    %1445 = vrot.lane.b32.xlu0 %v197, 72
    %v1446 = vpop.permute.xlu0 %1445
    %v1447 = vsel %vm212, %v1444, 0
    %v1449 = vsel %vm212, %v1446, 0
    %1451 = vmatprep.subr.mxu0 0.0
    %1452 = vmatpush1.xpose.msra.mxu0 %v1449
    %1453 = vmatprep.subr.mxu0 0.0
    %1454 = vmatpush1.xpose.msra.mxu0 0.0
    %1455 = vmatprep.subr.mxu0 0.0
    %1456 = vmatpush1.xpose.msra.mxu0 0.0
    %1457 = vmatprep.subr.mxu0 0.0
    %1458 = vmatpush1.xpose.msra.mxu0 0.0
    %1459 = vmatprep.subr.mxu0 0.0
    %1460 = vmatpush1.xpose.msra.mxu0 0.0
    %1461 = vmatprep.subr.mxu0 0.0
    %1462 = vmatpush1.xpose.msra.mxu0 0.0
    %1463 = vmatprep.subr.mxu0 0.0
    %1464 = vmatpush1.xpose.msra.mxu0 0.0
    %1465 = vmatprep.subr.mxu0 0.0
    %1466 = vmatpush1.xpose.msra.mxu0 0.0
    %1467 = vmatprep.subr.mxu0 0.0
    %1468 = vmatpush1.xpose.msra.mxu0 0.0
    %1469 = vmatprep.subr.mxu0 0.0
    %1470 = vmatpush1.xpose.msra.mxu0 0.0
    %1471 = vmatprep.subr.mxu0 0.0
    %1472 = vmatpush1.xpose.msra.mxu0 0.0
    %1473 = vmatprep.subr.mxu0 0.0
    %1474 = vmatpush1.xpose.msra.mxu0 0.0
    %1475 = vmatprep.subr.mxu0 0.0
    %1476 = vmatpush1.xpose.msra.mxu0 0.0
    %1477 = vmatprep.subr.mxu0 0.0
    %1478 = vmatpush1.xpose.msra.mxu0 0.0
    %1479 = vmatprep.subr.mxu0 0.0
    %1480 = vmatpush1.xpose.msra.mxu0 0.0
    %1481 = vmatprep.subr.mxu0 0.0
    %1482 = vmatpush1.xpose.msra.mxu0 0.0
    %1483 = vmatprep.subr.mxu0 0.0
    %1484 = vmatpush1.xpose.msra.mxu0 0.0
    %1485 = vmatprep.subr.mxu0 0.0
    %1486 = vmatpush1.xpose.msra.mxu0 0.0
    %1487 = vmatprep.subr.mxu0 0.0
    %1488 = vmatpush1.xpose.msra.mxu0 0.0
    %1489 = vmatprep.subr.mxu0 0.0
    %1490 = vmatpush1.xpose.msra.mxu0 0.0
    %1491 = vmatprep.subr.mxu0 0.0
    %1492 = vmatpush1.xpose.msra.mxu0 0.0
    %1493 = vmatprep.subr.mxu0 0.0
    %1494 = vmatpush1.xpose.msra.mxu0 0.0
    %1495 = vmatprep.subr.mxu0 0.0
    %1496 = vmatpush1.xpose.msra.mxu0 0.0
    %1497 = vmatprep.subr.mxu0 0.0
    %1498 = vmatpush1.xpose.msra.mxu0 0.0
    %1499 = vmatprep.subr.mxu0 0.0
    %1500 = vmatpush1.xpose.msra.mxu0 0.0
    %1501 = vmatprep.subr.mxu0 0.0
    %1502 = vmatpush1.xpose.msra.mxu0 0.0
    %1503 = vmatprep.subr.mxu0 0.0
    %1504 = vmatpush1.xpose.msra.mxu0 0.0
    %1505 = vmatprep.subr.mxu0 0.0
    %1506 = vmatpush1.xpose.msra.mxu0 0.0
    %1507 = vmatprep.subr.mxu0 0.0
    %1508 = vmatpush1.xpose.msra.mxu0 0.0
    %1509 = vmatprep.subr.mxu0 0.0
    %1510 = vmatpush1.xpose.msra.mxu0 0.0
    %1511 = vmatprep.subr.mxu0 0.0
    %1512 = vmatpush1.xpose.msra.mxu0 0.0
    %1513 = vmatprep.subr.mxu0 0.0
    %1514 = vmatpush1.xpose.msra.mxu0 0.0
    %1515 = vmatprep.mubr.f32.mxu0 0.0
    %1516 = vmatmul.mubr.f32.gmra.mrb[0].mxu0 %v1447
    %v1517 = vpop.f32.mrb[0].mxu0
    %v1518 = vadd.f32 0.0, %v1517
    %v1519 = vpop.f32.mrb[0].mxu0
    %1520 = vdwg.mxu0
    %1521 = vrot.lane.b32.xlu0 %v202, 104
    %v1522 = vpop.permute.xlu0 %1521
    %1523 = vrot.lane.b32.xlu0 %v202, 72
    %v1524 = vpop.permute.xlu0 %1523
    %v1525 = vsel %vm212, %v1522, 0
    %v1527 = vsel %vm212, %v1524, 0
    %1529 = vmatprep.subr.mxu0 0.0
    %1530 = vmatpush1.xpose.msra.mxu0 %v1527
    %1531 = vmatprep.subr.mxu0 0.0
    %1532 = vmatpush1.xpose.msra.mxu0 0.0
    %1533 = vmatprep.subr.mxu0 0.0
    %1534 = vmatpush1.xpose.msra.mxu0 0.0
    %1535 = vmatprep.subr.mxu0 0.0
    %1536 = vmatpush1.xpose.msra.mxu0 0.0
    %1537 = vmatprep.subr.mxu0 0.0
    %1538 = vmatpush1.xpose.msra.mxu0 0.0
    %1539 = vmatprep.subr.mxu0 0.0
    %1540 = vmatpush1.xpose.msra.mxu0 0.0
    %1541 = vmatprep.subr.mxu0 0.0
    %1542 = vmatpush1.xpose.msra.mxu0 0.0
    %1543 = vmatprep.subr.mxu0 0.0
    %1544 = vmatpush1.xpose.msra.mxu0 0.0
    %1545 = vmatprep.subr.mxu0 0.0
    %1546 = vmatpush1.xpose.msra.mxu0 0.0
    %1547 = vmatprep.subr.mxu0 0.0
    %1548 = vmatpush1.xpose.msra.mxu0 0.0
    %1549 = vmatprep.subr.mxu0 0.0
    %1550 = vmatpush1.xpose.msra.mxu0 0.0
    %1551 = vmatprep.subr.mxu0 0.0
    %1552 = vmatpush1.xpose.msra.mxu0 0.0
    %1553 = vmatprep.subr.mxu0 0.0
    %1554 = vmatpush1.xpose.msra.mxu0 0.0
    %1555 = vmatprep.subr.mxu0 0.0
    %1556 = vmatpush1.xpose.msra.mxu0 0.0
    %1557 = vmatprep.subr.mxu0 0.0
    %1558 = vmatpush1.xpose.msra.mxu0 0.0
    %1559 = vmatprep.subr.mxu0 0.0
    %1560 = vmatpush1.xpose.msra.mxu0 0.0
    %1561 = vmatprep.subr.mxu0 0.0
    %1562 = vmatpush1.xpose.msra.mxu0 0.0
    %1563 = vmatprep.subr.mxu0 0.0
    %1564 = vmatpush1.xpose.msra.mxu0 0.0
    %1565 = vmatprep.subr.mxu0 0.0
    %1566 = vmatpush1.xpose.msra.mxu0 0.0
    %1567 = vmatprep.subr.mxu0 0.0
    %1568 = vmatpush1.xpose.msra.mxu0 0.0
    %1569 = vmatprep.subr.mxu0 0.0
    %1570 = vmatpush1.xpose.msra.mxu0 0.0
    %1571 = vmatprep.subr.mxu0 0.0
    %1572 = vmatpush1.xpose.msra.mxu0 0.0
    %1573 = vmatprep.subr.mxu0 0.0
    %1574 = vmatpush1.xpose.msra.mxu0 0.0
    %1575 = vmatprep.subr.mxu0 0.0
    %1576 = vmatpush1.xpose.msra.mxu0 0.0
    %1577 = vmatprep.subr.mxu0 0.0
    %1578 = vmatpush1.xpose.msra.mxu0 0.0
    %1579 = vmatprep.subr.mxu0 0.0
    %1580 = vmatpush1.xpose.msra.mxu0 0.0
    %1581 = vmatprep.subr.mxu0 0.0
    %1582 = vmatpush1.xpose.msra.mxu0 0.0
    %1583 = vmatprep.subr.mxu0 0.0
    %1584 = vmatpush1.xpose.msra.mxu0 0.0
    %1585 = vmatprep.subr.mxu0 0.0
    %1586 = vmatpush1.xpose.msra.mxu0 0.0
    %1587 = vmatprep.subr.mxu0 0.0
    %1588 = vmatpush1.xpose.msra.mxu0 0.0
    %1589 = vmatprep.subr.mxu0 0.0
    %1590 = vmatpush1.xpose.msra.mxu0 0.0
    %1591 = vmatprep.subr.mxu0 0.0
    %1592 = vmatpush1.xpose.msra.mxu0 0.0
    %1593 = vmatprep.mubr.f32.mxu0 0.0
    %1594 = vmatmul.mubr.f32.gmra.mrb[0].mxu0 %v1525
    %v1595 = vpop.f32.mrb[0].mxu0
    %v1596 = vadd.f32 0.0, %v1595
    %v1597 = vpop.f32.mrb[0].mxu0
    %1598 = vdwg.mxu0
    %v1599 = vsel %vm212, %v1518, -inf
    %1600 = vmax.xlane.f32.xlu0 %v1599
    %v1601 = vpop.xlane.xlu0 %1600
    %v1602 = vsel %vm212, %v1596, -inf
    %1603 = vmax.xlane.f32.xlu0 %v1602
    %v1604 = vpop.xlane.xlu0 %1603
    %v1605 = vsub.f32 %v1518, %v1601
    %v1606 = vsub.f32 %v1596, %v1604
    %v1607 = vmul.f32 %v1605, 1.442695
    %v1608 = vpow.pop %v1607
    %v1609 = vmul.f32 %v1606, 1.442695
    %v1610 = vpow.pop %v1609
    %v1611 = vsel %vm212, %v1608, 0.0
    %1612 = vadd.xlane.f32.xlu0 %v1611
    %v1613 = vpop.xlane.xlu0 %1612
    %v1614 = vsel %vm212, %v1610, 0.0
    %1615 = vadd.xlane.f32.xlu0 %v1614
    %v1616 = vpop.xlane.xlu0 %1615
    %v1617 = vrcp.pop %v1613
    %v1618 = vrcp.pop %v1616
    %v1619 = vmul.f32 %v1608, %v1617
    %v1620 = vmul.f32 %v1610, %v1618
    %1621 = vrot.lane.b32.xlu0 %v197, 40
    %v1622 = vpop.permute.xlu0 %1621
    %v1625 = vsel %vm212, %v1619, 0
    %1627 = vmatprep.subr.mxu0 0.0
    %1628 = vmatpush1.msra.mxu0 %v1622
    %1629 = vmatprep.subr.mxu0 0.0
    %1630 = vmatpush1.msra.mxu0 0.0
    %1631 = vmatprep.subr.mxu0 0.0
    %1632 = vmatpush1.msra.mxu0 0.0
    %1633 = vmatprep.subr.mxu0 0.0
    %1634 = vmatpush1.msra.mxu0 0.0
    %1635 = vmatprep.subr.mxu0 0.0
    %1636 = vmatpush1.msra.mxu0 0.0
    %1637 = vmatprep.subr.mxu0 0.0
    %1638 = vmatpush1.msra.mxu0 0.0
    %1639 = vmatprep.subr.mxu0 0.0
    %1640 = vmatpush1.msra.mxu0 0.0
    %1641 = vmatprep.subr.mxu0 0.0
    %1642 = vmatpush1.msra.mxu0 0.0
    %1643 = vmatprep.subr.mxu0 0.0
    %1644 = vmatpush1.msra.mxu0 0.0
    %1645 = vmatprep.subr.mxu0 0.0
    %1646 = vmatpush1.msra.mxu0 0.0
    %1647 = vmatprep.subr.mxu0 0.0
    %1648 = vmatpush1.msra.mxu0 0.0
    %1649 = vmatprep.subr.mxu0 0.0
    %1650 = vmatpush1.msra.mxu0 0.0
    %1651 = vmatprep.subr.mxu0 0.0
    %1652 = vmatpush1.msra.mxu0 0.0
    %1653 = vmatprep.subr.mxu0 0.0
    %1654 = vmatpush1.msra.mxu0 0.0
    %1655 = vmatprep.subr.mxu0 0.0
    %1656 = vmatpush1.msra.mxu0 0.0
    %1657 = vmatprep.subr.mxu0 0.0
    %1658 = vmatpush1.msra.mxu0 0.0
    %1659 = vmatprep.subr.mxu0 0.0
    %1660 = vmatpush1.msra.mxu0 0.0
    %1661 = vmatprep.subr.mxu0 0.0
    %1662 = vmatpush1.msra.mxu0 0.0
    %1663 = vmatprep.subr.mxu0 0.0
    %1664 = vmatpush1.msra.mxu0 0.0
    %1665 = vmatprep.subr.mxu0 0.0
    %1666 = vmatpush1.msra.mxu0 0.0
    %1667 = vmatprep.subr.mxu0 0.0
    %1668 = vmatpush1.msra.mxu0 0.0
    %1669 = vmatprep.subr.mxu0 0.0
    %1670 = vmatpush1.msra.mxu0 0.0
    %1671 = vmatprep.subr.mxu0 0.0
    %1672 = vmatpush1.msra.mxu0 0.0
    %1673 = vmatprep.subr.mxu0 0.0
    %1674 = vmatpush1.msra.mxu0 0.0
    %1675 = vmatprep.subr.mxu0 0.0
    %1676 = vmatpush1.msra.mxu0 0.0
    %1677 = vmatprep.subr.mxu0 0.0
    %1678 = vmatpush1.msra.mxu0 0.0
    %1679 = vmatprep.subr.mxu0 0.0
    %1680 = vmatpush1.msra.mxu0 0.0
    %1681 = vmatprep.subr.mxu0 0.0
    %1682 = vmatpush1.msra.mxu0 0.0
    %1683 = vmatprep.subr.mxu0 0.0
    %1684 = vmatpush1.msra.mxu0 0.0
    %1685 = vmatprep.subr.mxu0 0.0
    %1686 = vmatpush1.msra.mxu0 0.0
    %1687 = vmatprep.subr.mxu0 0.0
    %1688 = vmatpush1.msra.mxu0 0.0
    %1689 = vmatprep.subr.mxu0 0.0
    %1690 = vmatpush1.msra.mxu0 0.0
    %1691 = vmatprep.mubr.f32.mxu0 0.0
    %1692 = vmatmul.mubr.f32.gmra.mrb[0].mxu0 %v1625
    %v1693 = vpop.f32.mrb[0].mxu0
    %v1694 = vadd.f32 0.0, %v1693
    %v1695 = vpop.f32.mrb[0].mxu0
    %1696 = vdwg.mxu0
    %1697 = vrot.lane.b32.xlu0 %v202, 40
    %v1698 = vpop.permute.xlu0 %1697
    %v1701 = vsel %vm212, %v1620, 0
    %1703 = vmatprep.subr.mxu0 0.0
    %1704 = vmatpush1.msra.mxu0 %v1698
    %1705 = vmatprep.subr.mxu0 0.0
    %1706 = vmatpush1.msra.mxu0 0.0
    %1707 = vmatprep.subr.mxu0 0.0
    %1708 = vmatpush1.msra.mxu0 0.0
    %1709 = vmatprep.subr.mxu0 0.0
    %1710 = vmatpush1.msra.mxu0 0.0
    %1711 = vmatprep.subr.mxu0 0.0
    %1712 = vmatpush1.msra.mxu0 0.0
    %1713 = vmatprep.subr.mxu0 0.0
    %1714 = vmatpush1.msra.mxu0 0.0
    %1715 = vmatprep.subr.mxu0 0.0
    %1716 = vmatpush1.msra.mxu0 0.0
    %1717 = vmatprep.subr.mxu0 0.0
    %1718 = vmatpush1.msra.mxu0 0.0
    %1719 = vmatprep.subr.mxu0 0.0
    %1720 = vmatpush1.msra.mxu0 0.0
    %1721 = vmatprep.subr.mxu0 0.0
    %1722 = vmatpush1.msra.mxu0 0.0
    %1723 = vmatprep.subr.mxu0 0.0
    %1724 = vmatpush1.msra.mxu0 0.0
    %1725 = vmatprep.subr.mxu0 0.0
    %1726 = vmatpush1.msra.mxu0 0.0
    %1727 = vmatprep.subr.mxu0 0.0
    %1728 = vmatpush1.msra.mxu0 0.0
    %1729 = vmatprep.subr.mxu0 0.0
    %1730 = vmatpush1.msra.mxu0 0.0
    %1731 = vmatprep.subr.mxu0 0.0
    %1732 = vmatpush1.msra.mxu0 0.0
    %1733 = vmatprep.subr.mxu0 0.0
    %1734 = vmatpush1.msra.mxu0 0.0
    %1735 = vmatprep.subr.mxu0 0.0
    %1736 = vmatpush1.msra.mxu0 0.0
    %1737 = vmatprep.subr.mxu0 0.0
    %1738 = vmatpush1.msra.mxu0 0.0
    %1739 = vmatprep.subr.mxu0 0.0
    %1740 = vmatpush1.msra.mxu0 0.0
    %1741 = vmatprep.subr.mxu0 0.0
    %1742 = vmatpush1.msra.mxu0 0.0
    %1743 = vmatprep.subr.mxu0 0.0
    %1744 = vmatpush1.msra.mxu0 0.0
    %1745 = vmatprep.subr.mxu0 0.0
    %1746 = vmatpush1.msra.mxu0 0.0
    %1747 = vmatprep.subr.mxu0 0.0
    %1748 = vmatpush1.msra.mxu0 0.0
    %1749 = vmatprep.subr.mxu0 0.0
    %1750 = vmatpush1.msra.mxu0 0.0
    %1751 = vmatprep.subr.mxu0 0.0
    %1752 = vmatpush1.msra.mxu0 0.0
    %1753 = vmatprep.subr.mxu0 0.0
    %1754 = vmatpush1.msra.mxu0 0.0
    %1755 = vmatprep.subr.mxu0 0.0
    %1756 = vmatpush1.msra.mxu0 0.0
    %1757 = vmatprep.subr.mxu0 0.0
    %1758 = vmatpush1.msra.mxu0 0.0
    %1759 = vmatprep.subr.mxu0 0.0
    %1760 = vmatpush1.msra.mxu0 0.0
    %1761 = vmatprep.subr.mxu0 0.0
    %1762 = vmatpush1.msra.mxu0 0.0
    %1763 = vmatprep.subr.mxu0 0.0
    %1764 = vmatpush1.msra.mxu0 0.0
    %1765 = vmatprep.subr.mxu0 0.0
    %1766 = vmatpush1.msra.mxu0 0.0
    %1767 = vmatprep.mubr.f32.mxu0 0.0
    %1768 = vmatmul.mubr.f32.gmra.mrb[0].mxu0 %v1701
    %v1769 = vpop.f32.mrb[0].mxu0
    %v1770 = vadd.f32 0.0, %v1769
    %v1771 = vpop.f32.mrb[0].mxu0
    %1772 = vdwg.mxu0
    %v1774 = vsel %vm212, %v1694, 0
    %v1777 = vsel %vm212, %v1770, 0
    %1779 = vmatprep.subr.mxu0 0.0
    %1780 = vmatpush1.msra.mxu0 %v208
    %1781 = vmatprep.subr.mxu0 0.0
    %1782 = vmatpush1.msra.mxu0 0.0
    %1783 = vmatprep.subr.mxu0 0.0
    %1784 = vmatpush1.msra.mxu0 0.0
    %1785 = vmatprep.subr.mxu0 0.0
    %1786 = vmatpush1.msra.mxu0 0.0
    %1787 = vmatprep.subr.mxu0 0.0
    %1788 = vmatpush1.msra.mxu0 0.0
    %1789 = vmatprep.subr.mxu0 0.0
    %1790 = vmatpush1.msra.mxu0 0.0
    %1791 = vmatprep.subr.mxu0 0.0
    %1792 = vmatpush1.msra.mxu0 0.0
    %1793 = vmatprep.subr.mxu0 0.0
    %1794 = vmatpush1.msra.mxu0 0.0
    %1795 = vmatprep.subr.mxu0 0.0
    %1796 = vmatpush1.msra.mxu0 0.0
    %1797 = vmatprep.subr.mxu0 0.0
    %1798 = vmatpush1.msra.mxu0 0.0
    %1799 = vmatprep.subr.mxu0 0.0
    %1800 = vmatpush1.msra.mxu0 0.0
    %1801 = vmatprep.subr.mxu0 0.0
    %1802 = vmatpush1.msra.mxu0 0.0
    %1803 = vmatprep.subr.mxu0 0.0
    %1804 = vmatpush1.msra.mxu0 0.0
    %1805 = vmatprep.subr.mxu0 0.0
    %1806 = vmatpush1.msra.mxu0 0.0
    %1807 = vmatprep.subr.mxu0 0.0
    %1808 = vmatpush1.msra.mxu0 0.0
    %1809 = vmatprep.subr.mxu0 0.0
    %1810 = vmatpush1.msra.mxu0 0.0
    %1811 = vmatprep.subr.mxu0 0.0
    %1812 = vmatpush1.msra.mxu0 0.0
    %1813 = vmatprep.subr.mxu0 0.0
    %1814 = vmatpush1.msra.mxu0 0.0
    %1815 = vmatprep.subr.mxu0 0.0
    %1816 = vmatpush1.msra.mxu0 0.0
    %1817 = vmatprep.subr.mxu0 0.0
    %1818 = vmatpush1.msra.mxu0 0.0
    %1819 = vmatprep.subr.mxu0 0.0
    %1820 = vmatpush1.msra.mxu0 0.0
    %1821 = vmatprep.subr.mxu0 0.0
    %1822 = vmatpush1.msra.mxu0 0.0
    %1823 = vmatprep.subr.mxu0 0.0
    %1824 = vmatpush1.msra.mxu0 0.0
    %1825 = vmatprep.subr.mxu0 0.0
    %1826 = vmatpush1.msra.mxu0 0.0
    %1827 = vmatprep.subr.mxu0 0.0
    %1828 = vmatpush1.msra.mxu0 0.0
    %1829 = vmatprep.subr.mxu0 0.0
    %1830 = vmatpush1.msra.mxu0 0.0
    %1831 = vmatprep.subr.mxu0 0.0
    %1832 = vmatpush1.msra.mxu0 0.0
    %1833 = vmatprep.subr.mxu0 0.0
    %1834 = vmatpush1.msra.mxu0 0.0
    %1835 = vmatprep.subr.mxu0 0.0
    %1836 = vmatpush1.msra.mxu0 0.0
    %1837 = vmatprep.subr.mxu0 0.0
    %1838 = vmatpush1.msra.mxu0 0.0
    %1839 = vmatprep.subr.mxu0 0.0
    %1840 = vmatpush1.msra.mxu0 0.0
    %1841 = vmatprep.subr.mxu0 0.0
    %1842 = vmatpush1.msra.mxu0 0.0
    %1843 = vmatprep.mubr.f32.mxu0 0.0
    %1844 = vmatmul.mubr.f32.gmra.mrb[0].mxu0 %v1774
    %v1845 = vpop.f32.mrb[0].mxu0
    %v1846 = vadd.f32 0.0, %v1845
    %v1847 = vpop.f32.mrb[0].mxu0
    %1848 = vmatprep.mubr.f32.mxu0 0.0
    %1849 = vmatmul.mubr.f32.gmra.mrb[0].mxu0 %v1777
    %v1850 = vpop.f32.mrb[0].mxu0
    %v1851 = vadd.f32 0.0, %v1850
    %v1852 = vpop.f32.mrb[0].mxu0
    %1853 = vdwg.mxu0
    %v1854 = vadd.f32 %v1441, %v1846
    %v1855 = vadd.f32 %v1442, %v1851
    %v1856 = vld [vmem:[%s6] sm:$0x1]
    %v1858 = vlaneseq
    %v1859 = vshrl.u32 %v1858, 7
    %v1860 = vsub.s32 0, %v1859
    %v1861 = vrot.slane %v1856, %v1860
    %v1863 = vadd.f32 %v1854, %v1861
    %v1864 = vadd.f32 %v1855, %v1861
    %v1865 = vadd.f32 %v65, %v1863
    %v1866 = vadd.f32 %v66, %v1864
    %v1867 = vld [vmem:[%s7] sm:$0x1]
    %v1868 = vld [vmem:[%s8] sm:$0x1]
    %v1869 = vsel %vm69, %v1865, 0.0
    %1870 = vadd.xlane.f32.xlu0 %v1869
    %v1871 = vpop.xlane.xlu0 %1870
    %v1872 = vsel %vm69, %v1866, 0.0
    %1873 = vadd.xlane.f32.xlu0 %v1872
    %v1874 = vpop.xlane.xlu0 %1873
    %v1875 = vmul.f32 %v1871, %v76
    %v1876 = vmul.f32 %v1874, %v76
    %v1877 = vsub.f32 %v1865, %v1875
    %v1878 = vsub.f32 %v1866, %v1876
    %v1879 = vmul.f32 %v1877, %v1877
    %v1880 = vmul.f32 %v1878, %v1878
    %v1881 = vsel %vm69, %v1879, 0.0
    %1882 = vadd.xlane.f32.xlu0 %v1881
    %v1883 = vpop.xlane.xlu0 %1882
    %v1884 = vsel %vm69, %v1880, 0.0
    %1885 = vadd.xlane.f32.xlu0 %v1884
    %v1886 = vpop.xlane.xlu0 %1885
    %v1887 = vmul.f32 %v1883, %v76
    %v1888 = vmul.f32 %v1886, %v76
    %v1889 = vadd.f32 %v1887, 1e-06
    %v1890 = vadd.f32 %v1888, 1e-06
    %v1891 = vrsqrt.pop %v1889
    %v1892 = vrsqrt.pop %v1890
    %v1893 = vmul.f32 %v1877, %v1891
    %v1894 = vmul.f32 %v1878, %v1892
    %v1896 = vlaneseq
    %v1897 = vshrl.u32 %v1896, 7
    %v1898 = vsub.s32 0, %v1897
    %v1899 = vrot.slane %v1867, %v1898
    %v1901 = vmul.f32 %v1893, %v1899
    %v1902 = vmul.f32 %v1894, %v1899
    %v1904 = vlaneseq
    %v1905 = vshrl.u32 %v1904, 7
    %v1906 = vsub.s32 0, %v1905
    %v1907 = vrot.slane %v1868, %v1906
    %v1909 = vadd.f32 %v1901, %v1907
    %v1910 = vadd.f32 %v1902, %v1907
    %v1911 = vld [vmem:[%s9] sm:$0xff]
    %v1912 = vld [vmem:[%s9 + $0x8] sm:$0xff]
    %v1913 = vld [vmem:[%s9 + $0x10] sm:$0xff]
    %v1914 = vld [vmem:[%s9 + $0x18] sm:$0xff]
    %v1915 = vld [vmem:[%s10] sm:$0x1]
    %v1917 = vlaneseq
    %v1918 = vshrl.u32 %v1917, 7
    %v1919 = vsub.s32 0, %v1918
    %v1920 = vrot.slane %v1915, %v1919
    %v1923 = vsel %vm69, %v1909, 0
    %v1926 = vsel %vm69, %v1910, 0
    %1928 = vmatprep.subr.mxu0 0.0
    %1929 = vmatpush1.msra.mxu0 %v1911
    %1930 = vmatprep.subr.mxu0 0.0
    %1931 = vmatpush1.msra.mxu0 %v1912
    %1932 = vmatprep.subr.mxu0 0.0
    %1933 = vmatpush1.msra.mxu0 %v1913
    %1934 = vmatprep.subr.mxu0 0.0
    %1935 = vmatpush1.msra.mxu0 %v1914
    %1936 = vmatprep.subr.mxu0 0.0
    %1937 = vmatpush1.msra.mxu0 0.0
    %1938 = vmatprep.subr.mxu0 0.0
    %1939 = vmatpush1.msra.mxu0 0.0
    %1940 = vmatprep.subr.mxu0 0.0
    %1941 = vmatpush1.msra.mxu0 0.0
    %1942 = vmatprep.subr.mxu0 0.0
    %1943 = vmatpush1.msra.mxu0 0.0
    %1944 = vmatprep.subr.mxu0 0.0
    %1945 = vmatpush1.msra.mxu0 0.0
    %1946 = vmatprep.subr.mxu0 0.0
    %1947 = vmatpush1.msra.mxu0 0.0
    %1948 = vmatprep.subr.mxu0 0.0
    %1949 = vmatpush1.msra.mxu0 0.0
    %1950 = vmatprep.subr.mxu0 0.0
    %1951 = vmatpush1.msra.mxu0 0.0
    %1952 = vmatprep.subr.mxu0 0.0
    %1953 = vmatpush1.msra.mxu0 0.0
    %1954 = vmatprep.subr.mxu0 0.0
    %1955 = vmatpush1.msra.mxu0 0.0
    %1956 = vmatprep.subr.mxu0 0.0
    %1957 = vmatpush1.msra.mxu0 0.0
    %1958 = vmatprep.subr.mxu0 0.0
    %1959 = vmatpush1.msra.mxu0 0.0
    %1960 = vmatprep.subr.mxu0 0.0
    %1961 = vmatpush1.msra.mxu0 0.0
    %1962 = vmatprep.subr.mxu0 0.0
    %1963 = vmatpush1.msra.mxu0 0.0
    %1964 = vmatprep.subr.mxu0 0.0
    %1965 = vmatpush1.msra.mxu0 0.0
    %1966 = vmatprep.subr.mxu0 0.0
    %1967 = vmatpush1.msra.mxu0 0.0
    %1968 = vmatprep.subr.mxu0 0.0
    %1969 = vmatpush1.msra.mxu0 0.0
    %1970 = vmatprep.subr.mxu0 0.0
    %1971 = vmatpush1.msra.mxu0 0.0
    %1972 = vmatprep.subr.mxu0 0.0
    %1973 = vmatpush1.msra.mxu0 0.0
    %1974 = vmatprep.subr.mxu0 0.0
    %1975 = vmatpush1.msra.mxu0 0.0
    %1976 = vmatprep.subr.mxu0 0.0
    %1977 = vmatpush1.msra.mxu0 0.0
    %1978 = vmatprep.subr.mxu0 0.0
    %1979 = vmatpush1.msra.mxu0 0.0
    %1980 = vmatprep.subr.mxu0 0.0
    %1981 = vmatpush1.msra.mxu0 0.0
    %1982 = vmatprep.subr.mxu0 0.0
    %1983 = vmatpush1.msra.mxu0 0.0
    %1984 = vmatprep.subr.mxu0 0.0
    %1985 = vmatpush1.msra.mxu0 0.0
    %1986 = vmatprep.subr.mxu0 0.0
    %1987 = vmatpush1.msra.mxu0 0.0
    %1988 = vmatprep.subr.mxu0 0.0
    %1989 = vmatpush1.msra.mxu0 0.0
    %1990 = vmatprep.subr.mxu0 0.0
    %1991 = vmatpush1.msra.mxu0 0.0
    %1992 = vmatprep.mubr.f32.mxu0 0.0
    %1993 = vmatmul.mubr.f32.gmra.mrb[0].mxu0 %v1923
    %v1994 = vpop.f32.mrb[0].mxu0
    %v1995 = vadd.f32 %v1920, %v1994
    %v1996 = vpop.f32.mrb[0].mxu0
    %1997 = vmatprep.mubr.f32.mxu0 0.0
    %1998 = vmatmul.mubr.f32.gmra.mrb[0].mxu0 %v1926
    %v1999 = vpop.f32.mrb[0].mxu0
    %v2000 = vadd.f32 %v1920, %v1999
    %v2001 = vpop.f32.mrb[0].mxu0
    %2002 = vdwg.mxu0
    %v2003 = vmul.f32 %v1995, 0.5
    %v2004 = vmul.f32 %v2000, 0.5
    %v2005 = vmul.f32 %v1995, 0.70710677
    %v2006 = vmul.f32 %v2000, 0.70710677
    %v2007 = verf.f32.pop %v2005
    %v2008 = verf.f32.pop %v2006
    %v2009 = vadd.f32 %v2007, 1.0
    %v2010 = vadd.f32 %v2008, 1.0
    %v2011 = vmul.f32 %v2003, %v2009
    %v2012 = vmul.f32 %v2004, %v2010
    %v2013 = vld [vmem:[%s11] sm:$0xff]
    %v2014 = vld [vmem:[%s11 + $0x8] sm:$0xff]
    %v2015 = vld [vmem:[%s11 + $0x10] sm:$0xff]
    %v2016 = vld [vmem:[%s11 + $0x18] sm:$0xff]
    %v2017 = vld [vmem:[%s11 + $0x20] sm:$0xff]
    %v2018 = vld [vmem:[%s11 + $0x28] sm:$0xff]
    %v2019 = vld [vmem:[%s11 + $0x30] sm:$0xff]
    %v2020 = vld [vmem:[%s11 + $0x38] sm:$0xff]
    %v2021 = vld [vmem:[%s12] sm:$0x1]
    %v2023 = vlaneseq
    %v2024 = vshrl.u32 %v2023, 7
    %v2025 = vsub.s32 0, %v2024
    %v2026 = vrot.slane %v2021, %v2025
    %vm2028 = vcmask 523264
    %v2030 = vsel %vm2028, %v2011, 0
    %v2033 = vsel %vm2028, %v2012, 0
    %2035 = vmatprep.subr.mxu0 0.0
    %2036 = vmatpush1.msra.mxu0 %v2013
    %2037 = vmatprep.subr.mxu0 0.0
    %2038 = vmatpush1.msra.mxu0 %v2014
    %2039 = vmatprep.subr.mxu0 0.0
    %2040 = vmatpush1.msra.mxu0 %v2015
    %2041 = vmatprep.subr.mxu0 0.0
    %2042 = vmatpush1.msra.mxu0 %v2016
    %2043 = vmatprep.subr.mxu0 0.0
    %2044 = vmatpush1.msra.mxu0 %v2017
    %2045 = vmatprep.subr.mxu0 0.0
    %2046 = vmatpush1.msra.mxu0 %v2018
    %2047 = vmatprep.subr.mxu0 0.0
    %2048 = vmatpush1.msra.mxu0 %v2019
    %2049 = vmatprep.subr.mxu0 0.0
    %2050 = vmatpush1.msra.mxu0 %v2020
    %2051 = vmatprep.subr.mxu0 0.0
    %2052 = vmatpush1.msra.mxu0 0.0
    %2053 = vmatprep.subr.mxu0 0.0
    %2054 = vmatpush1.msra.mxu0 0.0
    %2055 = vmatprep.subr.mxu0 0.0
    %2056 = vmatpush1.msra.mxu0 0.0
    %2057 = vmatprep.subr.mxu0 0.0
    %2058 = vmatpush1.msra.mxu0 0.0
    %2059 = vmatprep.subr.mxu0 0.0
    %2060 = vmatpush1.msra.mxu0 0.0
    %2061 = vmatprep.subr.mxu0 0.0
    %2062 = vmatpush1.msra.mxu0 0.0
    %2063 = vmatprep.subr.mxu0 0.0
    %2064 = vmatpush1.msra.mxu0 0.0
    %2065 = vmatprep.subr.mxu0 0.0
    %2066 = vmatpush1.msra.mxu0 0.0
    %2067 = vmatprep.subr.mxu0 0.0
    %2068 = vmatpush1.msra.mxu0 0.0
    %2069 = vmatprep.subr.mxu0 0.0
    %2070 = vmatpush1.msra.mxu0 0.0
    %2071 = vmatprep.subr.mxu0 0.0
    %2072 = vmatpush1.msra.mxu0 0.0
    %2073 = vmatprep.subr.mxu0 0.0
    %2074 = vmatpush1.msra.mxu0 0.0
    %2075 = vmatprep.subr.mxu0 0.0
    %2076 = vmatpush1.msra.mxu0 0.0
    %2077 = vmatprep.subr.mxu0 0.0
    %2078 = vmatpush1.msra.mxu0 0.0
    %2079 = vmatprep.subr.mxu0 0.0
    %2080 = vmatpush1.msra.mxu0 0.0
    %2081 = vmatprep.subr.mxu0 0.0
    %2082 = vmatpush1.msra.mxu0 0.0
    %2083 = vmatprep.subr.mxu0 0.0
    %2084 = vmatpush1.msra.mxu0 0.0
    %2085 = vmatprep.subr.mxu0 0.0
    %2086 = vmatpush1.msra.mxu0 0.0
    %2087 = vmatprep.subr.mxu0 0.0
    %2088 = vmatpush1.msra.mxu0 0.0
    %2089 = vmatprep.subr.mxu0 0.0
    %2090 = vmatpush1.msra.mxu0 0.0
    %2091 = vmatprep.subr.mxu0 0.0
    %2092 = vmatpush1.msra.mxu0 0.0
    %2093 = vmatprep.subr.mxu0 0.0
    %2094 = vmatpush1.msra.mxu0 0.0
    %2095 = vmatprep.subr.mxu0 0.0
    %2096 = vmatpush1.msra.mxu0 0.0
    %2097 = vmatprep.subr.mxu0 0.0
    %2098 = vmatpush1.msra.mxu0 0.0
    %2099 = vmatprep.mubr.f32.mxu0 0.0
    %2100 = vmatmul.mubr.f32.gmra.mrb[0].mxu0 %v2030
    %v2101 = vpop.f32.mrb[0].mxu0
    %v2102 = vadd.f32 %v2026, %v2101
    %v2103 = vpop.f32.mrb[0].mxu0
    %2104 = vmatprep.mubr.f32.mxu0 0.0
    %2105 = vmatmul.mubr.f32.gmra.mrb[0].mxu0 %v2033
    %v2106 = vpop.f32.mrb[0].mxu0
    %v2107 = vadd.f32 %v2026, %v2106
    %v2108 = vpop.f32.mrb[0].mxu0
    %2109 = vdwg.mxu0
    %v2110 = vmul.f32 %v2102, 0.5
    %v2111 = vmul.f32 %v2107, 0.5
    %v2112 = vmul.f32 %v2102, 0.70710677
    %v2113 = vmul.f32 %v2107, 0.70710677
    %v2114 = verf.f32.pop %v2112
    %v2115 = verf.f32.pop %v2113
    %v2116 = vadd.f32 %v2114, 1.0
    %v2117 = vadd.f32 %v2115, 1.0
    %v2118 = vmul.f32 %v2110, %v2116
    %v2119 = vmul.f32 %v2111, %v2117
    %v2120 = vadd.f32 %v1909, %v2118
    %v2121 = vadd.f32 %v1910, %v2119
    %v2122 = vld [vmem:[%s13] sm:$0x1]
    %v2123 = vld [vmem:[%s14] sm:$0x1]
    %v2124 = vsel %vm69, %v2120, 0.0
    %2125 = vadd.xlane.f32.xlu0 %v2124
    %v2126 = vpop.xlane.xlu0 %2125
    %v2127 = vsel %vm69, %v2121, 0.0
    %2128 = vadd.xlane.f32.xlu0 %v2127
    %v2129 = vpop.xlane.xlu0 %2128
    %v2130 = vmul.f32 %v2126, %v76
    %v2131 = vmul.f32 %v2129, %v76
    %v2132 = vsub.f32 %v2120, %v2130
    %v2133 = vsub.f32 %v2121, %v2131
    %v2134 = vmul.f32 %v2132, %v2132
    %v2135 = vmul.f32 %v2133, %v2133
    %v2136 = vsel %vm69, %v2134, 0.0
    %2137 = vadd.xlane.f32.xlu0 %v2136
    %v2138 = vpop.xlane.xlu0 %2137
    %v2139 = vsel %vm69, %v2135, 0.0
    %2140 = vadd.xlane.f32.xlu0 %v2139
    %v2141 = vpop.xlane.xlu0 %2140
    %v2142 = vmul.f32 %v2138, %v76
    %v2143 = vmul.f32 %v2141, %v76
    %v2144 = vadd.f32 %v2142, 1e-06
    %v2145 = vadd.f32 %v2143, 1e-06
    %v2146 = vrsqrt.pop %v2144
    %v2147 = vrsqrt.pop %v2145
    %v2148 = vmul.f32 %v2132, %v2146
    %v2149 = vmul.f32 %v2133, %v2147
    %v2151 = vlaneseq
    %v2152 = vshrl.u32 %v2151, 7
    %v2153 = vsub.s32 0, %v2152
    %v2154 = vrot.slane %v2122, %v2153
    %v2156 = vmul.f32 %v2148, %v2154
    %v2157 = vmul.f32 %v2149, %v2154
    %v2159 = vlaneseq
    %v2160 = vshrl.u32 %v2159, 7
    %v2161 = vsub.s32 0, %v2160
    %v2162 = vrot.slane %v2123, %v2161
    %v2164 = vadd.f32 %v2156, %v2162
    %v2165 = vadd.f32 %v2157, %v2162
    %2166 = vst.msk [vmem:[#allocation5] sm:$0xff] %vm69, %v2164
    %2167 = vst.msk [vmem:[#allocation5 + $0x8] sm:$0xff] %vm69, %v2165
    // Predicated region
    $region66: #{tpu_custom_call.1} parent=1 // pred_check
      _
    $region67: #{tpu_custom_call.1} parent=1 // pred_check_branch
      %2169 = sbr.rel (0) target = $region69
    $region68: #{tpu_custom_call.1} parent=1 // pred_region
      %s2171 = ssub.s32 256, 256
      %2172 = vsyncadd [#allocation4], %s2171
      %s2173 = sshll.u32 [#allocation5], 4
      %s2174 = int_to_ptr.vmem [resolvable:$true] %s2173
      %2179 = dma.vmem_to_hbm [thread:$0]  %s2174, 256, %s15, [#allocation4], 128, 128, 8
    $region69: #{tpu_custom_call.1} parent=1 // pred_fallthru
      _
    // Predicated region
    $region70: #{tpu_custom_call.1} parent=1 // pred_check
      _
    $region71: #{tpu_custom_call.1} parent=1 // pred_check_branch
      %2181 = sbr.rel (0) target = $region73
    $region72: #{tpu_custom_call.1} parent=1 // pred_region
      %2182 = dma.done [#allocation4], 256
    $region73: #{tpu_custom_call.1} parent=1 // pred_fallthru
      _
    %2183 = vsyncpa [#allocation3], 1
    %2184 = vsyncpa [#allocation4], 1

// kernel: tpu_custom_call.1
$region0: #{tpu_custom_call.1}
  #allocation0 [shape = 'u32[]', space=smem, size = 0x4, offset = 0x4, fixed_abs, tag = 'smem constant byte address 0x4 - core index']
  #allocation1 [shape = 'u32[144,128]{1,0:T(1,128)}', space=vmem, size = 0x12000, scoped, tag = 'internal scratch']
  %s0 = inlined_call_operand.hbm [shape: f32[16,32], index: 0, kind: input, shape index: {}]
  %s1 = inlined_call_operand.vmem [shape: f32[1,32], index: 1, kind: input, shape index: {}]
  %s2 = inlined_call_operand.vmem [shape: f32[1,32], index: 2, kind: input, shape index: {}]
  %s3 = inlined_call_operand.vmem [shape: f32[32,96], index: 3, kind: input, shape index: {}]
  %s4 = inlined_call_operand.vmem [shape: f32[1,96], index: 4, kind: input, shape index: {}]
  %s5 = inlined_call_operand.vmem [shape: f32[32,32], index: 5, kind: input, shape index: {}]
  %s6 = inlined_call_operand.vmem [shape: f32[1,32], index: 6, kind: input, shape index: {}]
  %s7 = inlined_call_operand.vmem [shape: f32[1,32], index: 7, kind: input, shape index: {}]
  %s8 = inlined_call_operand.vmem [shape: f32[1,32], index: 8, kind: input, shape index: {}]
  %s9 = inlined_call_operand.vmem [shape: f32[32,64], index: 9, kind: input, shape index: {}]
  %s10 = inlined_call_operand.vmem [shape: f32[1,64], index: 10, kind: input, shape index: {}]
  %s11 = inlined_call_operand.vmem [shape: f32[64,32], index: 11, kind: input, shape index: {}]
  %s12 = inlined_call_operand.vmem [shape: f32[1,32], index: 12, kind: input, shape index: {}]
  %s13 = inlined_call_operand.vmem [shape: f32[1,32], index: 13, kind: input, shape index: {}]
  %s14 = inlined_call_operand.vmem [shape: f32[1,32], index: 14, kind: input, shape index: {}]
  %s15 = inlined_call_operand.hbm [shape: f32[16,32], index: 15, kind: output, shape index: {}]
  %s16 = sld [smem:[#allocation0]]
  $region74: #{tpu_custom_call.1} parent=0
    _
  %s18 = ssub.s32 1, %s16
  %s19 = scalar_select 0, %s18, %s16
  $region1: #{tpu_custom_call.1} parent=0
    #allocation2 [shape = 'u8[8192]{0}', space=vmem, size = 0x2000, scoped, tag = 'input window, operand 0, single buffered']
    #allocation3 [shape = 's32[1]{0}', space=sflag, size = 0x4, scoped, tag = 'scoped memory for tpu_custom_call.1']
    #allocation4 [shape = 's32[1]{0}', space=sflag, size = 0x4, scoped, tag = 'scoped memory for tpu_custom_call.1']
    #allocation5 [shape = 'u8[8192]{0}', space=vmem, size = 0x2000, scoped, tag = 'output window, operand 0, single buffered']
    %20 = vsyncpa [#allocation3], 0
    %21 = vsyncpa [#allocation4], 0
    // Predicated region
    $region2: #{tpu_custom_call.1} parent=1 // pred_check
      _
    $region3: #{tpu_custom_call.1} parent=1 // pred_check_branch
      %23 = sbr.rel (0) target = $region5
    $region4: #{tpu_custom_call.1} parent=1 // pred_region
      %s25 = ssub.s32 256, 256
      %26 = vsyncadd [#allocation3], %s25
      %s27 = sshll.u32 [#allocation2], 4
      %s28 = int_to_ptr.vmem [resolvable:$true] %s27
      %33 = dma.hbm_to_vmem [thread:$0]  %s0, 256, %s28, [#allocation3], 128, 128, 8
    $region5: #{tpu_custom_call.1} parent=1 // pred_fallthru
      _
    // Predicated region
    $region6: #{tpu_custom_call.1} parent=1 // pred_check
      _
    $region7: #{tpu_custom_call.1} parent=1 // pred_check_branch
      %35 = sbr.rel (0) target = $region9
    $region8: #{tpu_custom_call.1} parent=1 // pred_region
      _
    $region9: #{tpu_custom_call.1} parent=1 // pred_fallthru
      _
    // Predicated region
    $region10: #{tpu_custom_call.1} parent=1 // pred_check
      _
    $region11: #{tpu_custom_call.1} parent=1 // pred_check_branch
      %37 = sbr.rel (0) target = $region13
    $region12: #{tpu_custom_call.1} parent=1 // pred_region
      _
    $region13: #{tpu_custom_call.1} parent=1 // pred_fallthru
      _
    // Predicated region
    $region14: #{tpu_custom_call.1} parent=1 // pred_check
      _
    $region15: #{tpu_custom_call.1} parent=1 // pred_check_branch
      %39 = sbr.rel (0) target = $region17
    $region16: #{tpu_custom_call.1} parent=1 // pred_region
      _
    $region17: #{tpu_custom_call.1} parent=1 // pred_fallthru
      _
    // Predicated region
    $region18: #{tpu_custom_call.1} parent=1 // pred_check
      _
    $region19: #{tpu_custom_call.1} parent=1 // pred_check_branch
      %41 = sbr.rel (0) target = $region21
    $region20: #{tpu_custom_call.1} parent=1 // pred_region
      _
    $region21: #{tpu_custom_call.1} parent=1 // pred_fallthru
      _
    // Predicated region
    $region22: #{tpu_custom_call.1} parent=1 // pred_check
      _
    $region23: #{tpu_custom_call.1} parent=1 // pred_check_branch
      %43 = sbr.rel (0) target = $region25
    $region24: #{tpu_custom_call.1} parent=1 // pred_region
      _
    $region25: #{tpu_custom_call.1} parent=1 // pred_fallthru
      _
    // Predicated region
    $region26: #{tpu_custom_call.1} parent=1 // pred_check
      _
    $region27: #{tpu_custom_call.1} parent=1 // pred_check_branch
      %45 = sbr.rel (0) target = $region29
    $region28: #{tpu_custom_call.1} parent=1 // pred_region
      _
    $region29: #{tpu_custom_call.1} parent=1 // pred_fallthru
      _
    // Predicated region
    $region30: #{tpu_custom_call.1} parent=1 // pred_check
      _
    $region31: #{tpu_custom_call.1} parent=1 // pred_check_branch
      %47 = sbr.rel (0) target = $region33
    $region32: #{tpu_custom_call.1} parent=1 // pred_region
      _
    $region33: #{tpu_custom_call.1} parent=1 // pred_fallthru
      _
    // Predicated region
    $region34: #{tpu_custom_call.1} parent=1 // pred_check
      _
    $region35: #{tpu_custom_call.1} parent=1 // pred_check_branch
      %49 = sbr.rel (0) target = $region37
    $region36: #{tpu_custom_call.1} parent=1 // pred_region
      _
    $region37: #{tpu_custom_call.1} parent=1 // pred_fallthru
      _
    // Predicated region
    $region38: #{tpu_custom_call.1} parent=1 // pred_check
      _
    $region39: #{tpu_custom_call.1} parent=1 // pred_check_branch
      %51 = sbr.rel (0) target = $region41
    $region40: #{tpu_custom_call.1} parent=1 // pred_region
      _
    $region41: #{tpu_custom_call.1} parent=1 // pred_fallthru
      _
    // Predicated region
    $region42: #{tpu_custom_call.1} parent=1 // pred_check
      _
    $region43: #{tpu_custom_call.1} parent=1 // pred_check_branch
      %53 = sbr.rel (0) target = $region45
    $region44: #{tpu_custom_call.1} parent=1 // pred_region
      _
    $region45: #{tpu_custom_call.1} parent=1 // pred_fallthru
      _
    // Predicated region
    $region46: #{tpu_custom_call.1} parent=1 // pred_check
      _
    $region47: #{tpu_custom_call.1} parent=1 // pred_check_branch
      %55 = sbr.rel (0) target = $region49
    $region48: #{tpu_custom_call.1} parent=1 // pred_region
      _
    $region49: #{tpu_custom_call.1} parent=1 // pred_fallthru
      _
    // Predicated region
    $region50: #{tpu_custom_call.1} parent=1 // pred_check
      _
    $region51: #{tpu_custom_call.1} parent=1 // pred_check_branch
      %57 = sbr.rel (0) target = $region53
    $region52: #{tpu_custom_call.1} parent=1 // pred_region
      _
    $region53: #{tpu_custom_call.1} parent=1 // pred_fallthru
      _
    // Predicated region
    $region54: #{tpu_custom_call.1} parent=1 // pred_check
      _
    $region55: #{tpu_custom_call.1} parent=1 // pred_check_branch
      %59 = sbr.rel (0) target = $region57
    $region56: #{tpu_custom_call.1} parent=1 // pred_region
      _
    $region57: #{tpu_custom_call.1} parent=1 // pred_fallthru
      _
    // Predicated region
    $region58: #{tpu_custom_call.1} parent=1 // pred_check
      _
    $region59: #{tpu_custom_call.1} parent=1 // pred_check_branch
      %61 = sbr.rel (0) target = $region61
    $region60: #{tpu_custom_call.1} parent=1 // pred_region
      _
    $region61: #{tpu_custom_call.1} parent=1 // pred_fallthru
      _
    // Predicated region
    $region62: #{tpu_custom_call.1} parent=1 // pred_check
      _
    $region63: #{tpu_custom_call.1} parent=1 // pred_check_branch
      %63 = sbr.rel (0) target = $region65
    $region64: #{tpu_custom_call.1} parent=1 // pred_region
      %64 = dma.done [#allocation3], 256
    $region65: #{tpu_custom_call.1} parent=1 // pred_fallthru
      _
    %v65 = vld [vmem:[#allocation2] sm:$0xff]
    %v66 = vld [vmem:[#allocation2 + $0x8] sm:$0xff]
    %v67 = vld [vmem:[%s1] sm:$0x1]
    %v68 = vld [vmem:[%s2] sm:$0x1]
    %vm69 = vcmask 261120
    %v70 = vsel %vm69, %v65, 0.0
    %71 = vadd.xlane.f32.xlu0 %v70
    %v72 = vpop.xlane.xlu0 %71
    %v73 = vsel %vm69, %v66, 0.0
    %74 = vadd.xlane.f32.xlu0 %v73
    %v75 = vpop.xlane.xlu0 %74
    %v76 = vrcp.pop 32.0
    %v77 = vmul.f32 %v72, %v76
    %v78 = vmul.f32 %v75, %v76
    %v79 = vsub.f32 %v65, %v77
    %v80 = vsub.f32 %v66, %v78
    %v81 = vmul.f32 %v79, %v79
    %v82 = vmul.f32 %v80, %v80
    %v83 = vsel %vm69, %v81, 0.0
    %84 = vadd.xlane.f32.xlu0 %v83
    %v85 = vpop.xlane.xlu0 %84
    %v86 = vsel %vm69, %v82, 0.0
    %87 = vadd.xlane.f32.xlu0 %v86
    %v88 = vpop.xlane.xlu0 %87
    %v89 = vmul.f32 %v85, %v76
    %v90 = vmul.f32 %v88, %v76
    %v91 = vadd.f32 %v89, 1e-06
    %v92 = vadd.f32 %v90, 1e-06
    %v93 = vrsqrt.pop %v91
    %v94 = vrsqrt.pop %v92
    %v95 = vmul.f32 %v79, %v93
    %v96 = vmul.f32 %v80, %v94
    %v98 = vlaneseq
    %v99 = vshrl.u32 %v98, 7
    %v100 = vsub.s32 0, %v99
    %v101 = vrot.slane %v67, %v100
    %v103 = vmul.f32 %v95, %v101
    %v104 = vmul.f32 %v96, %v101
    %v106 = vlaneseq
    %v107 = vshrl.u32 %v106, 7
    %v108 = vsub.s32 0, %v107
    %v109 = vrot.slane %v68, %v108
    %v111 = vadd.f32 %v103, %v109
    %v112 = vadd.f32 %v104, %v109
    %v113 = vld [vmem:[%s3] sm:$0xff]
    %v114 = vld [vmem:[%s3 + $0x8] sm:$0xff]
    %v115 = vld [vmem:[%s3 + $0x10] sm:$0xff]
    %v116 = vld [vmem:[%s3 + $0x18] sm:$0xff]
    %v117 = vld [vmem:[%s4] sm:$0x1]
    %v119 = vlaneseq
    %v120 = vshrl.u32 %v119, 7
    %v121 = vsub.s32 0, %v120
    %v122 = vrot.slane %v117, %v121
    %v125 = vsel %vm69, %v111, 0
    %v128 = vsel %vm69, %v112, 0
    %130 = vmatprep.subr.mxu0 0.0
    %131 = vmatpush1.msra.mxu0 %v113
    %132 = vmatprep.subr.mxu0 0.0
    %133 = vmatpush1.msra.mxu0 %v114
    %134 = vmatprep.subr.mxu0 0.0
    %135 = vmatpush1.msra.mxu0 %v115
    %136 = vmatprep.subr.mxu0 0.0
    %137 = vmatpush1.msra.mxu0 %v116
    %138 = vmatprep.subr.mxu0 0.0
    %139 = vmatpush1.msra.mxu0 0.0
    %140 = vmatprep.subr.mxu0 0.0
    %141 = vmatpush1.msra.mxu0 0.0
    %142 = vmatprep.subr.mxu0 0.0
    %143 = vmatpush1.msra.mxu0 0.0
    %144 = vmatprep.subr.mxu0 0.0
    %145 = vmatpush1.msra.mxu0 0.0
    %146 = vmatprep.subr.mxu0 0.0
    %147 = vmatpush1.msra.mxu0 0.0
    %148 = vmatprep.subr.mxu0 0.0
    %149 = vmatpush1.msra.mxu0 0.0
    %150 = vmatprep.subr.mxu0 0.0
    %151 = vmatpush1.msra.mxu0 0.0
    %152 = vmatprep.subr.mxu0 0.0
    %153 = vmatpush1.msra.mxu0 0.0
    %154 = vmatprep.subr.mxu0 0.0
    %155 = vmatpush1.msra.mxu0 0.0
    %156 = vmatprep.subr.mxu0 0.0
    %157 = vmatpush1.msra.mxu0 0.0
    %158 = vmatprep.subr.mxu0 0.0
    %159 = vmatpush1.msra.mxu0 0.0
    %160 = vmatprep.subr.mxu0 0.0
    %161 = vmatpush1.msra.mxu0 0.0
    %162 = vmatprep.subr.mxu0 0.0
    %163 = vmatpush1.msra.mxu0 0.0
    %164 = vmatprep.subr.mxu0 0.0
    %165 = vmatpush1.msra.mxu0 0.0
    %166 = vmatprep.subr.mxu0 0.0
    %167 = vmatpush1.msra.mxu0 0.0
    %168 = vmatprep.subr.mxu0 0.0
    %169 = vmatpush1.msra.mxu0 0.0
    %170 = vmatprep.subr.mxu0 0.0
    %171 = vmatpush1.msra.mxu0 0.0
    %172 = vmatprep.subr.mxu0 0.0
    %173 = vmatpush1.msra.mxu0 0.0
    %174 = vmatprep.subr.mxu0 0.0
    %175 = vmatpush1.msra.mxu0 0.0
    %176 = vmatprep.subr.mxu0 0.0
    %177 = vmatpush1.msra.mxu0 0.0
    %178 = vmatprep.subr.mxu0 0.0
    %179 = vmatpush1.msra.mxu0 0.0
    %180 = vmatprep.subr.mxu0 0.0
    %181 = vmatpush1.msra.mxu0 0.0
    %182 = vmatprep.subr.mxu0 0.0
    %183 = vmatpush1.msra.mxu0 0.0
    %184 = vmatprep.subr.mxu0 0.0
    %185 = vmatpush1.msra.mxu0 0.0
    %186 = vmatprep.subr.mxu0 0.0
    %187 = vmatpush1.msra.mxu0 0.0
    %188 = vmatprep.subr.mxu0 0.0
    %189 = vmatpush1.msra.mxu0 0.0
    %190 = vmatprep.subr.mxu0 0.0
    %191 = vmatpush1.msra.mxu0 0.0
    %192 = vmatprep.subr.mxu0 0.0
    %193 = vmatpush1.msra.mxu0 0.0
    %194 = vmatprep.mubr.f32.mxu0 0.0
    %195 = vmatmul.mubr.f32.gmra.mrb[0].mxu0 %v125
    %v196 = vpop.f32.mrb[0].mxu0
    %v197 = vadd.f32 %v122, %v196
    %v198 = vpop.f32.mrb[0].mxu0
    %199 = vmatprep.mubr.f32.mxu0 0.0
    %200 = vmatmul.mubr.f32.gmra.mrb[0].mxu0 %v128
    %v201 = vpop.f32.mrb[0].mxu0
    %v202 = vadd.f32 %v122, %v201
    %v203 = vpop.f32.mrb[0].mxu0
    %204 = vdwg.mxu0
    %v205 = vld [vmem:[%s5] sm:$0xff]
    %v206 = vld [vmem:[%s5 + $0x8] sm:$0xff]
    %v207 = vld [vmem:[%s5 + $0x10] sm:$0xff]
    %v208 = vld [vmem:[%s5 + $0x18] sm:$0xff]
    %210 = vrot.lane.b32.xlu0 %v197, 96
    %v211 = vpop.permute.xlu0 %210
    %vm212 = vcmask 64512
    %v213 = vsel %vm212, %v197, 0
    %v215 = vsel %vm212, %v211, 0
    %217 = vmatprep.subr.mxu0 0.0
    %218 = vmatpush1.xpose.msra.mxu0 %v215
    %219 = vmatprep.subr.mxu0 0.0
    %220 = vmatpush1.xpose.msra.mxu0 0.0
    %221 = vmatprep.subr.mxu0 0.0
    %222 = vmatpush1.xpose.msra.mxu0 0.0
    %223 = vmatprep.subr.mxu0 0.0
    %224 = vmatpush1.xpose.msra.mxu0 0.0
    %225 = vmatprep.subr.mxu0 0.0
    %226 = vmatpush1.xpose.msra.mxu0 0.0
    %227 = vmatprep.subr.mxu0 0.0
    %228 = vmatpush1.xpose.msra.mxu0 0.0
    %229 = vmatprep.subr.mxu0 0.0
    %230 = vmatpush1.xpose.msra.mxu0 0.0
    %231 = vmatprep.subr.mxu0 0.0
    %232 = vmatpush1.xpose.msra.mxu0 0.0
    %233 = vmatprep.subr.mxu0 0.0
    %234 = vmatpush1.xpose.msra.mxu0 0.0
    %235 = vmatprep.subr.mxu0 0.0
    %236 = vmatpush1.xpose.msra.mxu0 0.0
    %237 = vmatprep.subr.mxu0 0.0
    %238 = vmatpush1.xpose.msra.mxu0 0.0
    %239 = vmatprep.subr.mxu0 0.0
    %240 = vmatpush1.xpose.msra.mxu0 0.0
    %241 = vmatprep.subr.mxu0 0.0
    %242 = vmatpush1.xpose.msra.mxu0 0.0
    %243 = vmatprep.subr.mxu0 0.0
    %244 = vmatpush1.xpose.msra.mxu0 0.0
    %245 = vmatprep.subr.mxu0 0.0
    %246 = vmatpush1.xpose.msra.mxu0 0.0
    %247 = vmatprep.subr.mxu0 0.0
    %248 = vmatpush1.xpose.msra.mxu0 0.0
    %249 = vmatprep.subr.mxu0 0.0
    %250 = vmatpush1.xpose.msra.mxu0 0.0
    %251 = vmatprep.subr.mxu0 0.0
    %252 = vmatpush1.xpose.msra.mxu0 0.0
    %253 = vmatprep.subr.mxu0 0.0
    %254 = vmatpush1.xpose.msra.mxu0 0.0
    %255 = vmatprep.subr.mxu0 0.0
    %256 = vmatpush1.xpose.msra.mxu0 0.0
    %257 = vmatprep.subr.mxu0 0.0
    %258 = vmatpush1.xpose.msra.mxu0 0.0
    %259 = vmatprep.subr.mxu0 0.0
    %260 = vmatpush1.xpose.msra.mxu0 0.0
    %261 = vmatprep.subr.mxu0 0.0
    %262 = vmatpush1.xpose.msra.mxu0 0.0
    %263 = vmatprep.subr.mxu0 0.0
    %264 = vmatpush1.xpose.msra.mxu0 0.0
    %265 = vmatprep.subr.mxu0 0.0
    %266 = vmatpush1.xpose.msra.mxu0 0.0
    %267 = vmatprep.subr.mxu0 0.0
    %268 = vmatpush1.xpose.msra.mxu0 0.0
    %269 = vmatprep.subr.mxu0 0.0
    %270 = vmatpush1.xpose.msra.mxu0 0.0
    %271 = vmatprep.subr.mxu0 0.0
    %272 = vmatpush1.xpose.msra.mxu0 0.0
    %273 = vmatprep.subr.mxu0 0.0
    %274 = vmatpush1.xpose.msra.mxu0 0.0
    %275 = vmatprep.subr.mxu0 0.0
    %276 = vmatpush1.xpose.msra.mxu0 0.0
    %277 = vmatprep.subr.mxu0 0.0
    %278 = vmatpush1.xpose.msra.mxu0 0.0
    %279 = vmatprep.subr.mxu0 0.0
    %280 = vmatpush1.xpose.msra.mxu0 0.0
    %281 = vmatprep.mubr.f32.mxu0 0.0
    %282 = vmatmul.mubr.f32.gmra.mrb[0].mxu0 %v213
    %v283 = vpop.f32.mrb[0].mxu0
    %v284 = vadd.f32 0.0, %v283
    %v285 = vpop.f32.mrb[0].mxu0
    %286 = vdwg.mxu0
    %288 = vrot.lane.b32.xlu0 %v202, 96
    %v289 = vpop.permute.xlu0 %288
    %v290 = vsel %vm212, %v202, 0
    %v292 = vsel %vm212, %v289, 0
    %294 = vmatprep.subr.mxu0 0.0
    %295 = vmatpush1.xpose.msra.mxu0 %v292
    %296 = vmatprep.subr.mxu0 0.0
    %297 = vmatpush1.xpose.msra.mxu0 0.0
    %298 = vmatprep.subr.mxu0 0.0
    %299 = vmatpush1.xpose.msra.mxu0 0.0
    %300 = vmatprep.subr.mxu0 0.0
    %301 = vmatpush1.xpose.msra.mxu0 0.0
    %302 = vmatprep.subr.mxu0 0.0
    %303 = vmatpush1.xpose.msra.mxu0 0.0
    %304 = vmatprep.subr.mxu0 0.0
    %305 = vmatpush1.xpose.msra.mxu0 0.0
    %306 = vmatprep.subr.mxu0 0.0
    %307 = vmatpush1.xpose.msra.mxu0 0.0
    %308 = vmatprep.subr.mxu0 0.0
    %309 = vmatpush1.xpose.msra.mxu0 0.0
    %310 = vmatprep.subr.mxu0 0.0
    %311 = vmatpush1.xpose.msra.mxu0 0.0
    %312 = vmatprep.subr.mxu0 0.0
    %313 = vmatpush1.xpose.msra.mxu0 0.0
    %314 = vmatprep.subr.mxu0 0.0
    %315 = vmatpush1.xpose.msra.mxu0 0.0
    %316 = vmatprep.subr.mxu0 0.0
    %317 = vmatpush1.xpose.msra.mxu0 0.0
    %318 = vmatprep.subr.mxu0 0.0
    %319 = vmatpush1.xpose.msra.mxu0 0.0
    %320 = vmatprep.subr.mxu0 0.0
    %321 = vmatpush1.xpose.msra.mxu0 0.0
    %322 = vmatprep.subr.mxu0 0.0
    %323 = vmatpush1.xpose.msra.mxu0 0.0
    %324 = vmatprep.subr.mxu0 0.0
    %325 = vmatpush1.xpose.msra.mxu0 0.0
    %326 = vmatprep.subr.mxu0 0.0
    %327 = vmatpush1.xpose.msra.mxu0 0.0
    %328 = vmatprep.subr.mxu0 0.0
    %329 = vmatpush1.xpose.msra.mxu0 0.0
    %330 = vmatprep.subr.mxu0 0.0
    %331 = vmatpush1.xpose.msra.mxu0 0.0
    %332 = vmatprep.subr.mxu0 0.0
    %333 = vmatpush1.xpose.msra.mxu0 0.0
    %334 = vmatprep.subr.mxu0 0.0
    %335 = vmatpush1.xpose.msra.mxu0 0.0
    %336 = vmatprep.subr.mxu0 0.0
    %337 = vmatpush1.xpose.msra.mxu0 0.0
    %338 = vmatprep.subr.mxu0 0.0
    %339 = vmatpush1.xpose.msra.mxu0 0.0
    %340 = vmatprep.subr.mxu0 0.0
    %341 = vmatpush1.xpose.msra.mxu0 0.0
    %342 = vmatprep.subr.mxu0 0.0
    %343 = vmatpush1.xpose.msra.mxu0 0.0
    %344 = vmatprep.subr.mxu0 0.0
    %345 = vmatpush1.xpose.msra.mxu0 0.0
    %346 = vmatprep.subr.mxu0 0.0
    %347 = vmatpush1.xpose.msra.mxu0 0.0
    %348 = vmatprep.subr.mxu0 0.0
    %349 = vmatpush1.xpose.msra.mxu0 0.0
    %350 = vmatprep.subr.mxu0 0.0
    %351 = vmatpush1.xpose.msra.mxu0 0.0
    %352 = vmatprep.subr.mxu0 0.0
    %353 = vmatpush1.xpose.msra.mxu0 0.0
    %354 = vmatprep.subr.mxu0 0.0
    %355 = vmatpush1.xpose.msra.mxu0 0.0
    %356 = vmatprep.subr.mxu0 0.0
    %357 = vmatpush1.xpose.msra.mxu0 0.0
    %358 = vmatprep.mubr.f32.mxu0 0.0
    %359 = vmatmul.mubr.f32.gmra.mrb[0].mxu0 %v290
    %v360 = vpop.f32.mrb[0].mxu0
    %v361 = vadd.f32 0.0, %v360
    %v362 = vpop.f32.mrb[0].mxu0
    %363 = vdwg.mxu0
    %v364 = vsel %vm212, %v284, -inf
    %365 = vmax.xlane.f32.xlu0 %v364
    %v366 = vpop.xlane.xlu0 %365
    %v367 = vsel %vm212, %v361, -inf
    %368 = vmax.xlane.f32.xlu0 %v367
    %v369 = vpop.xlane.xlu0 %368
    %v370 = vsub.f32 %v284, %v366
    %v371 = vsub.f32 %v361, %v369
    %v372 = vmul.f32 %v370, 1.442695
    %v373 = vpow.pop %v372
    %v374 = vmul.f32 %v371, 1.442695
    %v375 = vpow.pop %v374
    %v376 = vsel %vm212, %v373, 0.0
    %377 = vadd.xlane.f32.xlu0 %v376
    %v378 = vpop.xlane.xlu0 %377
    %v379 = vsel %vm212, %v375, 0.0
    %380 = vadd.xlane.f32.xlu0 %v379
    %v381 = vpop.xlane.xlu0 %380
    %v382 = vrcp.pop %v378
    %v383 = vrcp.pop %v381
    %v384 = vmul.f32 %v373, %v382
    %v385 = vmul.f32 %v375, %v383
    %386 = vrot.lane.b32.xlu0 %v197, 64
    %v387 = vpop.permute.xlu0 %386
    %v390 = vsel %vm212, %v384, 0
    %392 = vmatprep.subr.mxu0 0.0
    %393 = vmatpush1.msra.mxu0 %v387
    %394 = vmatprep.subr.mxu0 0.0
    %395 = vmatpush1.msra.mxu0 0.0
    %396 = vmatprep.subr.mxu0 0.0
    %397 = vmatpush1.msra.mxu0 0.0
    %398 = vmatprep.subr.mxu0 0.0
    %399 = vmatpush1.msra.mxu0 0.0
    %400 = vmatprep.subr.mxu0 0.0
    %401 = vmatpush1.msra.mxu0 0.0
    %402 = vmatprep.subr.mxu0 0.0
    %403 = vmatpush1.msra.mxu0 0.0
    %404 = vmatprep.subr.mxu0 0.0
    %405 = vmatpush1.msra.mxu0 0.0
    %406 = vmatprep.subr.mxu0 0.0
    %407 = vmatpush1.msra.mxu0 0.0
    %408 = vmatprep.subr.mxu0 0.0
    %409 = vmatpush1.msra.mxu0 0.0
    %410 = vmatprep.subr.mxu0 0.0
    %411 = vmatpush1.msra.mxu0 0.0
    %412 = vmatprep.subr.mxu0 0.0
    %413 = vmatpush1.msra.mxu0 0.0
    %414 = vmatprep.subr.mxu0 0.0
    %415 = vmatpush1.msra.mxu0 0.0
    %416 = vmatprep.subr.mxu0 0.0
    %417 = vmatpush1.msra.mxu0 0.0
    %418 = vmatprep.subr.mxu0 0.0
    %419 = vmatpush1.msra.mxu0 0.0
    %420 = vmatprep.subr.mxu0 0.0
    %421 = vmatpush1.msra.mxu0 0.0
    %422 = vmatprep.subr.mxu0 0.0
    %423 = vmatpush1.msra.mxu0 0.0
    %424 = vmatprep.subr.mxu0 0.0
    %425 = vmatpush1.msra.mxu0 0.0
    %426 = vmatprep.subr.mxu0 0.0
    %427 = vmatpush1.msra.mxu0 0.0
    %428 = vmatprep.subr.mxu0 0.0
    %429 = vmatpush1.msra.mxu0 0.0
    %430 = vmatprep.subr.mxu0 0.0
    %431 = vmatpush1.msra.mxu0 0.0
    %432 = vmatprep.subr.mxu0 0.0
    %433 = vmatpush1.msra.mxu0 0.0
    %434 = vmatprep.subr.mxu0 0.0
    %435 = vmatpush1.msra.mxu0 0.0
    %436 = vmatprep.subr.mxu0 0.0
    %437 = vmatpush1.msra.mxu0 0.0
    %438 = vmatprep.subr.mxu0 0.0
    %439 = vmatpush1.msra.mxu0 0.0
    %440 = vmatprep.subr.mxu0 0.0
    %441 = vmatpush1.msra.mxu0 0.0
    %442 = vmatprep.subr.mxu0 0.0
    %443 = vmatpush1.msra.mxu0 0.0
    %444 = vmatprep.subr.mxu0 0.0
    %445 = vmatpush1.msra.mxu0 0.0
    %446 = vmatprep.subr.mxu0 0.0
    %447 = vmatpush1.msra.mxu0 0.0
    %448 = vmatprep.subr.mxu0 0.0
    %449 = vmatpush1.msra.mxu0 0.0
    %450 = vmatprep.subr.mxu0 0.0
    %451 = vmatpush1.msra.mxu0 0.0
    %452 = vmatprep.subr.mxu0 0.0
    %453 = vmatpush1.msra.mxu0 0.0
    %454 = vmatprep.subr.mxu0 0.0
    %455 = vmatpush1.msra.mxu0 0.0
    %456 = vmatprep.mubr.f32.mxu0 0.0
    %457 = vmatmul.mubr.f32.gmra.mrb[0].mxu0 %v390
    %v458 = vpop.f32.mrb[0].mxu0
    %v459 = vadd.f32 0.0, %v458
    %v460 = vpop.f32.mrb[0].mxu0
    %461 = vdwg.mxu0
    %462 = vrot.lane.b32.xlu0 %v202, 64
    %v463 = vpop.permute.xlu0 %462
    %v466 = vsel %vm212, %v385, 0
    %468 = vmatprep.subr.mxu0 0.0
    %469 = vmatpush1.msra.mxu0 %v463
    %470 = vmatprep.subr.mxu0 0.0
    %471 = vmatpush1.msra.mxu0 0.0
    %472 = vmatprep.subr.mxu0 0.0
    %473 = vmatpush1.msra.mxu0 0.0
    %474 = vmatprep.subr.mxu0 0.0
    %475 = vmatpush1.msra.mxu0 0.0
    %476 = vmatprep.subr.mxu0 0.0
    %477 = vmatpush1.msra.mxu0 0.0
    %478 = vmatprep.subr.mxu0 0.0
    %479 = vmatpush1.msra.mxu0 0.0
    %480 = vmatprep.subr.mxu0 0.0
    %481 = vmatpush1.msra.mxu0 0.0
    %482 = vmatprep.subr.mxu0 0.0
    %483 = vmatpush1.msra.mxu0 0.0
    %484 = vmatprep.subr.mxu0 0.0
    %485 = vmatpush1.msra.mxu0 0.0
    %486 = vmatprep.subr.mxu0 0.0
    %487 = vmatpush1.msra.mxu0 0.0
    %488 = vmatprep.subr.mxu0 0.0
    %489 = vmatpush1.msra.mxu0 0.0
    %490 = vmatprep.subr.mxu0 0.0
    %491 = vmatpush1.msra.mxu0 0.0
    %492 = vmatprep.subr.mxu0 0.0
    %493 = vmatpush1.msra.mxu0 0.0
    %494 = vmatprep.subr.mxu0 0.0
    %495 = vmatpush1.msra.mxu0 0.0
    %496 = vmatprep.subr.mxu0 0.0
    %497 = vmatpush1.msra.mxu0 0.0
    %498 = vmatprep.subr.mxu0 0.0
    %499 = vmatpush1.msra.mxu0 0.0
    %500 = vmatprep.subr.mxu0 0.0
    %501 = vmatpush1.msra.mxu0 0.0
    %502 = vmatprep.subr.mxu0 0.0
    %503 = vmatpush1.msra.mxu0 0.0
    %504 = vmatprep.subr.mxu0 0.0
    %505 = vmatpush1.msra.mxu0 0.0
    %506 = vmatprep.subr.mxu0 0.0
    %507 = vmatpush1.msra.mxu0 0.0
    %508 = vmatprep.subr.mxu0 0.0
    %509 = vmatpush1.msra.mxu0 0.0
    %510 = vmatprep.subr.mxu0 0.0
    %511 = vmatpush1.msra.mxu0 0.0
    %512 = vmatprep.subr.mxu0 0.0
    %513 = vmatpush1.msra.mxu0 0.0
    %514 = vmatprep.subr.mxu0 0.0
    %515 = vmatpush1.msra.mxu0 0.0
    %516 = vmatprep.subr.mxu0 0.0
    %517 = vmatpush1.msra.mxu0 0.0
    %518 = vmatprep.subr.mxu0 0.0
    %519 = vmatpush1.msra.mxu0 0.0
    %520 = vmatprep.subr.mxu0 0.0
    %521 = vmatpush1.msra.mxu0 0.0
    %522 = vmatprep.subr.mxu0 0.0
    %523 = vmatpush1.msra.mxu0 0.0
    %524 = vmatprep.subr.mxu0 0.0
    %525 = vmatpush1.msra.mxu0 0.0
    %526 = vmatprep.subr.mxu0 0.0
    %527 = vmatpush1.msra.mxu0 0.0
    %528 = vmatprep.subr.mxu0 0.0
    %529 = vmatpush1.msra.mxu0 0.0
    %530 = vmatprep.subr.mxu0 0.0
    %531 = vmatpush1.msra.mxu0 0.0
    %532 = vmatprep.mubr.f32.mxu0 0.0
    %533 = vmatmul.mubr.f32.gmra.mrb[0].mxu0 %v466
    %v534 = vpop.f32.mrb[0].mxu0
    %v535 = vadd.f32 0.0, %v534
    %v536 = vpop.f32.mrb[0].mxu0
    %537 = vdwg.mxu0
    %538 = vrot.lane.b32.xlu0 %v197, 120
    %v539 = vpop.permute.xlu0 %538
    %540 = vrot.lane.b32.xlu0 %v197, 88
    %v541 = vpop.permute.xlu0 %540
    %v542 = vsel %vm212, %v539, 0
    %v544 = vsel %vm212, %v541, 0
    %546 = vmatprep.subr.mxu0 0.0
    %547 = vmatpush1.xpose.msra.mxu0 %v544
    %548 = vmatprep.subr.mxu0 0.0
    %549 = vmatpush1.xpose.msra.mxu0 0.0
    %550 = vmatprep.subr.mxu0 0.0
    %551 = vmatpush1.xpose.msra.mxu0 0.0
    %552 = vmatprep.subr.mxu0 0.0
    %553 = vmatpush1.xpose.msra.mxu0 0.0
    %554 = vmatprep.subr.mxu0 0.0
    %555 = vmatpush1.xpose.msra.mxu0 0.0
    %556 = vmatprep.subr.mxu0 0.0
    %557 = vmatpush1.xpose.msra.mxu0 0.0
    %558 = vmatprep.subr.mxu0 0.0
    %559 = vmatpush1.xpose.msra.mxu0 0.0
    %560 = vmatprep.subr.mxu0 0.0
    %561 = vmatpush1.xpose.msra.mxu0 0.0
    %562 = vmatprep.subr.mxu0 0.0
    %563 = vmatpush1.xpose.msra.mxu0 0.0
    %564 = vmatprep.subr.mxu0 0.0
    %565 = vmatpush1.xpose.msra.mxu0 0.0
    %566 = vmatprep.subr.mxu0 0.0
    %567 = vmatpush1.xpose.msra.mxu0 0.0
    %568 = vmatprep.subr.mxu0 0.0
    %569 = vmatpush1.xpose.msra.mxu0 0.0
    %570 = vmatprep.subr.mxu0 0.0
    %571 = vmatpush1.xpose.msra.mxu0 0.0
    %572 = vmatprep.subr.mxu0 0.0
    %573 = vmatpush1.xpose.msra.mxu0 0.0
    %574 = vmatprep.subr.mxu0 0.0
    %575 = vmatpush1.xpose.msra.mxu0 0.0
    %576 = vmatprep.subr.mxu0 0.0
    %577 = vmatpush1.xpose.msra.mxu0 0.0
    %578 = vmatprep.subr.mxu0 0.0
    %579 = vmatpush1.xpose.msra.mxu0 0.0
    %580 = vmatprep.subr.mxu0 0.0
    %581 = vmatpush1.xpose.msra.mxu0 0.0
    %582 = vmatprep.subr.mxu0 0.0
    %583 = vmatpush1.xpose.msra.mxu0 0.0
    %584 = vmatprep.subr.mxu0 0.0
    %585 = vmatpush1.xpose.msra.mxu0 0.0
    %586 = vmatprep.subr.mxu0 0.0
    %587 = vmatpush1.xpose.msra.mxu0 0.0
    %588 = vmatprep.subr.mxu0 0.0
    %589 = vmatpush1.xpose.msra.mxu0 0.0
    %590 = vmatprep.subr.mxu0 0.0
    %591 = vmatpush1.xpose.msra.mxu0 0.0
    %592 = vmatprep.subr.mxu0 0.0
    %593 = vmatpush1.xpose.msra.mxu0 0.0
    %594 = vmatprep.subr.mxu0 0.0
    %595 = vmatpush1.xpose.msra.mxu0 0.0
    %596 = vmatprep.subr.mxu0 0.0
    %597 = vmatpush1.xpose.msra.mxu0 0.0
    %598 = vmatprep.subr.mxu0 0.0
    %599 = vmatpush1.xpose.msra.mxu0 0.0
    %600 = vmatprep.subr.mxu0 0.0
    %601 = vmatpush1.xpose.msra.mxu0 0.0
    %602 = vmatprep.subr.mxu0 0.0
    %603 = vmatpush1.xpose.msra.mxu0 0.0
    %604 = vmatprep.subr.mxu0 0.0
    %605 = vmatpush1.xpose.msra.mxu0 0.0
    %606 = vmatprep.subr.mxu0 0.0
    %607 = vmatpush1.xpose.msra.mxu0 0.0
    %608 = vmatprep.subr.mxu0 0.0
    %609 = vmatpush1.xpose.msra.mxu0 0.0
    %610 = vmatprep.mubr.f32.mxu0 0.0
    %611 = vmatmul.mubr.f32.gmra.mrb[0].mxu0 %v542
    %v612 = vpop.f32.mrb[0].mxu0
    %v613 = vadd.f32 0.0, %v612
    %v614 = vpop.f32.mrb[0].mxu0
    %615 = vdwg.mxu0
    %616 = vrot.lane.b32.xlu0 %v202, 120
    %v617 = vpop.permute.xlu0 %616
    %618 = vrot.lane.b32.xlu0 %v202, 88
    %v619 = vpop.permute.xlu0 %618
    %v620 = vsel %vm212, %v617, 0
    %v622 = vsel %vm212, %v619, 0
    %624 = vmatprep.subr.mxu0 0.0
    %625 = vmatpush1.xpose.msra.mxu0 %v622
    %626 = vmatprep.subr.mxu0 0.0
    %627 = vmatpush1.xpose.msra.mxu0 0.0
    %628 = vmatprep.subr.mxu0 0.0
    %629 = vmatpush1.xpose.msra.mxu0 0.0
    %630 = vmatprep.subr.mxu0 0.0
    %631 = vmatpush1.xpose.msra.mxu0 0.0
    %632 = vmatprep.subr.mxu0 0.0
    %633 = vmatpush1.xpose.msra.mxu0 0.0
    %634 = vmatprep.subr.mxu0 0.0
    %635 = vmatpush1.xpose.msra.mxu0 0.0
    %636 = vmatprep.subr.mxu0 0.0
    %637 = vmatpush1.xpose.msra.mxu0 0.0
    %638 = vmatprep.subr.mxu0 0.0
    %639 = vmatpush1.xpose.msra.mxu0 0.0
    %640 = vmatprep.subr.mxu0 0.0
    %641 = vmatpush1.xpose.msra.mxu0 0.0
    %642 = vmatprep.subr.mxu0 0.0
    %643 = vmatpush1.xpose.msra.mxu0 0.0
    %644 = vmatprep.subr.mxu0 0.0
    %645 = vmatpush1.xpose.msra.mxu0 0.0
    %646 = vmatprep.subr.mxu0 0.0
    %647 = vmatpush1.xpose.msra.mxu0 0.0
    %648 = vmatprep.subr.mxu0 0.0
    %649 = vmatpush1.xpose.msra.mxu0 0.0
    %650 = vmatprep.subr.mxu0 0.0
    %651 = vmatpush1.xpose.msra.mxu0 0.0
    %652 = vmatprep.subr.mxu0 0.0
    %653 = vmatpush1.xpose.msra.mxu0 0.0
    %654 = vmatprep.subr.mxu0 0.0
    %655 = vmatpush1.xpose.msra.mxu0 0.0
    %656 = vmatprep.subr.mxu0 0.0
    %657 = vmatpush1.xpose.msra.mxu0 0.0
    %658 = vmatprep.subr.mxu0 0.0
    %659 = vmatpush1.xpose.msra.mxu0 0.0
    %660 = vmatprep.subr.mxu0 0.0
    %661 = vmatpush1.xpose.msra.mxu0 0.0
    %662 = vmatprep.subr.mxu0 0.0
    %663 = vmatpush1.xpose.msra.mxu0 0.0
    %664 = vmatprep.subr.mxu0 0.0
    %665 = vmatpush1.xpose.msra.mxu0 0.0
    %666 = vmatprep.subr.mxu0 0.0
    %667 = vmatpush1.xpose.msra.mxu0 0.0
    %668 = vmatprep.subr.mxu0 0.0
    %669 = vmatpush1.xpose.msra.mxu0 0.0
    %670 = vmatprep.subr.mxu0 0.0
    %671 = vmatpush1.xpose.msra.mxu0 0.0
    %672 = vmatprep.subr.mxu0 0.0
    %673 = vmatpush1.xpose.msra.mxu0 0.0
    %674 = vmatprep.subr.mxu0 0.0
    %675 = vmatpush1.xpose.msra.mxu0 0.0
    %676 = vmatprep.subr.mxu0 0.0
    %677 = vmatpush1.xpose.msra.mxu0 0.0
    %678 = vmatprep.subr.mxu0 0.0
    %679 = vmatpush1.xpose.msra.mxu0 0.0
    %680 = vmatprep.subr.mxu0 0.0
    %681 = vmatpush1.xpose.msra.mxu0 0.0
    %682 = vmatprep.subr.mxu0 0.0
    %683 = vmatpush1.xpose.msra.mxu0 0.0
    %684 = vmatprep.subr.mxu0 0.0
    %685 = vmatpush1.xpose.msra.mxu0 0.0
    %686 = vmatprep.subr.mxu0 0.0
    %687 = vmatpush1.xpose.msra.mxu0 0.0
    %688 = vmatprep.mubr.f32.mxu0 0.0
    %689 = vmatmul.mubr.f32.gmra.mrb[0].mxu0 %v620
    %v690 = vpop.f32.mrb[0].mxu0
    %v691 = vadd.f32 0.0, %v690
    %v692 = vpop.f32.mrb[0].mxu0
    %693 = vdwg.mxu0
    %v694 = vsel %vm212, %v613, -inf
    %695 = vmax.xlane.f32.xlu0 %v694
    %v696 = vpop.xlane.xlu0 %695
    %v697 = vsel %vm212, %v691, -inf
    %698 = vmax.xlane.f32.xlu0 %v697
    %v699 = vpop.xlane.xlu0 %698
    %v700 = vsub.f32 %v613, %v696
    %v701 = vsub.f32 %v691, %v699
    %v702 = vmul.f32 %v700, 1.442695
    %v703 = vpow.pop %v702
    %v704 = vmul.f32 %v701, 1.442695
    %v705 = vpow.pop %v704
    %v706 = vsel %vm212, %v703, 0.0
    %707 = vadd.xlane.f32.xlu0 %v706
    %v708 = vpop.xlane.xlu0 %707
    %v709 = vsel %vm212, %v705, 0.0
    %710 = vadd.xlane.f32.xlu0 %v709
    %v711 = vpop.xlane.xlu0 %710
    %v712 = vrcp.pop %v708
    %v713 = vrcp.pop %v711
    %v714 = vmul.f32 %v703, %v712
    %v715 = vmul.f32 %v705, %v713
    %716 = vrot.lane.b32.xlu0 %v197, 56
    %v717 = vpop.permute.xlu0 %716
    %v720 = vsel %vm212, %v714, 0
    %722 = vmatprep.subr.mxu0 0.0
    %723 = vmatpush1.msra.mxu0 %v717
    %724 = vmatprep.subr.mxu0 0.0
    %725 = vmatpush1.msra.mxu0 0.0
    %726 = vmatprep.subr.mxu0 0.0
    %727 = vmatpush1.msra.mxu0 0.0
    %728 = vmatprep.subr.mxu0 0.0
    %729 = vmatpush1.msra.mxu0 0.0
    %730 = vmatprep.subr.mxu0 0.0
    %731 = vmatpush1.msra.mxu0 0.0
    %732 = vmatprep.subr.mxu0 0.0
    %733 = vmatpush1.msra.mxu0 0.0
    %734 = vmatprep.subr.mxu0 0.0
    %735 = vmatpush1.msra.mxu0 0.0
    %736 = vmatprep.subr.mxu0 0.0
    %737 = vmatpush1.msra.mxu0 0.0
    %738 = vmatprep.subr.mxu0 0.0
    %739 = vmatpush1.msra.mxu0 0.0
    %740 = vmatprep.subr.mxu0 0.0
    %741 = vmatpush1.msra.mxu0 0.0
    %742 = vmatprep.subr.mxu0 0.0
    %743 = vmatpush1.msra.mxu0 0.0
    %744 = vmatprep.subr.mxu0 0.0
    %745 = vmatpush1.msra.mxu0 0.0
    %746 = vmatprep.subr.mxu0 0.0
    %747 = vmatpush1.msra.mxu0 0.0
    %748 = vmatprep.subr.mxu0 0.0
    %749 = vmatpush1.msra.mxu0 0.0
    %750 = vmatprep.subr.mxu0 0.0
    %751 = vmatpush1.msra.mxu0 0.0
    %752 = vmatprep.subr.mxu0 0.0
    %753 = vmatpush1.msra.mxu0 0.0
    %754 = vmatprep.subr.mxu0 0.0
    %755 = vmatpush1.msra.mxu0 0.0
    %756 = vmatprep.subr.mxu0 0.0
    %757 = vmatpush1.msra.mxu0 0.0
    %758 = vmatprep.subr.mxu0 0.0
    %759 = vmatpush1.msra.mxu0 0.0
    %760 = vmatprep.subr.mxu0 0.0
    %761 = vmatpush1.msra.mxu0 0.0
    %762 = vmatprep.subr.mxu0 0.0
    %763 = vmatpush1.msra.mxu0 0.0
    %764 = vmatprep.subr.mxu0 0.0
    %765 = vmatpush1.msra.mxu0 0.0
    %766 = vmatprep.subr.mxu0 0.0
    %767 = vmatpush1.msra.mxu0 0.0
    %768 = vmatprep.subr.mxu0 0.0
    %769 = vmatpush1.msra.mxu0 0.0
    %770 = vmatprep.subr.mxu0 0.0
    %771 = vmatpush1.msra.mxu0 0.0
    %772 = vmatprep.subr.mxu0 0.0
    %773 = vmatpush1.msra.mxu0 0.0
    %774 = vmatprep.subr.mxu0 0.0
    %775 = vmatpush1.msra.mxu0 0.0
    %776 = vmatprep.subr.mxu0 0.0
    %777 = vmatpush1.msra.mxu0 0.0
    %778 = vmatprep.subr.mxu0 0.0
    %779 = vmatpush1.msra.mxu0 0.0
    %780 = vmatprep.subr.mxu0 0.0
    %781 = vmatpush1.msra.mxu0 0.0
    %782 = vmatprep.subr.mxu0 0.0
    %783 = vmatpush1.msra.mxu0 0.0
    %784 = vmatprep.subr.mxu0 0.0
    %785 = vmatpush1.msra.mxu0 0.0
    %786 = vmatprep.mubr.f32.mxu0 0.0
    %787 = vmatmul.mubr.f32.gmra.mrb[0].mxu0 %v720
    %v788 = vpop.f32.mrb[0].mxu0
    %v789 = vadd.f32 0.0, %v788
    %v790 = vpop.f32.mrb[0].mxu0
    %791 = vdwg.mxu0
    %792 = vrot.lane.b32.xlu0 %v202, 56
    %v793 = vpop.permute.xlu0 %792
    %v796 = vsel %vm212, %v715, 0
    %798 = vmatprep.subr.mxu0 0.0
    %799 = vmatpush1.msra.mxu0 %v793
    %800 = vmatprep.subr.mxu0 0.0
    %801 = vmatpush1.msra.mxu0 0.0
    %802 = vmatprep.subr.mxu0 0.0
    %803 = vmatpush1.msra.mxu0 0.0
    %804 = vmatprep.subr.mxu0 0.0
    %805 = vmatpush1.msra.mxu0 0.0
    %806 = vmatprep.subr.mxu0 0.0
    %807 = vmatpush1.msra.mxu0 0.0
    %808 = vmatprep.subr.mxu0 0.0
    %809 = vmatpush1.msra.mxu0 0.0
    %810 = vmatprep.subr.mxu0 0.0
    %811 = vmatpush1.msra.mxu0 0.0
    %812 = vmatprep.subr.mxu0 0.0
    %813 = vmatpush1.msra.mxu0 0.0
    %814 = vmatprep.subr.mxu0 0.0
    %815 = vmatpush1.msra.mxu0 0.0
    %816 = vmatprep.subr.mxu0 0.0
    %817 = vmatpush1.msra.mxu0 0.0
    %818 = vmatprep.subr.mxu0 0.0
    %819 = vmatpush1.msra.mxu0 0.0
    %820 = vmatprep.subr.mxu0 0.0
    %821 = vmatpush1.msra.mxu0 0.0
    %822 = vmatprep.subr.mxu0 0.0
    %823 = vmatpush1.msra.mxu0 0.0
    %824 = vmatprep.subr.mxu0 0.0
    %825 = vmatpush1.msra.mxu0 0.0
    %826 = vmatprep.subr.mxu0 0.0
    %827 = vmatpush1.msra.mxu0 0.0
    %828 = vmatprep.subr.mxu0 0.0
    %829 = vmatpush1.msra.mxu0 0.0
    %830 = vmatprep.subr.mxu0 0.0
    %831 = vmatpush1.msra.mxu0 0.0
    %832 = vmatprep.subr.mxu0 0.0
    %833 = vmatpush1.msra.mxu0 0.0
    %834 = vmatprep.subr.mxu0 0.0
    %835 = vmatpush1.msra.mxu0 0.0
    %836 = vmatprep.subr.mxu0 0.0
    %837 = vmatpush1.msra.mxu0 0.0
    %838 = vmatprep.subr.mxu0 0.0
    %839 = vmatpush1.msra.mxu0 0.0
    %840 = vmatprep.subr.mxu0 0.0
    %841 = vmatpush1.msra.mxu0 0.0
    %842 = vmatprep.subr.mxu0 0.0
    %843 = vmatpush1.msra.mxu0 0.0
    %844 = vmatprep.subr.mxu0 0.0
    %845 = vmatpush1.msra.mxu0 0.0
    %846 = vmatprep.subr.mxu0 0.0
    %847 = vmatpush1.msra.mxu0 0.0
    %848 = vmatprep.subr.mxu0 0.0
    %849 = vmatpush1.msra.mxu0 0.0
    %850 = vmatprep.subr.mxu0 0.0
    %851 = vmatpush1.msra.mxu0 0.0
    %852 = vmatprep.subr.mxu0 0.0
    %853 = vmatpush1.msra.mxu0 0.0
    %854 = vmatprep.subr.mxu0 0.0
    %855 = vmatpush1.msra.mxu0 0.0
    %856 = vmatprep.subr.mxu0 0.0
    %857 = vmatpush1.msra.mxu0 0.0
    %858 = vmatprep.subr.mxu0 0.0
    %859 = vmatpush1.msra.mxu0 0.0
    %860 = vmatprep.subr.mxu0 0.0
    %861 = vmatpush1.msra.mxu0 0.0
    %862 = vmatprep.mubr.f32.mxu0 0.0
    %863 = vmatmul.mubr.f32.gmra.mrb[0].mxu0 %v796
    %v864 = vpop.f32.mrb[0].mxu0
    %v865 = vadd.f32 0.0, %v864
    %v866 = vpop.f32.mrb[0].mxu0
    %867 = vdwg.mxu0
    %v869 = vsel %vm212, %v789, 0
    %v872 = vsel %vm212, %v865, 0
    %874 = vmatprep.subr.mxu0 0.0
    %875 = vmatpush1.msra.mxu0 %v206
    %876 = vmatprep.subr.mxu0 0.0
    %877 = vmatpush1.msra.mxu0 0.0
    %878 = vmatprep.subr.mxu0 0.0
    %879 = vmatpush1.msra.mxu0 0.0
    %880 = vmatprep.subr.mxu0 0.0
    %881 = vmatpush1.msra.mxu0 0.0
    %882 = vmatprep.subr.mxu0 0.0
    %883 = vmatpush1.msra.mxu0 0.0
    %884 = vmatprep.subr.mxu0 0.0
    %885 = vmatpush1.msra.mxu0 0.0
    %886 = vmatprep.subr.mxu0 0.0
    %887 = vmatpush1.msra.mxu0 0.0
    %888 = vmatprep.subr.mxu0 0.0
    %889 = vmatpush1.msra.mxu0 0.0
    %890 = vmatprep.subr.mxu0 0.0
    %891 = vmatpush1.msra.mxu0 0.0
    %892 = vmatprep.subr.mxu0 0.0
    %893 = vmatpush1.msra.mxu0 0.0
    %894 = vmatprep.subr.mxu0 0.0
    %895 = vmatpush1.msra.mxu0 0.0
    %896 = vmatprep.subr.mxu0 0.0
    %897 = vmatpush1.msra.mxu0 0.0
    %898 = vmatprep.subr.mxu0 0.0
    %899 = vmatpush1.msra.mxu0 0.0
    %900 = vmatprep.subr.mxu0 0.0
    %901 = vmatpush1.msra.mxu0 0.0
    %902 = vmatprep.subr.mxu0 0.0
    %903 = vmatpush1.msra.mxu0 0.0
    %904 = vmatprep.subr.mxu0 0.0
    %905 = vmatpush1.msra.mxu0 0.0
    %906 = vmatprep.subr.mxu0 0.0
    %907 = vmatpush1.msra.mxu0 0.0
    %908 = vmatprep.subr.mxu0 0.0
    %909 = vmatpush1.msra.mxu0 0.0
    %910 = vmatprep.subr.mxu0 0.0
    %911 = vmatpush1.msra.mxu0 0.0
    %912 = vmatprep.subr.mxu0 0.0
    %913 = vmatpush1.msra.mxu0 0.0
    %914 = vmatprep.subr.mxu0 0.0
    %915 = vmatpush1.msra.mxu0 0.0
    %916 = vmatprep.subr.mxu0 0.0
    %917 = vmatpush1.msra.mxu0 0.0
    %918 = vmatprep.subr.mxu0 0.0
    %919 = vmatpush1.msra.mxu0 0.0
    %920 = vmatprep.subr.mxu0 0.0
    %921 = vmatpush1.msra.mxu0 0.0
    %922 = vmatprep.subr.mxu0 0.0
    %923 = vmatpush1.msra.mxu0 0.0
    %924 = vmatprep.subr.mxu0 0.0
    %925 = vmatpush1.msra.mxu0 0.0
    %926 = vmatprep.subr.mxu0 0.0
    %927 = vmatpush1.msra.mxu0 0.0
    %928 = vmatprep.subr.mxu0 0.0
    %929 = vmatpush1.msra.mxu0 0.0
    %930 = vmatprep.subr.mxu0 0.0
    %931 = vmatpush1.msra.mxu0 0.0
    %932 = vmatprep.subr.mxu0 0.0
    %933 = vmatpush1.msra.mxu0 0.0
    %934 = vmatprep.subr.mxu0 0.0
    %935 = vmatpush1.msra.mxu0 0.0
    %936 = vmatprep.subr.mxu0 0.0
    %937 = vmatpush1.msra.mxu0 0.0
    %938 = vmatprep.mubr.f32.mxu0 0.0
    %939 = vmatmul.mubr.f32.gmra.mrb[0].mxu0 %v869
    %v940 = vpop.f32.mrb[0].mxu0
    %v941 = vadd.f32 0.0, %v940
    %v942 = vpop.f32.mrb[0].mxu0
    %943 = vmatprep.mubr.f32.mxu0 0.0
    %944 = vmatmul.mubr.f32.gmra.mrb[0].mxu0 %v872
    %v945 = vpop.f32.mrb[0].mxu0
    %v946 = vadd.f32 0.0, %v945
    %v947 = vpop.f32.mrb[0].mxu0
    %948 = vdwg.mxu0
    %v950 = vsel %vm212, %v459, 0
    %v953 = vsel %vm212, %v535, 0
    %955 = vmatprep.subr.mxu0 0.0
    %956 = vmatpush1.msra.mxu0 %v205
    %957 = vmatprep.subr.mxu0 0.0
    %958 = vmatpush1.msra.mxu0 0.0
    %959 = vmatprep.subr.mxu0 0.0
    %960 = vmatpush1.msra.mxu0 0.0
    %961 = vmatprep.subr.mxu0 0.0
    %962 = vmatpush1.msra.mxu0 0.0
    %963 = vmatprep.subr.mxu0 0.0
    %964 = vmatpush1.msra.mxu0 0.0
    %965 = vmatprep.subr.mxu0 0.0
    %966 = vmatpush1.msra.mxu0 0.0
    %967 = vmatprep.subr.mxu0 0.0
    %968 = vmatpush1.msra.mxu0 0.0
    %969 = vmatprep.subr.mxu0 0.0
    %970 = vmatpush1.msra.mxu0 0.0
    %971 = vmatprep.subr.mxu0 0.0
    %972 = vmatpush1.msra.mxu0 0.0
    %973 = vmatprep.subr.mxu0 0.0
    %974 = vmatpush1.msra.mxu0 0.0
    %975 = vmatprep.subr.mxu0 0.0
    %976 = vmatpush1.msra.mxu0 0.0
    %977 = vmatprep.subr.mxu0 0.0
    %978 = vmatpush1.msra.mxu0 0.0
    %979 = vmatprep.subr.mxu0 0.0
    %980 = vmatpush1.msra.mxu0 0.0
    %981 = vmatprep.subr.mxu0 0.0
    %982 = vmatpush1.msra.mxu0 0.0
    %983 = vmatprep.subr.mxu0 0.0
    %984 = vmatpush1.msra.mxu0 0.0
    %985 = vmatprep.subr.mxu0 0.0
    %986 = vmatpush1.msra.mxu0 0.0
    %987 = vmatprep.subr.mxu0 0.0
    %988 = vmatpush1.msra.mxu0 0.0
    %989 = vmatprep.subr.mxu0 0.0
    %990 = vmatpush1.msra.mxu0 0.0
    %991 = vmatprep.subr.mxu0 0.0
    %992 = vmatpush1.msra.mxu0 0.0
    %993 = vmatprep.subr.mxu0 0.0
    %994 = vmatpush1.msra.mxu0 0.0
    %995 = vmatprep.subr.mxu0 0.0
    %996 = vmatpush1.msra.mxu0 0.0
    %997 = vmatprep.subr.mxu0 0.0
    %998 = vmatpush1.msra.mxu0 0.0
    %999 = vmatprep.subr.mxu0 0.0
    %1000 = vmatpush1.msra.mxu0 0.0
    %1001 = vmatprep.subr.mxu0 0.0
    %1002 = vmatpush1.msra.mxu0 0.0
    %1003 = vmatprep.subr.mxu0 0.0
    %1004 = vmatpush1.msra.mxu0 0.0
    %1005 = vmatprep.subr.mxu0 0.0
    %1006 = vmatpush1.msra.mxu0 0.0
    %1007 = vmatprep.subr.mxu0 0.0
    %1008 = vmatpush1.msra.mxu0 0.0
    %1009 = vmatprep.subr.mxu0 0.0
    %1010 = vmatpush1.msra.mxu0 0.0
    %1011 = vmatprep.subr.mxu0 0.0
    %1012 = vmatpush1.msra.mxu0 0.0
    %1013 = vmatprep.subr.mxu0 0.0
    %1014 = vmatpush1.msra.mxu0 0.0
    %1015 = vmatprep.subr.mxu0 0.0
    %1016 = vmatpush1.msra.mxu0 0.0
    %1017 = vmatprep.subr.mxu0 0.0
    %1018 = vmatpush1.msra.mxu0 0.0
    %1019 = vmatprep.mubr.f32.mxu0 0.0
    %1020 = vmatmul.mubr.f32.gmra.mrb[0].mxu0 %v950
    %v1021 = vpop.f32.mrb[0].mxu0
    %v1022 = vadd.f32 %v941, %v1021
    %v1023 = vpop.f32.mrb[0].mxu0
    %1024 = vmatprep.mubr.f32.mxu0 0.0
    %1025 = vmatmul.mubr.f32.gmra.mrb[0].mxu0 %v953
    %v1026 = vpop.f32.mrb[0].mxu0
    %v1027 = vadd.f32 %v946, %v1026
    %v1028 = vpop.f32.mrb[0].mxu0
    %1029 = vdwg.mxu0
    %1030 = vrot.lane.b32.xlu0 %v197, 112
    %v1031 = vpop.permute.xlu0 %1030
    %1032 = vrot.lane.b32.xlu0 %v197, 80
    %v1033 = vpop.permute.xlu0 %1032
    %v1034 = vsel %vm212, %v1031, 0
    %v1036 = vsel %vm212, %v1033, 0
    %1038 = vmatprep.subr.mxu0 0.0
    %1039 = vmatpush1.xpose.msra.mxu0 %v1036
    %1040 = vmatprep.subr.mxu0 0.0
    %1041 = vmatpush1.xpose.msra.mxu0 0.0
    %1042 = vmatprep.subr.mxu0 0.0
    %1043 = vmatpush1.xpose.msra.mxu0 0.0
    %1044 = vmatprep.subr.mxu0 0.0
    %1045 = vmatpush1.xpose.msra.mxu0 0.0
    %1046 = vmatprep.subr.mxu0 0.0
    %1047 = vmatpush1.xpose.msra.mxu0 0.0
    %1048 = vmatprep.subr.mxu0 0.0
    %1049 = vmatpush1.xpose.msra.mxu0 0.0
    %1050 = vmatprep.subr.mxu0 0.0
    %1051 = vmatpush1.xpose.msra.mxu0 0.0
    %1052 = vmatprep.subr.mxu0 0.0
    %1053 = vmatpush1.xpose.msra.mxu0 0.0
    %1054 = vmatprep.subr.mxu0 0.0
    %1055 = vmatpush1.xpose.msra.mxu0 0.0
    %1056 = vmatprep.subr.mxu0 0.0
    %1057 = vmatpush1.xpose.msra.mxu0 0.0
    %1058 = vmatprep.subr.mxu0 0.0
    %1059 = vmatpush1.xpose.msra.mxu0 0.0
    %1060 = vmatprep.subr.mxu0 0.0
    %1061 = vmatpush1.xpose.msra.mxu0 0.0
    %1062 = vmatprep.subr.mxu0 0.0
    %1063 = vmatpush1.xpose.msra.mxu0 0.0
    %1064 = vmatprep.subr.mxu0 0.0
    %1065 = vmatpush1.xpose.msra.mxu0 0.0
    %1066 = vmatprep.subr.mxu0 0.0
    %1067 = vmatpush1.xpose.msra.mxu0 0.0
    %1068 = vmatprep.subr.mxu0 0.0
    %1069 = vmatpush1.xpose.msra.mxu0 0.0
    %1070 = vmatprep.subr.mxu0 0.0
    %1071 = vmatpush1.xpose.msra.mxu0 0.0
    %1072 = vmatprep.subr.mxu0 0.0
    %1073 = vmatpush1.xpose.msra.mxu0 0.0
    %1074 = vmatprep.subr.mxu0 0.0
    %1075 = vmatpush1.xpose.msra.mxu0 0.0
    %1076 = vmatprep.subr.mxu0 0.0
    %1077 = vmatpush1.xpose.msra.mxu0 0.0
    %1078 = vmatprep.subr.mxu0 0.0
    %1079 = vmatpush1.xpose.msra.mxu0 0.0
    %1080 = vmatprep.subr.mxu0 0.0
    %1081 = vmatpush1.xpose.msra.mxu0 0.0
    %1082 = vmatprep.subr.mxu0 0.0
    %1083 = vmatpush1.xpose.msra.mxu0 0.0
    %1084 = vmatprep.subr.mxu0 0.0
    %1085 = vmatpush1.xpose.msra.mxu0 0.0
    %1086 = vmatprep.subr.mxu0 0.0
    %1087 = vmatpush1.xpose.msra.mxu0 0.0
    %1088 = vmatprep.subr.mxu0 0.0
    %1089 = vmatpush1.xpose.msra.mxu0 0.0
    %1090 = vmatprep.subr.mxu0 0.0
    %1091 = vmatpush1.xpose.msra.mxu0 0.0
    %1092 = vmatprep.subr.mxu0 0.0
    %1093 = vmatpush1.xpose.msra.mxu0 0.0
    %1094 = vmatprep.subr.mxu0 0.0
    %1095 = vmatpush1.xpose.msra.mxu0 0.0
    %1096 = vmatprep.subr.mxu0 0.0
    %1097 = vmatpush1.xpose.msra.mxu0 0.0
    %1098 = vmatprep.subr.mxu0 0.0
    %1099 = vmatpush1.xpose.msra.mxu0 0.0
    %1100 = vmatprep.subr.mxu0 0.0
    %1101 = vmatpush1.xpose.msra.mxu0 0.0
    %1102 = vmatprep.mubr.f32.mxu0 0.0
    %1103 = vmatmul.mubr.f32.gmra.mrb[0].mxu0 %v1034
    %v1104 = vpop.f32.mrb[0].mxu0
    %v1105 = vadd.f32 0.0, %v1104
    %v1106 = vpop.f32.mrb[0].mxu0
    %1107 = vdwg.mxu0
    %1108 = vrot.lane.b32.xlu0 %v202, 112
    %v1109 = vpop.permute.xlu0 %1108
    %1110 = vrot.lane.b32.xlu0 %v202, 80
    %v1111 = vpop.permute.xlu0 %1110
    %v1112 = vsel %vm212, %v1109, 0
    %v1114 = vsel %vm212, %v1111, 0
    %1116 = vmatprep.subr.mxu0 0.0
    %1117 = vmatpush1.xpose.msra.mxu0 %v1114
    %1118 = vmatprep.subr.mxu0 0.0
    %1119 = vmatpush1.xpose.msra.mxu0 0.0
    %1120 = vmatprep.subr.mxu0 0.0
    %1121 = vmatpush1.xpose.msra.mxu0 0.0
    %1122 = vmatprep.subr.mxu0 0.0
    %1123 = vmatpush1.xpose.msra.mxu0 0.0
    %1124 = vmatprep.subr.mxu0 0.0
    %1125 = vmatpush1.xpose.msra.mxu0 0.0
    %1126 = vmatprep.subr.mxu0 0.0
    %1127 = vmatpush1.xpose.msra.mxu0 0.0
    %1128 = vmatprep.subr.mxu0 0.0
    %1129 = vmatpush1.xpose.msra.mxu0 0.0
    %1130 = vmatprep.subr.mxu0 0.0
    %1131 = vmatpush1.xpose.msra.mxu0 0.0
    %1132 = vmatprep.subr.mxu0 0.0
    %1133 = vmatpush1.xpose.msra.mxu0 0.0
    %1134 = vmatprep.subr.mxu0 0.0
    %1135 = vmatpush1.xpose.msra.mxu0 0.0
    %1136 = vmatprep.subr.mxu0 0.0
    %1137 = vmatpush1.xpose.msra.mxu0 0.0
    %1138 = vmatprep.subr.mxu0 0.0
    %1139 = vmatpush1.xpose.msra.mxu0 0.0
    %1140 = vmatprep.subr.mxu0 0.0
    %1141 = vmatpush1.xpose.msra.mxu0 0.0
    %1142 = vmatprep.subr.mxu0 0.0
    %1143 = vmatpush1.xpose.msra.mxu0 0.0
    %1144 = vmatprep.subr.mxu0 0.0
    %1145 = vmatpush1.xpose.msra.mxu0 0.0
    %1146 = vmatprep.subr.mxu0 0.0
    %1147 = vmatpush1.xpose.msra.mxu0 0.0
    %1148 = vmatprep.subr.mxu0 0.0
    %1149 = vmatpush1.xpose.msra.mxu0 0.0
    %1150 = vmatprep.subr.mxu0 0.0
    %1151 = vmatpush1.xpose.msra.mxu0 0.0
    %1152 = vmatprep.subr.mxu0 0.0
    %1153 = vmatpush1.xpose.msra.mxu0 0.0
    %1154 = vmatprep.subr.mxu0 0.0
    %1155 = vmatpush1.xpose.msra.mxu0 0.0
    %1156 = vmatprep.subr.mxu0 0.0
    %1157 = vmatpush1.xpose.msra.mxu0 0.0
    %1158 = vmatprep.subr.mxu0 0.0
    %1159 = vmatpush1.xpose.msra.mxu0 0.0
    %1160 = vmatprep.subr.mxu0 0.0
    %1161 = vmatpush1.xpose.msra.mxu0 0.0
    %1162 = vmatprep.subr.mxu0 0.0
    %1163 = vmatpush1.xpose.msra.mxu0 0.0
    %1164 = vmatprep.subr.mxu0 0.0
    %1165 = vmatpush1.xpose.msra.mxu0 0.0
    %1166 = vmatprep.subr.mxu0 0.0
    %1167 = vmatpush1.xpose.msra.mxu0 0.0
    %1168 = vmatprep.subr.mxu0 0.0
    %1169 = vmatpush1.xpose.msra.mxu0 0.0
    %1170 = vmatprep.subr.mxu0 0.0
    %1171 = vmatpush1.xpose.msra.mxu0 0.0
    %1172 = vmatprep.subr.mxu0 0.0
    %1173 = vmatpush1.xpose.msra.mxu0 0.0
    %1174 = vmatprep.subr.mxu0 0.0
    %1175 = vmatpush1.xpose.msra.mxu0 0.0
    %1176 = vmatprep.subr.mxu0 0.0
    %1177 = vmatpush1.xpose.msra.mxu0 0.0
    %1178 = vmatprep.subr.mxu0 0.0
    %1179 = vmatpush1.xpose.msra.mxu0 0.0
    %1180 = vmatprep.mubr.f32.mxu0 0.0
    %1181 = vmatmul.mubr.f32.gmra.mrb[0].mxu0 %v1112
    %v1182 = vpop.f32.mrb[0].mxu0
    %v1183 = vadd.f32 0.0, %v1182
    %v1184 = vpop.f32.mrb[0].mxu0
    %1185 = vdwg.mxu0
    %v1186 = vsel %vm212, %v1105, -inf
    %1187 = vmax.xlane.f32.xlu0 %v1186
    %v1188 = vpop.xlane.xlu0 %1187
    %v1189 = vsel %vm212, %v1183, -inf
    %1190 = vmax.xlane.f32.xlu0 %v1189
    %v1191 = vpop.xlane.xlu0 %1190
    %v1192 = vsub.f32 %v1105, %v1188
    %v1193 = vsub.f32 %v1183, %v1191
    %v1194 = vmul.f32 %v1192, 1.442695
    %v1195 = vpow.pop %v1194
    %v1196 = vmul.f32 %v1193, 1.442695
    %v1197 = vpow.pop %v1196
    %v1198 = vsel %vm212, %v1195, 0.0
    %1199 = vadd.xlane.f32.xlu0 %v1198
    %v1200 = vpop.xlane.xlu0 %1199
    %v1201 = vsel %vm212, %v1197, 0.0
    %1202 = vadd.xlane.f32.xlu0 %v1201
    %v1203 = vpop.xlane.xlu0 %1202
    %v1204 = vrcp.pop %v1200
    %v1205 = vrcp.pop %v1203
    %v1206 = vmul.f32 %v1195, %v1204
    %v1207 = vmul.f32 %v1197, %v1205
    %1208 = vrot.lane.b32.xlu0 %v197, 48
    %v1209 = vpop.permute.xlu0 %1208
    %v1212 = vsel %vm212, %v1206, 0
    %1214 = vmatprep.subr.mxu0 0.0
    %1215 = vmatpush1.msra.mxu0 %v1209
    %1216 = vmatprep.subr.mxu0 0.0
    %1217 = vmatpush1.msra.mxu0 0.0
    %1218 = vmatprep.subr.mxu0 0.0
    %1219 = vmatpush1.msra.mxu0 0.0
    %1220 = vmatprep.subr.mxu0 0.0
    %1221 = vmatpush1.msra.mxu0 0.0
    %1222 = vmatprep.subr.mxu0 0.0
    %1223 = vmatpush1.msra.mxu0 0.0
    %1224 = vmatprep.subr.mxu0 0.0
    %1225 = vmatpush1.msra.mxu0 0.0
    %1226 = vmatprep.subr.mxu0 0.0
    %1227 = vmatpush1.msra.mxu0 0.0
    %1228 = vmatprep.subr.mxu0 0.0
    %1229 = vmatpush1.msra.mxu0 0.0
    %1230 = vmatprep.subr.mxu0 0.0
    %1231 = vmatpush1.msra.mxu0 0.0
    %1232 = vmatprep.subr.mxu0 0.0
    %1233 = vmatpush1.msra.mxu0 0.0
    %1234 = vmatprep.subr.mxu0 0.0
    %1235 = vmatpush1.msra.mxu0 0.0
    %1236 = vmatprep.subr.mxu0 0.0
    %1237 = vmatpush1.msra.mxu0 0.0
    %1238 = vmatprep.subr.mxu0 0.0
    %1239 = vmatpush1.msra.mxu0 0.0
    %1240 = vmatprep.subr.mxu0 0.0
    %1241 = vmatpush1.msra.mxu0 0.0
    %1242 = vmatprep.subr.mxu0 0.0
    %1243 = vmatpush1.msra.mxu0 0.0
    %1244 = vmatprep.subr.mxu0 0.0
    %1245 = vmatpush1.msra.mxu0 0.0
    %1246 = vmatprep.subr.mxu0 0.0
    %1247 = vmatpush1.msra.mxu0 0.0
    %1248 = vmatprep.subr.mxu0 0.0
    %1249 = vmatpush1.msra.mxu0 0.0
    %1250 = vmatprep.subr.mxu0 0.0
    %1251 = vmatpush1.msra.mxu0 0.0
    %1252 = vmatprep.subr.mxu0 0.0
    %1253 = vmatpush1.msra.mxu0 0.0
    %1254 = vmatprep.subr.mxu0 0.0
    %1255 = vmatpush1.msra.mxu0 0.0
    %1256 = vmatprep.subr.mxu0 0.0
    %1257 = vmatpush1.msra.mxu0 0.0
    %1258 = vmatprep.subr.mxu0 0.0
    %1259 = vmatpush1.msra.mxu0 0.0
    %1260 = vmatprep.subr.mxu0 0.0
    %1261 = vmatpush1.msra.mxu0 0.0
    %1262 = vmatprep.subr.mxu0 0.0
    %1263 = vmatpush1.msra.mxu0 0.0
    %1264 = vmatprep.subr.mxu0 0.0
    %1265 = vmatpush1.msra.mxu0 0.0
    %1266 = vmatprep.subr.mxu0 0.0
    %1267 = vmatpush1.msra.mxu0 0.0
    %1268 = vmatprep.subr.mxu0 0.0
    %1269 = vmatpush1.msra.mxu0 0.0
    %1270 = vmatprep.subr.mxu0 0.0
    %1271 = vmatpush1.msra.mxu0 0.0
    %1272 = vmatprep.subr.mxu0 0.0
    %1273 = vmatpush1.msra.mxu0 0.0
    %1274 = vmatprep.subr.mxu0 0.0
    %1275 = vmatpush1.msra.mxu0 0.0
    %1276 = vmatprep.subr.mxu0 0.0
    %1277 = vmatpush1.msra.mxu0 0.0
    %1278 = vmatprep.mubr.f32.mxu0 0.0
    %1279 = vmatmul.mubr.f32.gmra.mrb[0].mxu0 %v1212
    %v1280 = vpop.f32.mrb[0].mxu0
    %v1281 = vadd.f32 0.0, %v1280
    %v1282 = vpop.f32.mrb[0].mxu0
    %1283 = vdwg.mxu0
    %1284 = vrot.lane.b32.xlu0 %v202, 48
    %v1285 = vpop.permute.xlu0 %1284
    %v1288 = vsel %vm212, %v1207, 0
    %1290 = vmatprep.subr.mxu0 0.0
    %1291 = vmatpush1.msra.mxu0 %v1285
    %1292 = vmatprep.subr.mxu0 0.0
    %1293 = vmatpush1.msra.mxu0 0.0
    %1294 = vmatprep.subr.mxu0 0.0
    %1295 = vmatpush1.msra.mxu0 0.0
    %1296 = vmatprep.subr.mxu0 0.0
    %1297 = vmatpush1.msra.mxu0 0.0
    %1298 = vmatprep.subr.mxu0 0.0
    %1299 = vmatpush1.msra.mxu0 0.0
    %1300 = vmatprep.subr.mxu0 0.0
    %1301 = vmatpush1.msra.mxu0 0.0
    %1302 = vmatprep.subr.mxu0 0.0
    %1303 = vmatpush1.msra.mxu0 0.0
    %1304 = vmatprep.subr.mxu0 0.0
    %1305 = vmatpush1.msra.mxu0 0.0
    %1306 = vmatprep.subr.mxu0 0.0
    %1307 = vmatpush1.msra.mxu0 0.0
    %1308 = vmatprep.subr.mxu0 0.0
    %1309 = vmatpush1.msra.mxu0 0.0
    %1310 = vmatprep.subr.mxu0 0.0
    %1311 = vmatpush1.msra.mxu0 0.0
    %1312 = vmatprep.subr.mxu0 0.0
    %1313 = vmatpush1.msra.mxu0 0.0
    %1314 = vmatprep.subr.mxu0 0.0
    %1315 = vmatpush1.msra.mxu0 0.0
    %1316 = vmatprep.subr.mxu0 0.0
    %1317 = vmatpush1.msra.mxu0 0.0
    %1318 = vmatprep.subr.mxu0 0.0
    %1319 = vmatpush1.msra.mxu0 0.0
    %1320 = vmatprep.subr.mxu0 0.0
    %1321 = vmatpush1.msra.mxu0 0.0
    %1322 = vmatprep.subr.mxu0 0.0
    %1323 = vmatpush1.msra.mxu0 0.0
    %1324 = vmatprep.subr.mxu0 0.0
    %1325 = vmatpush1.msra.mxu0 0.0
    %1326 = vmatprep.subr.mxu0 0.0
    %1327 = vmatpush1.msra.mxu0 0.0
    %1328 = vmatprep.subr.mxu0 0.0
    %1329 = vmatpush1.msra.mxu0 0.0
    %1330 = vmatprep.subr.mxu0 0.0
    %1331 = vmatpush1.msra.mxu0 0.0
    %1332 = vmatprep.subr.mxu0 0.0
    %1333 = vmatpush1.msra.mxu0 0.0
    %1334 = vmatprep.subr.mxu0 0.0
    %1335 = vmatpush1.msra.mxu0 0.0
    %1336 = vmatprep.subr.mxu0 0.0
    %1337 = vmatpush1.msra.mxu0 0.0
    %1338 = vmatprep.subr.mxu0 0.0
    %1339 = vmatpush1.msra.mxu0 0.0
    %1340 = vmatprep.subr.mxu0 0.0
    %1341 = vmatpush1.msra.mxu0 0.0
    %1342 = vmatprep.subr.mxu0 0.0
    %1343 = vmatpush1.msra.mxu0 0.0
    %1344 = vmatprep.subr.mxu0 0.0
    %1345 = vmatpush1.msra.mxu0 0.0
    %1346 = vmatprep.subr.mxu0 0.0
    %1347 = vmatpush1.msra.mxu0 0.0
    %1348 = vmatprep.subr.mxu0 0.0
    %1349 = vmatpush1.msra.mxu0 0.0
    %1350 = vmatprep.subr.mxu0 0.0
    %1351 = vmatpush1.msra.mxu0 0.0
    %1352 = vmatprep.subr.mxu0 0.0
    %1353 = vmatpush1.msra.mxu0 0.0
    %1354 = vmatprep.mubr.f32.mxu0 0.0
    %1355 = vmatmul.mubr.f32.gmra.mrb[0].mxu0 %v1288
    %v1356 = vpop.f32.mrb[0].mxu0
    %v1357 = vadd.f32 0.0, %v1356
    %v1358 = vpop.f32.mrb[0].mxu0
    %1359 = vdwg.mxu0
    %v1361 = vsel %vm212, %v1281, 0
    %v1364 = vsel %vm212, %v1357, 0
    %1366 = vmatprep.subr.mxu0 0.0
    %1367 = vmatpush1.msra.mxu0 %v207
    %1368 = vmatprep.subr.mxu0 0.0
    %1369 = vmatpush1.msra.mxu0 0.0
    %1370 = vmatprep.subr.mxu0 0.0
    %1371 = vmatpush1.msra.mxu0 0.0
    %1372 = vmatprep.subr.mxu0 0.0
    %1373 = vmatpush1.msra.mxu0 0.0
    %1374 = vmatprep.subr.mxu0 0.0
    %1375 = vmatpush1.msra.mxu0 0.0
    %1376 = vmatprep.subr.mxu0 0.0
    %1377 = vmatpush1.msra.mxu0 0.0
    %1378 = vmatprep.subr.mxu0 0.0
    %1379 = vmatpush1.msra.mxu0 0.0
    %1380 = vmatprep.subr.mxu0 0.0
    %1381 = vmatpush1.msra.mxu0 0.0
    %1382 = vmatprep.subr.mxu0 0.0
    %1383 = vmatpush1.msra.mxu0 0.0
    %1384 = vmatprep.subr.mxu0 0.0
    %1385 = vmatpush1.msra.mxu0 0.0
    %1386 = vmatprep.subr.mxu0 0.0
    %1387 = vmatpush1.msra.mxu0 0.0
    %1388 = vmatprep.subr.mxu0 0.0
    %1389 = vmatpush1.msra.mxu0 0.0
    %1390 = vmatprep.subr.mxu0 0.0
    %1391 = vmatpush1.msra.mxu0 0.0
    %1392 = vmatprep.subr.mxu0 0.0
    %1393 = vmatpush1.msra.mxu0 0.0
    %1394 = vmatprep.subr.mxu0 0.0
    %1395 = vmatpush1.msra.mxu0 0.0
    %1396 = vmatprep.subr.mxu0 0.0
    %1397 = vmatpush1.msra.mxu0 0.0
    %1398 = vmatprep.subr.mxu0 0.0
    %1399 = vmatpush1.msra.mxu0 0.0
    %1400 = vmatprep.subr.mxu0 0.0
    %1401 = vmatpush1.msra.mxu0 0.0
    %1402 = vmatprep.subr.mxu0 0.0
    %1403 = vmatpush1.msra.mxu0 0.0
    %1404 = vmatprep.subr.mxu0 0.0
    %1405 = vmatpush1.msra.mxu0 0.0
    %1406 = vmatprep.subr.mxu0 0.0
    %1407 = vmatpush1.msra.mxu0 0.0
    %1408 = vmatprep.subr.mxu0 0.0
    %1409 = vmatpush1.msra.mxu0 0.0
    %1410 = vmatprep.subr.mxu0 0.0
    %1411 = vmatpush1.msra.mxu0 0.0
    %1412 = vmatprep.subr.mxu0 0.0
    %1413 = vmatpush1.msra.mxu0 0.0
    %1414 = vmatprep.subr.mxu0 0.0
    %1415 = vmatpush1.msra.mxu0 0.0
    %1416 = vmatprep.subr.mxu0 0.0
    %1417 = vmatpush1.msra.mxu0 0.0
    %1418 = vmatprep.subr.mxu0 0.0
    %1419 = vmatpush1.msra.mxu0 0.0
    %1420 = vmatprep.subr.mxu0 0.0
    %1421 = vmatpush1.msra.mxu0 0.0
    %1422 = vmatprep.subr.mxu0 0.0
    %1423 = vmatpush1.msra.mxu0 0.0
    %1424 = vmatprep.subr.mxu0 0.0
    %1425 = vmatpush1.msra.mxu0 0.0
    %1426 = vmatprep.subr.mxu0 0.0
    %1427 = vmatpush1.msra.mxu0 0.0
    %1428 = vmatprep.subr.mxu0 0.0
    %1429 = vmatpush1.msra.mxu0 0.0
    %1430 = vmatprep.mubr.f32.mxu0 0.0
    %1431 = vmatmul.mubr.f32.gmra.mrb[0].mxu0 %v1361
    %v1432 = vpop.f32.mrb[0].mxu0
    %v1433 = vadd.f32 0.0, %v1432
    %v1434 = vpop.f32.mrb[0].mxu0
    %1435 = vmatprep.mubr.f32.mxu0 0.0
    %1436 = vmatmul.mubr.f32.gmra.mrb[0].mxu0 %v1364
    %v1437 = vpop.f32.mrb[0].mxu0
    %v1438 = vadd.f32 0.0, %v1437
    %v1439 = vpop.f32.mrb[0].mxu0
    %1440 = vdwg.mxu0
    %v1441 = vadd.f32 %v1022, %v1433
    %v1442 = vadd.f32 %v1027, %v1438
    %1443 = vrot.lane.b32.xlu0 %v197, 104
    %v1444 = vpop.permute.xlu0 %1443
    %1445 = vrot.lane.b32.xlu0 %v197, 72
    %v1446 = vpop.permute.xlu0 %1445
    %v1447 = vsel %vm212, %v1444, 0
    %v1449 = vsel %vm212, %v1446, 0
    %1451 = vmatprep.subr.mxu0 0.0
    %1452 = vmatpush1.xpose.msra.mxu0 %v1449
    %1453 = vmatprep.subr.mxu0 0.0
    %1454 = vmatpush1.xpose.msra.mxu0 0.0
    %1455 = vmatprep.subr.mxu0 0.0
    %1456 = vmatpush1.xpose.msra.mxu0 0.0
    %1457 = vmatprep.subr.mxu0 0.0
    %1458 = vmatpush1.xpose.msra.mxu0 0.0
    %1459 = vmatprep.subr.mxu0 0.0
    %1460 = vmatpush1.xpose.msra.mxu0 0.0
    %1461 = vmatprep.subr.mxu0 0.0
    %1462 = vmatpush1.xpose.msra.mxu0 0.0
    %1463 = vmatprep.subr.mxu0 0.0
    %1464 = vmatpush1.xpose.msra.mxu0 0.0
    %1465 = vmatprep.subr.mxu0 0.0
    %1466 = vmatpush1.xpose.msra.mxu0 0.0
    %1467 = vmatprep.subr.mxu0 0.0
    %1468 = vmatpush1.xpose.msra.mxu0 0.0
    %1469 = vmatprep.subr.mxu0 0.0
    %1470 = vmatpush1.xpose.msra.mxu0 0.0
    %1471 = vmatprep.subr.mxu0 0.0
    %1472 = vmatpush1.xpose.msra.mxu0 0.0
    %1473 = vmatprep.subr.mxu0 0.0
    %1474 = vmatpush1.xpose.msra.mxu0 0.0
    %1475 = vmatprep.subr.mxu0 0.0
    %1476 = vmatpush1.xpose.msra.mxu0 0.0
    %1477 = vmatprep.subr.mxu0 0.0
    %1478 = vmatpush1.xpose.msra.mxu0 0.0
    %1479 = vmatprep.subr.mxu0 0.0
    %1480 = vmatpush1.xpose.msra.mxu0 0.0
    %1481 = vmatprep.subr.mxu0 0.0
    %1482 = vmatpush1.xpose.msra.mxu0 0.0
    %1483 = vmatprep.subr.mxu0 0.0
    %1484 = vmatpush1.xpose.msra.mxu0 0.0
    %1485 = vmatprep.subr.mxu0 0.0
    %1486 = vmatpush1.xpose.msra.mxu0 0.0
    %1487 = vmatprep.subr.mxu0 0.0
    %1488 = vmatpush1.xpose.msra.mxu0 0.0
    %1489 = vmatprep.subr.mxu0 0.0
    %1490 = vmatpush1.xpose.msra.mxu0 0.0
    %1491 = vmatprep.subr.mxu0 0.0
    %1492 = vmatpush1.xpose.msra.mxu0 0.0
    %1493 = vmatprep.subr.mxu0 0.0
    %1494 = vmatpush1.xpose.msra.mxu0 0.0
    %1495 = vmatprep.subr.mxu0 0.0
    %1496 = vmatpush1.xpose.msra.mxu0 0.0
    %1497 = vmatprep.subr.mxu0 0.0
    %1498 = vmatpush1.xpose.msra.mxu0 0.0
    %1499 = vmatprep.subr.mxu0 0.0
    %1500 = vmatpush1.xpose.msra.mxu0 0.0
    %1501 = vmatprep.subr.mxu0 0.0
    %1502 = vmatpush1.xpose.msra.mxu0 0.0
    %1503 = vmatprep.subr.mxu0 0.0
    %1504 = vmatpush1.xpose.msra.mxu0 0.0
    %1505 = vmatprep.subr.mxu0 0.0
    %1506 = vmatpush1.xpose.msra.mxu0 0.0
    %1507 = vmatprep.subr.mxu0 0.0
    %1508 = vmatpush1.xpose.msra.mxu0 0.0
    %1509 = vmatprep.subr.mxu0 0.0
    %1510 = vmatpush1.xpose.msra.mxu0 0.0
    %1511 = vmatprep.subr.mxu0 0.0
    %1512 = vmatpush1.xpose.msra.mxu0 0.0
    %1513 = vmatprep.subr.mxu0 0.0
    %1514 = vmatpush1.xpose.msra.mxu0 0.0
    %1515 = vmatprep.mubr.f32.mxu0 0.0
    %1516 = vmatmul.mubr.f32.gmra.mrb[0].mxu0 %v1447
    %v1517 = vpop.f32.mrb[0].mxu0
    %v1518 = vadd.f32 0.0, %v1517
    %v1519 = vpop.f32.mrb[0].mxu0
    %1520 = vdwg.mxu0
    %1521 = vrot.lane.b32.xlu0 %v202, 104
    %v1522 = vpop.permute.xlu0 %1521
    %1523 = vrot.lane.b32.xlu0 %v202, 72
    %v1524 = vpop.permute.xlu0 %1523
    %v1525 = vsel %vm212, %v1522, 0
    %v1527 = vsel %vm212, %v1524, 0
    %1529 = vmatprep.subr.mxu0 0.0
    %1530 = vmatpush1.xpose.msra.mxu0 %v1527
    %1531 = vmatprep.subr.mxu0 0.0
    %1532 = vmatpush1.xpose.msra.mxu0 0.0
    %1533 = vmatprep.subr.mxu0 0.0
    %1534 = vmatpush1.xpose.msra.mxu0 0.0
    %1535 = vmatprep.subr.mxu0 0.0
    %1536 = vmatpush1.xpose.msra.mxu0 0.0
    %1537 = vmatprep.subr.mxu0 0.0
    %1538 = vmatpush1.xpose.msra.mxu0 0.0
    %1539 = vmatprep.subr.mxu0 0.0
    %1540 = vmatpush1.xpose.msra.mxu0 0.0
    %1541 = vmatprep.subr.mxu0 0.0
    %1542 = vmatpush1.xpose.msra.mxu0 0.0
    %1543 = vmatprep.subr.mxu0 0.0
    %1544 = vmatpush1.xpose.msra.mxu0 0.0
    %1545 = vmatprep.subr.mxu0 0.0
    %1546 = vmatpush1.xpose.msra.mxu0 0.0
    %1547 = vmatprep.subr.mxu0 0.0
    %1548 = vmatpush1.xpose.msra.mxu0 0.0
    %1549 = vmatprep.subr.mxu0 0.0
    %1550 = vmatpush1.xpose.msra.mxu0 0.0
    %1551 = vmatprep.subr.mxu0 0.0
    %1552 = vmatpush1.xpose.msra.mxu0 0.0
    %1553 = vmatprep.subr.mxu0 0.0
    %1554 = vmatpush1.xpose.msra.mxu0 0.0
    %1555 = vmatprep.subr.mxu0 0.0
    %1556 = vmatpush1.xpose.msra.mxu0 0.0
    %1557 = vmatprep.subr.mxu0 0.0
    %1558 = vmatpush1.xpose.msra.mxu0 0.0
    %1559 = vmatprep.subr.mxu0 0.0
    %1560 = vmatpush1.xpose.msra.mxu0 0.0
    %1561 = vmatprep.subr.mxu0 0.0
    %1562 = vmatpush1.xpose.msra.mxu0 0.0
    %1563 = vmatprep.subr.mxu0 0.0
    %1564 = vmatpush1.xpose.msra.mxu0 0.0
    %1565 = vmatprep.subr.mxu0 0.0
    %1566 = vmatpush1.xpose.msra.mxu0 0.0
    %1567 = vmatprep.subr.mxu0 0.0
    %1568 = vmatpush1.xpose.msra.mxu0 0.0
    %1569 = vmatprep.subr.mxu0 0.0
    %1570 = vmatpush1.xpose.msra.mxu0 0.0
    %1571 = vmatprep.subr.mxu0 0.0
    %1572 = vmatpush1.xpose.msra.mxu0 0.0
    %1573 = vmatprep.subr.mxu0 0.0
    %1574 = vmatpush1.xpose.msra.mxu0 0.0
    %1575 = vmatprep.subr.mxu0 0.0
    %1576 = vmatpush1.xpose.msra.mxu0 0.0
    %1577 = vmatprep.subr.mxu0 0.0
    %1578 = vmatpush1.xpose.msra.mxu0 0.0
    %1579 = vmatprep.subr.mxu0 0.0
    %1580 = vmatpush1.xpose.msra.mxu0 0.0
    %1581 = vmatprep.subr.mxu0 0.0
    %1582 = vmatpush1.xpose.msra.mxu0 0.0
    %1583 = vmatprep.subr.mxu0 0.0
    %1584 = vmatpush1.xpose.msra.mxu0 0.0
    %1585 = vmatprep.subr.mxu0 0.0
    %1586 = vmatpush1.xpose.msra.mxu0 0.0
    %1587 = vmatprep.subr.mxu0 0.0
    %1588 = vmatpush1.xpose.msra.mxu0 0.0
    %1589 = vmatprep.subr.mxu0 0.0
    %1590 = vmatpush1.xpose.msra.mxu0 0.0
    %1591 = vmatprep.subr.mxu0 0.0
    %1592 = vmatpush1.xpose.msra.mxu0 0.0
    %1593 = vmatprep.mubr.f32.mxu0 0.0
    %1594 = vmatmul.mubr.f32.gmra.mrb[0].mxu0 %v1525
    %v1595 = vpop.f32.mrb[0].mxu0
    %v1596 = vadd.f32 0.0, %v1595
    %v1597 = vpop.f32.mrb[0].mxu0
    %1598 = vdwg.mxu0
    %v1599 = vsel %vm212, %v1518, -inf
    %1600 = vmax.xlane.f32.xlu0 %v1599
    %v1601 = vpop.xlane.xlu0 %1600
    %v1602 = vsel %vm212, %v1596, -inf
    %1603 = vmax.xlane.f32.xlu0 %v1602
    %v1604 = vpop.xlane.xlu0 %1603
    %v1605 = vsub.f32 %v1518, %v1601
    %v1606 = vsub.f32 %v1596, %v1604
    %v1607 = vmul.f32 %v1605, 1.442695
    %v1608 = vpow.pop %v1607
    %v1609 = vmul.f32 %v1606, 1.442695
    %v1610 = vpow.pop %v1609
    %v1611 = vsel %vm212, %v1608, 0.0
    %1612 = vadd.xlane.f32.xlu0 %v1611
    %v1613 = vpop.xlane.xlu0 %1612
    %v1614 = vsel %vm212, %v1610, 0.0
    %1615 = vadd.xlane.f32.xlu0 %v1614
    %v1616 = vpop.xlane.xlu0 %1615
    %v1617 = vrcp.pop %v1613
    %v1618 = vrcp.pop %v1616
    %v1619 = vmul.f32 %v1608, %v1617
    %v1620 = vmul.f32 %v1610, %v1618
    %1621 = vrot.lane.b32.xlu0 %v197, 40
    %v1622 = vpop.permute.xlu0 %1621
    %v1625 = vsel %vm212, %v1619, 0
    %1627 = vmatprep.subr.mxu0 0.0
    %1628 = vmatpush1.msra.mxu0 %v1622
    %1629 = vmatprep.subr.mxu0 0.0
    %1630 = vmatpush1.msra.mxu0 0.0
    %1631 = vmatprep.subr.mxu0 0.0
    %1632 = vmatpush1.msra.mxu0 0.0
    %1633 = vmatprep.subr.mxu0 0.0
    %1634 = vmatpush1.msra.mxu0 0.0
    %1635 = vmatprep.subr.mxu0 0.0
    %1636 = vmatpush1.msra.mxu0 0.0
    %1637 = vmatprep.subr.mxu0 0.0
    %1638 = vmatpush1.msra.mxu0 0.0
    %1639 = vmatprep.subr.mxu0 0.0
    %1640 = vmatpush1.msra.mxu0 0.0
    %1641 = vmatprep.subr.mxu0 0.0
    %1642 = vmatpush1.msra.mxu0 0.0
    %1643 = vmatprep.subr.mxu0 0.0
    %1644 = vmatpush1.msra.mxu0 0.0
    %1645 = vmatprep.subr.mxu0 0.0
    %1646 = vmatpush1.msra.mxu0 0.0
    %1647 = vmatprep.subr.mxu0 0.0
    %1648 = vmatpush1.msra.mxu0 0.0
    %1649 = vmatprep.subr.mxu0 0.0
    %1650 = vmatpush1.msra.mxu0 0.0
    %1651 = vmatprep.subr.mxu0 0.0
    %1652 = vmatpush1.msra.mxu0 0.0
    %1653 = vmatprep.subr.mxu0 0.0
    %1654 = vmatpush1.msra.mxu0 0.0
    %1655 = vmatprep.subr.mxu0 0.0
    %1656 = vmatpush1.msra.mxu0 0.0
    %1657 = vmatprep.subr.mxu0 0.0
    %1658 = vmatpush1.msra.mxu0 0.0
    %1659 = vmatprep.subr.mxu0 0.0
    %1660 = vmatpush1.msra.mxu0 0.0
    %1661 = vmatprep.subr.mxu0 0.0
    %1662 = vmatpush1.msra.mxu0 0.0
    %1663 = vmatprep.subr.mxu0 0.0
    %1664 = vmatpush1.msra.mxu0 0.0
    %1665 = vmatprep.subr.mxu0 0.0
    %1666 = vmatpush1.msra.mxu0 0.0
    %1667 = vmatprep.subr.mxu0 0.0
    %1668 = vmatpush1.msra.mxu0 0.0
    %1669 = vmatprep.subr.mxu0 0.0
    %1670 = vmatpush1.msra.mxu0 0.0
    %1671 = vmatprep.subr.mxu0 0.0
    %1672 = vmatpush1.msra.mxu0 0.0
    %1673 = vmatprep.subr.mxu0 0.0
    %1674 = vmatpush1.msra.mxu0 0.0
    %1675 = vmatprep.subr.mxu0 0.0
    %1676 = vmatpush1.msra.mxu0 0.0
    %1677 = vmatprep.subr.mxu0 0.0
    %1678 = vmatpush1.msra.mxu0 0.0
    %1679 = vmatprep.subr.mxu0 0.0
    %1680 = vmatpush1.msra.mxu0 0.0
    %1681 = vmatprep.subr.mxu0 0.0
    %1682 = vmatpush1.msra.mxu0 0.0
    %1683 = vmatprep.subr.mxu0 0.0
    %1684 = vmatpush1.msra.mxu0 0.0
    %1685 = vmatprep.subr.mxu0 0.0
    %1686 = vmatpush1.msra.mxu0 0.0
    %1687 = vmatprep.subr.mxu0 0.0
    %1688 = vmatpush1.msra.mxu0 0.0
    %1689 = vmatprep.subr.mxu0 0.0
    %1690 = vmatpush1.msra.mxu0 0.0
    %1691 = vmatprep.mubr.f32.mxu0 0.0
    %1692 = vmatmul.mubr.f32.gmra.mrb[0].mxu0 %v1625
    %v1693 = vpop.f32.mrb[0].mxu0
    %v1694 = vadd.f32 0.0, %v1693
    %v1695 = vpop.f32.mrb[0].mxu0
    %1696 = vdwg.mxu0
    %1697 = vrot.lane.b32.xlu0 %v202, 40
    %v1698 = vpop.permute.xlu0 %1697
    %v1701 = vsel %vm212, %v1620, 0
    %1703 = vmatprep.subr.mxu0 0.0
    %1704 = vmatpush1.msra.mxu0 %v1698
    %1705 = vmatprep.subr.mxu0 0.0
    %1706 = vmatpush1.msra.mxu0 0.0
    %1707 = vmatprep.subr.mxu0 0.0
    %1708 = vmatpush1.msra.mxu0 0.0
    %1709 = vmatprep.subr.mxu0 0.0
    %1710 = vmatpush1.msra.mxu0 0.0
    %1711 = vmatprep.subr.mxu0 0.0
    %1712 = vmatpush1.msra.mxu0 0.0
    %1713 = vmatprep.subr.mxu0 0.0
    %1714 = vmatpush1.msra.mxu0 0.0
    %1715 = vmatprep.subr.mxu0 0.0
    %1716 = vmatpush1.msra.mxu0 0.0
    %1717 = vmatprep.subr.mxu0 0.0
    %1718 = vmatpush1.msra.mxu0 0.0
    %1719 = vmatprep.subr.mxu0 0.0
    %1720 = vmatpush1.msra.mxu0 0.0
    %1721 = vmatprep.subr.mxu0 0.0
    %1722 = vmatpush1.msra.mxu0 0.0
    %1723 = vmatprep.subr.mxu0 0.0
    %1724 = vmatpush1.msra.mxu0 0.0
    %1725 = vmatprep.subr.mxu0 0.0
    %1726 = vmatpush1.msra.mxu0 0.0
    %1727 = vmatprep.subr.mxu0 0.0
    %1728 = vmatpush1.msra.mxu0 0.0
    %1729 = vmatprep.subr.mxu0 0.0
    %1730 = vmatpush1.msra.mxu0 0.0
    %1731 = vmatprep.subr.mxu0 0.0
    %1732 = vmatpush1.msra.mxu0 0.0
    %1733 = vmatprep.subr.mxu0 0.0
    %1734 = vmatpush1.msra.mxu0 0.0
    %1735 = vmatprep.subr.mxu0 0.0
    %1736 = vmatpush1.msra.mxu0 0.0
    %1737 = vmatprep.subr.mxu0 0.0
    %1738 = vmatpush1.msra.mxu0 0.0
    %1739 = vmatprep.subr.mxu0 0.0
    %1740 = vmatpush1.msra.mxu0 0.0
    %1741 = vmatprep.subr.mxu0 0.0
    %1742 = vmatpush1.msra.mxu0 0.0
    %1743 = vmatprep.subr.mxu0 0.0
    %1744 = vmatpush1.msra.mxu0 0.0
    %1745 = vmatprep.subr.mxu0 0.0
    %1746 = vmatpush1.msra.mxu0 0.0
    %1747 = vmatprep.subr.mxu0 0.0
    %1748 = vmatpush1.msra.mxu0 0.0
    %1749 = vmatprep.subr.mxu0 0.0
    %1750 = vmatpush1.msra.mxu0 0.0
    %1751 = vmatprep.subr.mxu0 0.0
    %1752 = vmatpush1.msra.mxu0 0.0
    %1753 = vmatprep.subr.mxu0 0.0
    %1754 = vmatpush1.msra.mxu0 0.0
    %1755 = vmatprep.subr.mxu0 0.0
    %1756 = vmatpush1.msra.mxu0 0.0
    %1757 = vmatprep.subr.mxu0 0.0
    %1758 = vmatpush1.msra.mxu0 0.0
    %1759 = vmatprep.subr.mxu0 0.0
    %1760 = vmatpush1.msra.mxu0 0.0
    %1761 = vmatprep.subr.mxu0 0.0
    %1762 = vmatpush1.msra.mxu0 0.0
    %1763 = vmatprep.subr.mxu0 0.0
    %1764 = vmatpush1.msra.mxu0 0.0
    %1765 = vmatprep.subr.mxu0 0.0
    %1766 = vmatpush1.msra.mxu0 0.0
    %1767 = vmatprep.mubr.f32.mxu0 0.0
    %1768 = vmatmul.mubr.f32.gmra.mrb[0].mxu0 %v1701
    %v1769 = vpop.f32.mrb[0].mxu0
    %v1770 = vadd.f32 0.0, %v1769
    %v1771 = vpop.f32.mrb[0].mxu0
    %1772 = vdwg.mxu0
    %v1774 = vsel %vm212, %v1694, 0
    %v1777 = vsel %vm212, %v1770, 0
    %1779 = vmatprep.subr.mxu0 0.0
    %1780 = vmatpush1.msra.mxu0 %v208
    %1781 = vmatprep.subr.mxu0 0.0
    %1782 = vmatpush1.msra.mxu0 0.0
    %1783 = vmatprep.subr.mxu0 0.0
    %1784 = vmatpush1.msra.mxu0 0.0
    %1785 = vmatprep.subr.mxu0 0.0
    %1786 = vmatpush1.msra.mxu0 0.0
    %1787 = vmatprep.subr.mxu0 0.0
    %1788 = vmatpush1.msra.mxu0 0.0
    %1789 = vmatprep.subr.mxu0 0.0
    %1790 = vmatpush1.msra.mxu0 0.0
    %1791 = vmatprep.subr.mxu0 0.0
    %1792 = vmatpush1.msra.mxu0 0.0
    %1793 = vmatprep.subr.mxu0 0.0
    %1794 = vmatpush1.msra.mxu0 0.0
    %1795 = vmatprep.subr.mxu0 0.0
    %1796 = vmatpush1.msra.mxu0 0.0
    %1797 = vmatprep.subr.mxu0 0.0
    %1798 = vmatpush1.msra.mxu0 0.0
    %1799 = vmatprep.subr.mxu0 0.0
    %1800 = vmatpush1.msra.mxu0 0.0
    %1801 = vmatprep.subr.mxu0 0.0
    %1802 = vmatpush1.msra.mxu0 0.0
    %1803 = vmatprep.subr.mxu0 0.0
    %1804 = vmatpush1.msra.mxu0 0.0
    %1805 = vmatprep.subr.mxu0 0.0
    %1806 = vmatpush1.msra.mxu0 0.0
    %1807 = vmatprep.subr.mxu0 0.0
    %1808 = vmatpush1.msra.mxu0 0.0
    %1809 = vmatprep.subr.mxu0 0.0
    %1810 = vmatpush1.msra.mxu0 0.0
    %1811 = vmatprep.subr.mxu0 0.0
    %1812 = vmatpush1.msra.mxu0 0.0
    %1813 = vmatprep.subr.mxu0 0.0
    %1814 = vmatpush1.msra.mxu0 0.0
    %1815 = vmatprep.subr.mxu0 0.0
    %1816 = vmatpush1.msra.mxu0 0.0
    %1817 = vmatprep.subr.mxu0 0.0
    %1818 = vmatpush1.msra.mxu0 0.0
    %1819 = vmatprep.subr.mxu0 0.0
    %1820 = vmatpush1.msra.mxu0 0.0
    %1821 = vmatprep.subr.mxu0 0.0
    %1822 = vmatpush1.msra.mxu0 0.0
    %1823 = vmatprep.subr.mxu0 0.0
    %1824 = vmatpush1.msra.mxu0 0.0
    %1825 = vmatprep.subr.mxu0 0.0
    %1826 = vmatpush1.msra.mxu0 0.0
    %1827 = vmatprep.subr.mxu0 0.0
    %1828 = vmatpush1.msra.mxu0 0.0
    %1829 = vmatprep.subr.mxu0 0.0
    %1830 = vmatpush1.msra.mxu0 0.0
    %1831 = vmatprep.subr.mxu0 0.0
    %1832 = vmatpush1.msra.mxu0 0.0
    %1833 = vmatprep.subr.mxu0 0.0
    %1834 = vmatpush1.msra.mxu0 0.0
    %1835 = vmatprep.subr.mxu0 0.0
    %1836 = vmatpush1.msra.mxu0 0.0
    %1837 = vmatprep.subr.mxu0 0.0
    %1838 = vmatpush1.msra.mxu0 0.0
    %1839 = vmatprep.subr.mxu0 0.0
    %1840 = vmatpush1.msra.mxu0 0.0
    %1841 = vmatprep.subr.mxu0 0.0
    %1842 = vmatpush1.msra.mxu0 0.0
    %1843 = vmatprep.mubr.f32.mxu0 0.0
    %1844 = vmatmul.mubr.f32.gmra.mrb[0].mxu0 %v1774
    %v1845 = vpop.f32.mrb[0].mxu0
    %v1846 = vadd.f32 0.0, %v1845
    %v1847 = vpop.f32.mrb[0].mxu0
    %1848 = vmatprep.mubr.f32.mxu0 0.0
    %1849 = vmatmul.mubr.f32.gmra.mrb[0].mxu0 %v1777
    %v1850 = vpop.f32.mrb[0].mxu0
    %v1851 = vadd.f32 0.0, %v1850
    %v1852 = vpop.f32.mrb[0].mxu0
    %1853 = vdwg.mxu0
    %v1854 = vadd.f32 %v1441, %v1846
    %v1855 = vadd.f32 %v1442, %v1851
    %v1856 = vld [vmem:[%s6] sm:$0x1]
    %v1858 = vlaneseq
    %v1859 = vshrl.u32 %v1858, 7
    %v1860 = vsub.s32 0, %v1859
    %v1861 = vrot.slane %v1856, %v1860
    %v1863 = vadd.f32 %v1854, %v1861
    %v1864 = vadd.f32 %v1855, %v1861
    %v1865 = vadd.f32 %v65, %v1863
    %v1866 = vadd.f32 %v66, %v1864
    %v1867 = vld [vmem:[%s7] sm:$0x1]
    %v1868 = vld [vmem:[%s8] sm:$0x1]
    %v1869 = vsel %vm69, %v1865, 0.0
    %1870 = vadd.xlane.f32.xlu0 %v1869
    %v1871 = vpop.xlane.xlu0 %1870
    %v1872 = vsel %vm69, %v1866, 0.0
    %1873 = vadd.xlane.f32.xlu0 %v1872
    %v1874 = vpop.xlane.xlu0 %1873
    %v1875 = vmul.f32 %v1871, %v76
    %v1876 = vmul.f32 %v1874, %v76
    %v1877 = vsub.f32 %v1865, %v1875
    %v1878 = vsub.f32 %v1866, %v1876
    %v1879 = vmul.f32 %v1877, %v1877
    %v1880 = vmul.f32 %v1878, %v1878
    %v1881 = vsel %vm69, %v1879, 0.0
    %1882 = vadd.xlane.f32.xlu0 %v1881
    %v1883 = vpop.xlane.xlu0 %1882
    %v1884 = vsel %vm69, %v1880, 0.0
    %1885 = vadd.xlane.f32.xlu0 %v1884
    %v1886 = vpop.xlane.xlu0 %1885
    %v1887 = vmul.f32 %v1883, %v76
    %v1888 = vmul.f32 %v1886, %v76
    %v1889 = vadd.f32 %v1887, 1e-06
    %v1890 = vadd.f32 %v1888, 1e-06
    %v1891 = vrsqrt.pop %v1889
    %v1892 = vrsqrt.pop %v1890
    %v1893 = vmul.f32 %v1877, %v1891
    %v1894 = vmul.f32 %v1878, %v1892
    %v1896 = vlaneseq
    %v1897 = vshrl.u32 %v1896, 7
    %v1898 = vsub.s32 0, %v1897
    %v1899 = vrot.slane %v1867, %v1898
    %v1901 = vmul.f32 %v1893, %v1899
    %v1902 = vmul.f32 %v1894, %v1899
    %v1904 = vlaneseq
    %v1905 = vshrl.u32 %v1904, 7
    %v1906 = vsub.s32 0, %v1905
    %v1907 = vrot.slane %v1868, %v1906
    %v1909 = vadd.f32 %v1901, %v1907
    %v1910 = vadd.f32 %v1902, %v1907
    %v1911 = vld [vmem:[%s9] sm:$0xff]
    %v1912 = vld [vmem:[%s9 + $0x8] sm:$0xff]
    %v1913 = vld [vmem:[%s9 + $0x10] sm:$0xff]
    %v1914 = vld [vmem:[%s9 + $0x18] sm:$0xff]
    %v1915 = vld [vmem:[%s10] sm:$0x1]
    %v1917 = vlaneseq
    %v1918 = vshrl.u32 %v1917, 7
    %v1919 = vsub.s32 0, %v1918
    %v1920 = vrot.slane %v1915, %v1919
    %v1923 = vsel %vm69, %v1909, 0
    %v1926 = vsel %vm69, %v1910, 0
    %1928 = vmatprep.subr.mxu0 0.0
    %1929 = vmatpush1.msra.mxu0 %v1911
    %1930 = vmatprep.subr.mxu0 0.0
    %1931 = vmatpush1.msra.mxu0 %v1912
    %1932 = vmatprep.subr.mxu0 0.0
    %1933 = vmatpush1.msra.mxu0 %v1913
    %1934 = vmatprep.subr.mxu0 0.0
    %1935 = vmatpush1.msra.mxu0 %v1914
    %1936 = vmatprep.subr.mxu0 0.0
    %1937 = vmatpush1.msra.mxu0 0.0
    %1938 = vmatprep.subr.mxu0 0.0
    %1939 = vmatpush1.msra.mxu0 0.0
    %1940 = vmatprep.subr.mxu0 0.0
    %1941 = vmatpush1.msra.mxu0 0.0
    %1942 = vmatprep.subr.mxu0 0.0
    %1943 = vmatpush1.msra.mxu0 0.0
    %1944 = vmatprep.subr.mxu0 0.0
    %1945 = vmatpush1.msra.mxu0 0.0
    %1946 = vmatprep.subr.mxu0 0.0
    %1947 = vmatpush1.msra.mxu0 0.0
    %1948 = vmatprep.subr.mxu0 0.0
    %1949 = vmatpush1.msra.mxu0 0.0
    %1950 = vmatprep.subr.mxu0 0.0
    %1951 = vmatpush1.msra.mxu0 0.0
    %1952 = vmatprep.subr.mxu0 0.0
    %1953 = vmatpush1.msra.mxu0 0.0
    %1954 = vmatprep.subr.mxu0 0.0
    %1955 = vmatpush1.msra.mxu0 0.0
    %1956 = vmatprep.subr.mxu0 0.0
    %1957 = vmatpush1.msra.mxu0 0.0
    %1958 = vmatprep.subr.mxu0 0.0
    %1959 = vmatpush1.msra.mxu0 0.0
    %1960 = vmatprep.subr.mxu0 0.0
    %1961 = vmatpush1.msra.mxu0 0.0
    %1962 = vmatprep.subr.mxu0 0.0
    %1963 = vmatpush1.msra.mxu0 0.0
    %1964 = vmatprep.subr.mxu0 0.0
    %1965 = vmatpush1.msra.mxu0 0.0
    %1966 = vmatprep.subr.mxu0 0.0
    %1967 = vmatpush1.msra.mxu0 0.0
    %1968 = vmatprep.subr.mxu0 0.0
    %1969 = vmatpush1.msra.mxu0 0.0
    %1970 = vmatprep.subr.mxu0 0.0
    %1971 = vmatpush1.msra.mxu0 0.0
    %1972 = vmatprep.subr.mxu0 0.0
    %1973 = vmatpush1.msra.mxu0 0.0
    %1974 = vmatprep.subr.mxu0 0.0
    %1975 = vmatpush1.msra.mxu0 0.0
    %1976 = vmatprep.subr.mxu0 0.0
    %1977 = vmatpush1.msra.mxu0 0.0
    %1978 = vmatprep.subr.mxu0 0.0
    %1979 = vmatpush1.msra.mxu0 0.0
    %1980 = vmatprep.subr.mxu0 0.0
    %1981 = vmatpush1.msra.mxu0 0.0
    %1982 = vmatprep.subr.mxu0 0.0
    %1983 = vmatpush1.msra.mxu0 0.0
    %1984 = vmatprep.subr.mxu0 0.0
    %1985 = vmatpush1.msra.mxu0 0.0
    %1986 = vmatprep.subr.mxu0 0.0
    %1987 = vmatpush1.msra.mxu0 0.0
    %1988 = vmatprep.subr.mxu0 0.0
    %1989 = vmatpush1.msra.mxu0 0.0
    %1990 = vmatprep.subr.mxu0 0.0
    %1991 = vmatpush1.msra.mxu0 0.0
    %1992 = vmatprep.mubr.f32.mxu0 0.0
    %1993 = vmatmul.mubr.f32.gmra.mrb[0].mxu0 %v1923
    %v1994 = vpop.f32.mrb[0].mxu0
    %v1995 = vadd.f32 %v1920, %v1994
    %v1996 = vpop.f32.mrb[0].mxu0
    %1997 = vmatprep.mubr.f32.mxu0 0.0
    %1998 = vmatmul.mubr.f32.gmra.mrb[0].mxu0 %v1926
    %v1999 = vpop.f32.mrb[0].mxu0
    %v2000 = vadd.f32 %v1920, %v1999
    %v2001 = vpop.f32.mrb[0].mxu0
    %2002 = vdwg.mxu0
    %v2003 = vmul.f32 %v1995, 0.5
    %v2004 = vmul.f32 %v2000, 0.5
    %v2005 = vmul.f32 %v1995, 0.70710677
    %v2006 = vmul.f32 %v2000, 0.70710677
    %v2007 = verf.f32.pop %v2005
    %v2008 = verf.f32.pop %v2006
    %v2009 = vadd.f32 %v2007, 1.0
    %v2010 = vadd.f32 %v2008, 1.0
    %v2011 = vmul.f32 %v2003, %v2009
    %v2012 = vmul.f32 %v2004, %v2010
    %v2013 = vld [vmem:[%s11] sm:$0xff]
    %v2014 = vld [vmem:[%s11 + $0x8] sm:$0xff]
    %v2015 = vld [vmem:[%s11 + $0x10] sm:$0xff]
    %v2016 = vld [vmem:[%s11 + $0x18] sm:$0xff]
    %v2017 = vld [vmem:[%s11 + $0x20] sm:$0xff]
    %v2018 = vld [vmem:[%s11 + $0x28] sm:$0xff]
    %v2019 = vld [vmem:[%s11 + $0x30] sm:$0xff]
    %v2020 = vld [vmem:[%s11 + $0x38] sm:$0xff]
    %v2021 = vld [vmem:[%s12] sm:$0x1]
    %v2023 = vlaneseq
    %v2024 = vshrl.u32 %v2023, 7
    %v2025 = vsub.s32 0, %v2024
    %v2026 = vrot.slane %v2021, %v2025
    %vm2028 = vcmask 523264
    %v2030 = vsel %vm2028, %v2011, 0
    %v2033 = vsel %vm2028, %v2012, 0
    %2035 = vmatprep.subr.mxu0 0.0
    %2036 = vmatpush1.msra.mxu0 %v2013
    %2037 = vmatprep.subr.mxu0 0.0
    %2038 = vmatpush1.msra.mxu0 %v2014
    %2039 = vmatprep.subr.mxu0 0.0
    %2040 = vmatpush1.msra.mxu0 %v2015
    %2041 = vmatprep.subr.mxu0 0.0
    %2042 = vmatpush1.msra.mxu0 %v2016
    %2043 = vmatprep.subr.mxu0 0.0
    %2044 = vmatpush1.msra.mxu0 %v2017
    %2045 = vmatprep.subr.mxu0 0.0
    %2046 = vmatpush1.msra.mxu0 %v2018
    %2047 = vmatprep.subr.mxu0 0.0
    %2048 = vmatpush1.msra.mxu0 %v2019
    %2049 = vmatprep.subr.mxu0 0.0
    %2050 = vmatpush1.msra.mxu0 %v2020
    %2051 = vmatprep.subr.mxu0 0.0
    %2052 = vmatpush1.msra.mxu0 0.0
    %2053 = vmatprep.subr.mxu0 0.0
    %2054 = vmatpush1.msra.mxu0 0.0
    %2055 = vmatprep.subr.mxu0 0.0
    %2056 = vmatpush1.msra.mxu0 0.0
    %2057 = vmatprep.subr.mxu0 0.0
    %2058 = vmatpush1.msra.mxu0 0.0
    %2059 = vmatprep.subr.mxu0 0.0
    %2060 = vmatpush1.msra.mxu0 0.0
    %2061 = vmatprep.subr.mxu0 0.0
    %2062 = vmatpush1.msra.mxu0 0.0
    %2063 = vmatprep.subr.mxu0 0.0
    %2064 = vmatpush1.msra.mxu0 0.0
    %2065 = vmatprep.subr.mxu0 0.0
    %2066 = vmatpush1.msra.mxu0 0.0
    %2067 = vmatprep.subr.mxu0 0.0
    %2068 = vmatpush1.msra.mxu0 0.0
    %2069 = vmatprep.subr.mxu0 0.0
    %2070 = vmatpush1.msra.mxu0 0.0
    %2071 = vmatprep.subr.mxu0 0.0
    %2072 = vmatpush1.msra.mxu0 0.0
    %2073 = vmatprep.subr.mxu0 0.0
    %2074 = vmatpush1.msra.mxu0 0.0
    %2075 = vmatprep.subr.mxu0 0.0
    %2076 = vmatpush1.msra.mxu0 0.0
    %2077 = vmatprep.subr.mxu0 0.0
    %2078 = vmatpush1.msra.mxu0 0.0
    %2079 = vmatprep.subr.mxu0 0.0
    %2080 = vmatpush1.msra.mxu0 0.0
    %2081 = vmatprep.subr.mxu0 0.0
    %2082 = vmatpush1.msra.mxu0 0.0
    %2083 = vmatprep.subr.mxu0 0.0
    %2084 = vmatpush1.msra.mxu0 0.0
    %2085 = vmatprep.subr.mxu0 0.0
    %2086 = vmatpush1.msra.mxu0 0.0
    %2087 = vmatprep.subr.mxu0 0.0
    %2088 = vmatpush1.msra.mxu0 0.0
    %2089 = vmatprep.subr.mxu0 0.0
    %2090 = vmatpush1.msra.mxu0 0.0
    %2091 = vmatprep.subr.mxu0 0.0
    %2092 = vmatpush1.msra.mxu0 0.0
    %2093 = vmatprep.subr.mxu0 0.0
    %2094 = vmatpush1.msra.mxu0 0.0
    %2095 = vmatprep.subr.mxu0 0.0
    %2096 = vmatpush1.msra.mxu0 0.0
    %2097 = vmatprep.subr.mxu0 0.0
    %2098 = vmatpush1.msra.mxu0 0.0
    %2099 = vmatprep.mubr.f32.mxu0 0.0
    %2100 = vmatmul.mubr.f32.gmra.mrb[0].mxu0 %v2030
    %v2101 = vpop.f32.mrb[0].mxu0
    %v2102 = vadd.f32 %v2026, %v2101
    %v2103 = vpop.f32.mrb[0].mxu0
    %2104 = vmatprep.mubr.f32.mxu0 0.0
    %2105 = vmatmul.mubr.f32.gmra.mrb[0].mxu0 %v2033
    %v2106 = vpop.f32.mrb[0].mxu0
    %v2107 = vadd.f32 %v2026, %v2106
    %v2108 = vpop.f32.mrb[0].mxu0
    %2109 = vdwg.mxu0
    %v2110 = vmul.f32 %v2102, 0.5
    %v2111 = vmul.f32 %v2107, 0.5
    %v2112 = vmul.f32 %v2102, 0.70710677
    %v2113 = vmul.f32 %v2107, 0.70710677
    %v2114 = verf.f32.pop %v2112
    %v2115 = verf.f32.pop %v2113
    %v2116 = vadd.f32 %v2114, 1.0
    %v2117 = vadd.f32 %v2115, 1.0
    %v2118 = vmul.f32 %v2110, %v2116
    %v2119 = vmul.f32 %v2111, %v2117
    %v2120 = vadd.f32 %v1909, %v2118
    %v2121 = vadd.f32 %v1910, %v2119
    %v2122 = vld [vmem:[%s13] sm:$0x1]
    %v2123 = vld [vmem:[%s14] sm:$0x1]
    %v2124 = vsel %vm69, %v2120, 0.0
    %2125 = vadd.xlane.f32.xlu0 %v2124
    %v2126 = vpop.xlane.xlu0 %2125
    %v2127 = vsel %vm69, %v2121, 0.0
    %2128 = vadd.xlane.f32.xlu0 %v2127
    %v2129 = vpop.xlane.xlu0 %2128
    %v2130 = vmul.f32 %v2126, %v76
    %v2131 = vmul.f32 %v2129, %v76
    %v2132 = vsub.f32 %v2120, %v2130
    %v2133 = vsub.f32 %v2121, %v2131
    %v2134 = vmul.f32 %v2132, %v2132
    %v2135 = vmul.f32 %v2133, %v2133
    %v2136 = vsel %vm69, %v2134, 0.0
    %2137 = vadd.xlane.f32.xlu0 %v2136
    %v2138 = vpop.xlane.xlu0 %2137
    %v2139 = vsel %vm69, %v2135, 0.0
    %2140 = vadd.xlane.f32.xlu0 %v2139
    %v2141 = vpop.xlane.xlu0 %2140
    %v2142 = vmul.f32 %v2138, %v76
    %v2143 = vmul.f32 %v2141, %v76
    %v2144 = vadd.f32 %v2142, 1e-06
    %v2145 = vadd.f32 %v2143, 1e-06
    %v2146 = vrsqrt.pop %v2144
    %v2147 = vrsqrt.pop %v2145
    %v2148 = vmul.f32 %v2132, %v2146
    %v2149 = vmul.f32 %v2133, %v2147
    %v2151 = vlaneseq
    %v2152 = vshrl.u32 %v2151, 7
    %v2153 = vsub.s32 0, %v2152
    %v2154 = vrot.slane %v2122, %v2153
    %v2156 = vmul.f32 %v2148, %v2154
    %v2157 = vmul.f32 %v2149, %v2154
    %v2159 = vlaneseq
    %v2160 = vshrl.u32 %v2159, 7
    %v2161 = vsub.s32 0, %v2160
    %v2162 = vrot.slane %v2123, %v2161
    %v2164 = vadd.f32 %v2156, %v2162
    %v2165 = vadd.f32 %v2157, %v2162
    %2166 = vst.msk [vmem:[#allocation5] sm:$0xff] %vm69, %v2164
    %2167 = vst.msk [vmem:[#allocation5 + $0x8] sm:$0xff] %vm69, %v2165
    // Predicated region
    $region66: #{tpu_custom_call.1} parent=1 // pred_check
      _
    $region67: #{tpu_custom_call.1} parent=1 // pred_check_branch
      %2169 = sbr.rel (0) target = $region69
    $region68: #{tpu_custom_call.1} parent=1 // pred_region
      %s2171 = ssub.s32 256, 256
      %2172 = vsyncadd [#allocation4], %s2171
      %s2173 = sshll.u32 [#allocation5], 4
      %s2174 = int_to_ptr.vmem [resolvable:$true] %s2173
      %2179 = dma.vmem_to_hbm [thread:$0]  %s2174, 256, %s15, [#allocation4], 128, 128, 8
    $region69: #{tpu_custom_call.1} parent=1 // pred_fallthru
      _
    // Predicated region
    $region70: #{tpu_custom_call.1} parent=1 // pred_check
      _
    $region71: #{tpu_custom_call.1} parent=1 // pred_check_branch
      %2181 = sbr.rel (0) target = $region73
    $region72: #{tpu_custom_call.1} parent=1 // pred_region
      %2182 = dma.done [#allocation4], 256
    $region73: #{tpu_custom_call.1} parent=1 // pred_fallthru
      _
    %2183 = vsyncpa [#allocation3], 1
    %2184 = vsyncpa [#allocation4], 1

</llo_original>
